<compile_context>
chip_gen: v5e
topology: v5e:2x2
jax: 0.10.0
libtpu: 0.0.40
codegen_flags: <defaults>
</compile_context>

<pallas_src>
import functools

import jax
import jax.numpy as jnp
from jax.experimental import pallas as pl
from jax.experimental.pallas import tpu as pltpu

C_IN, C1, C2, C3 = 3, 64, 128, 1024
C_OUT = C1 + C3
BN_EPS = 1e-5


def _round_up(x, m):
    return -(-x // m) * m


def concat_feature_kernel(x_ref, w1_ref, b1_ref, w2_ref, b2_ref, w3_ref,
                          b3_ref, out_ref, gmax_ref, gvec_ref):
    """One (batch b, phase p, point-tile n) grid step.

    x_ref   : (1, 3, TN)     f32      w1_ref: (64, 3)    f32   b1_ref: (64, 1)   f32
    w2_ref  : (128, 64)      bf16     b2_ref: (128, 1)   f32
    w3_ref  : (1024, 128)    bf16     b3_ref: (1024, 1)  f32
    out_ref : (1, 1088, TN)  f32 out  (phase 1 writes h1 into [0:64) and the
                                       broadcast global feature into [64:1088))
    gmax_ref: (1024, 128)    f32 scratch, lane-dense running max (VPU only)
    gvec_ref: (1024, 1)      f32 scratch, finalized global feature (+bias)
    """
    phase = pl.program_id(1)
    nt = pl.program_id(2)
    n_last = pl.num_programs(2) - 1

    tn = x_ref.shape[2]
    chunk = 256 if tn % 256 == 0 else 128       # 256 matches the 256-wide MXU
    n_chunks = tn // chunk

    x = x_ref[0]                                # (3, TN)  f32
    w1 = w1_ref[...]                            # (64, 3)  f32
    b1 = b1_ref[...]                            # (64, 1)  f32

    def point_feature(xc):
        # K=3 first layer as three VPU broadcast-FMAs (no K=3 MXU matmul).
        h = (w1[:, 0:1] * xc[0:1, :] + w1[:, 1:2] * xc[1:2, :]
             + w1[:, 2:3] * xc[2:3, :] + b1)
        return jnp.maximum(h, 0.0)

    @pl.when(jnp.logical_and(phase == 0, nt == 0))
    def _init():
        gmax_ref[...] = jnp.full_like(gmax_ref, -jnp.inf)

    @pl.when(phase == 0)
    def _reduce():
        # Fused conv2 -> ReLU -> conv3 -> max over 256-point chunks: the
        # (128, chunk) / (1024, chunk) pieces are consumed immediately, so no
        # O(TN)-sized f32 intermediate is ever allocated in VMEM.
        w2 = w2_ref[...]
        b2 = b2_ref[...]
        w3 = w3_ref[...]
        for c in range(n_chunks):
            xc = x[:, c * chunk:(c + 1) * chunk]
            h1c = point_feature(xc).astype(jnp.bfloat16)           # (64, chunk)
            h2c = jnp.dot(w2, h1c, preferred_element_type=jnp.float32)
            h2c = jnp.maximum(h2c + b2, 0.0).astype(jnp.bfloat16)  # (128, chunk)
            h3c = jnp.dot(w3, h2c, preferred_element_type=jnp.float32)
            # Fold the chunk to 128 lanes with pure VPU maxes (lane-aligned
            # slices), then accumulate into the lane-dense running max.
            m = h3c[:, 0:128]
            for j in range(1, chunk // 128):
                m = jnp.maximum(m, h3c[:, j * 128:(j + 1) * 128])
            gmax_ref[...] = jnp.maximum(gmax_ref[...], m)

    @pl.when(jnp.logical_and(phase == 0, nt == n_last))
    def _finalize():
        # Single cross-lane (XLU) reduce per batch; b3 is a per-channel
        # constant, so max_n(h3 + b3) == max_n(h3) + b3 exactly.
        gvec_ref[...] = (jnp.max(gmax_ref[...], axis=-1, keepdims=True)
                         + b3_ref[...])

    @pl.when(phase == 1)
    def _write():
        # Write the final 1088-channel NCW block once, lane-dense: the point
        # feature (recomputed, 3x64 VPU FMAs - negligible) and the broadcast
        # global feature.  No post-kernel concat / h1 HBM round trip.
        out_ref[0, 0:C1, :] = point_feature(x)
        out_ref[0, C1:C_OUT, :] = jnp.broadcast_to(gvec_ref[...], (C3, tn))


def fold_bn(w, b, gamma, beta, mean, var, eps=BN_EPS):
    """Fold inference-mode BatchNorm into (Cin, Cout) weight / (Cout,) bias."""
    scale = gamma / jnp.sqrt(var + eps)
    return w * scale[None, :], (b - mean) * scale + beta


def _pick_tile(n, tile_n):
    """Largest lane-dense point tile <= tile_n, preferring one that divides N."""
    cap = min(max(128, (tile_n // 128) * 128), _round_up(n, 128))
    lo = max(128, cap // 2)
    for cand in range(cap, lo - 1, -128):
        if n % cand == 0:
            return cand
    return cap


@functools.partial(jax.jit, static_argnames=("tile_n",))
def concat_feature(x_ncw, params, *, tile_n=1024):
    """x_ncw: (B, 3, N) f32 -> (B, 1088, N) f32 (same semantics as the module)."""
    B, c_in, N = x_ncw.shape
    assert c_in == C_IN

    # Fold BN; transpose weights to (Cout, Cin) for the NCW kernel layout.
    w1, b1 = fold_bn(params["w1"], params["b1"], *params["bn1"])
    w2, b2 = fold_bn(params["w2"], params["b2"], *params["bn2"])
    w3, b3 = fold_bn(params["w3"], params["b3"], *params["bn3"])
    w1t = jnp.transpose(w1)                         # (64, 3)     f32 (VPU layer)
    w2t = jnp.transpose(w2).astype(jnp.bfloat16)    # (128, 64)   bf16 (MXU)
    w3t = jnp.transpose(w3).astype(jnp.bfloat16)    # (1024, 128) bf16 (MXU)
    b1c = b1.reshape(C1, 1)
    b2c = b2.reshape(C2, 1)
    b3c = b3.reshape(C3, 1)

    tn = _pick_tile(N, tile_n)
    n_pad = _round_up(N, tn)
    x = x_ncw
    if n_pad != N:
        # Pad by replicating the last point: duplicates never change the global
        # max, and the padded output columns are sliced off below.
        x = jnp.concatenate(
            [x, jnp.broadcast_to(x[:, :, N - 1:N], (B, C_IN, n_pad - N))],
            axis=2)
    n_tiles = n_pad // tn

    fixed = lambda b, p, n: (0, 0)
    flops = 2 * B * N * (2 * C_IN * C1 + C1 * C2 + C2 * C3)
    bytes_accessed = (4 * B * n_pad * C_OUT + 8 * B * n_pad * C_IN
                      + 4 * C_IN * C1 + 2 * C1 * C2 + 2 * C2 * C3
                      + 4 * (C1 + C2 + C3))

    out = pl.pallas_call(
        concat_feature_kernel,
        out_shape=jax.ShapeDtypeStruct((B, C_OUT, n_pad), jnp.float32),
        grid_spec=pltpu.PrefetchScalarGridSpec(
            num_scalar_prefetch=0,
            # (batch, phase, point-tile).  Phase 0 reduces to the global max;
            # phase 1 writes the fused 1088-channel output.  During phase 0 the
            # out index map pins the block to (b, 0, 0) so nothing is flushed
            # until phase 1 overwrites it.
            grid=(B, 2, n_tiles),
            in_specs=[
                pl.BlockSpec((1, C_IN, tn), lambda b, p, n: (b, 0, n)),
                pl.BlockSpec((C1, C_IN), fixed),
                pl.BlockSpec((C1, 1), fixed),
                pl.BlockSpec((C2, C1), fixed),
                pl.BlockSpec((C2, 1), fixed),
                pl.BlockSpec((C3, C2), fixed),
                pl.BlockSpec((C3, 1), fixed),
            ],
            out_specs=pl.BlockSpec((1, C_OUT, tn),
                                   lambda b, p, n: (b, 0, n * p)),
            scratch_shapes=[pltpu.VMEM((C3, 128), jnp.float32),
                            pltpu.VMEM((C3, 1), jnp.float32)],
        ),
        compiler_params=pltpu.CompilerParams(
            dimension_semantics=("parallel", "arbitrary", "arbitrary"),
            vmem_limit_bytes=32 * 1024 * 1024),
        cost_estimate=pl.CostEstimate(
            flops=int(flops), transcendentals=0,
            bytes_accessed=int(bytes_accessed)),
    )(x, w1t, b1c, w2t, b2c, w3t, b3c)

    if n_pad != N:
        out = out[:, :, :N]
    return out


def make_params(key):
    ks = jax.random.split(key, 6)
    params = {
        # Conv1d(k=1) weights stored as (Cin, Cout).
        "w1": 0.1 * jax.random.normal(ks[0], (C_IN, C1), jnp.float32),
        "b1": 0.1 * jax.random.normal(ks[1], (C1,), jnp.float32),
        "w2": 0.1 * jax.random.normal(ks[2], (C1, C2), jnp.float32),
        "b2": 0.1 * jax.random.normal(ks[3], (C2,), jnp.float32),
        "w3": 0.1 * jax.random.normal(ks[4], (C2, C3), jnp.float32),
        "b3": 0.1 * jax.random.normal(ks[5], (C3,), jnp.float32),
    }
    # BatchNorm (gamma, beta, running_mean, running_var) at PyTorch defaults.
    for name, c in (("bn1", C1), ("bn2", C2), ("bn3", C3)):
        params[name] = (jnp.ones((c,), jnp.float32), jnp.zeros((c,), jnp.float32),
                        jnp.zeros((c,), jnp.float32), jnp.ones((c,), jnp.float32))
    return params


def reference(x_ncw, params):
    """Pure-JAX reference (inference-mode BN, same bf16 casts as the kernel)."""
    B, _, N = x_ncw.shape
    w1, b1 = fold_bn(params["w1"], params["b1"], *params["bn1"])
    w2, b2 = fold_bn(params["w2"], params["b2"], *params["bn2"])
    w3, b3 = fold_bn(params["w3"], params["b3"], *params["bn3"])
    x = jnp.transpose(x_ncw, (0, 2, 1))                       # (B, N, 3)
    h1 = (x[..., 0:1] * w1[0] + x[..., 1:2] * w1[1]
          + x[..., 2:3] * w1[2] + b1)
    h1 = jnp.maximum(h1, 0.0)                                 # (B, N, 64)
    h2 = jnp.einsum("bnc,cd->bnd", h1.astype(jnp.bfloat16),
                    w2.astype(jnp.bfloat16),
                    preferred_element_type=jnp.float32) + b2
    h2 = jnp.maximum(h2, 0.0)                                 # (B, N, 128)
    h3 = jnp.einsum("bnc,cd->bnd", h2.astype(jnp.bfloat16),
                    w3.astype(jnp.bfloat16),
                    preferred_element_type=jnp.float32) + b3  # (B, N, 1024)
    g = jnp.max(h3, axis=1)                                   # (B, 1024)
    return jnp.concatenate(
        [jnp.transpose(h1, (0, 2, 1)),
         jnp.broadcast_to(g[:, :, None], (B, C3, N))], axis=1)


if __name__ == "__main__":
    key = jax.random.PRNGKey(0)
    k_x, k_x2, k_p = jax.random.split(key, 3)
    params = make_params(k_p)

    # Small single-tile case (exercises padding + the two-phase fused write).
    B, N = 2, 16
    x = jax.random.normal(k_x, (B, C_IN, N), jnp.float32)     # (B, 3, N)
    out = jax.block_until_ready(concat_feature(x, params))
    ref = reference(x, params)
    assert out.shape == (B, C_OUT, N), out.shape
    assert jnp.allclose(out, ref, atol=2e-3, rtol=2e-3), float(
        jnp.max(jnp.abs(out - ref)))

    # Multi-tile case: exercises the running-max accumulator across tiles,
    # the chunked conv2/conv3 fusion, and point padding.
    N2 = 200
    x2 = jax.random.normal(k_x2, (B, C_IN, N2), jnp.float32)
    out2 = jax.block_until_ready(concat_feature(x2, params, tile_n=128))
    ref2 = reference(x2, params)
    assert out2.shape == (B, C_OUT, N2), out2.shape
    assert jnp.allclose(out2, ref2, atol=2e-3, rtol=2e-3), float(
        jnp.max(jnp.abs(out2 - ref2)))

    print("KERNEL_OK")
</pallas_src>

<mosaic_0001>
module attributes {stable_mosaic.version = 11 : i64} {
  func.func @concat_feature_kernel(%arg0: i32, %arg1: i32, %arg2: i32, %arg3: memref<1x3x128xf32, #tpu.memory_space<vmem>>, %arg4: memref<64x3xf32, #tpu.memory_space<vmem>>, %arg5: memref<64x1xf32, #tpu.memory_space<vmem>>, %arg6: memref<128x64xbf16, #tpu.memory_space<vmem>>, %arg7: memref<128x1xf32, #tpu.memory_space<vmem>>, %arg8: memref<1024x128xbf16, #tpu.memory_space<vmem>>, %arg9: memref<1024x1xf32, #tpu.memory_space<vmem>>, %arg10: memref<1x1088x128xf32, #tpu.memory_space<vmem>>, %arg11: memref<1024x128xf32, #tpu.memory_space<vmem>>, %arg12: memref<1024x1xf32, #tpu.memory_space<vmem>>) attributes {dimension_semantics = [#tpu.dimension_semantics<parallel>, #tpu.dimension_semantics<arbitrary>, #tpu.dimension_semantics<arbitrary>], iteration_bounds = array<i64: 2, 2, 1>, scalar_prefetch = 0 : i64, scratch_operands = 2 : i64, tpu.core_type = #tpu.core_type<tc>, window_params = [{transform_indices = @transform_0, window_bounds = array<i64: 1, 3, 128>}, {pipeline_mode = #tpu.pipeline_mode<synchronous>, transform_indices = @transform_1, window_bounds = array<i64: 64, 3>}, {pipeline_mode = #tpu.pipeline_mode<synchronous>, transform_indices = @transform_2, window_bounds = array<i64: 64, 1>}, {pipeline_mode = #tpu.pipeline_mode<synchronous>, transform_indices = @transform_3, window_bounds = array<i64: 128, 64>}, {pipeline_mode = #tpu.pipeline_mode<synchronous>, transform_indices = @transform_4, window_bounds = array<i64: 128, 1>}, {pipeline_mode = #tpu.pipeline_mode<synchronous>, transform_indices = @transform_5, window_bounds = array<i64: 1024, 128>}, {pipeline_mode = #tpu.pipeline_mode<synchronous>, transform_indices = @transform_6, window_bounds = array<i64: 1024, 1>}, {transform_indices = @transform_7, window_bounds = array<i64: 1, 1088, 128>}]} {
    %c0 = arith.constant 0 : index
    %c0_0 = arith.constant 0 : index
    %c0_1 = arith.constant 0 : index
    %0 = vector.load %arg3[%c0, %c0_0, %c0_1] : memref<1x3x128xf32, #tpu.memory_space<vmem>>, vector<1x3x128xf32>
    %1 = vector.shape_cast %0 : vector<1x3x128xf32> to vector<3x128xf32>
    %c0_2 = arith.constant 0 : index
    %c0_3 = arith.constant 0 : index
    %2 = vector.load %arg4[%c0_2, %c0_3] : memref<64x3xf32, #tpu.memory_space<vmem>>, vector<64x3xf32>
    %c0_4 = arith.constant 0 : index
    %c0_5 = arith.constant 0 : index
    %3 = vector.load %arg5[%c0_4, %c0_5] : memref<64x1xf32, #tpu.memory_space<vmem>>, vector<64x1xf32>
    %c0_i32 = arith.constant 0 : i32
    %4 = arith.cmpi eq, %arg1, %c0_i32 : i32
    %c0_i32_6 = arith.constant 0 : i32
    %5 = arith.cmpi eq, %arg2, %c0_i32_6 : i32
    %6 = arith.andi %4, %5 : i1
    %7 = arith.extui %6 : i1 to i32
    %c0_i32_7 = arith.constant 0 : i32
    %8 = arith.cmpi ne, %7, %c0_i32_7 : i32
    scf.if %8 {
      %cst = arith.constant 0xFF800000 : f32
      %20 = vector.broadcast %cst : f32 to vector<1024x128xf32>
      %c0_14 = arith.constant 0 : index
      %c0_15 = arith.constant 0 : index
      %21 = vector.load %arg11[%c0_14, %c0_15] : memref<1024x128xf32, #tpu.memory_space<vmem>>, vector<1024x128xf32>
      tpu.vector_store %arg11[%c0_14, %c0_15], %20 {strides = array<i32>} : memref<1024x128xf32, #tpu.memory_space<vmem>>, vector<1024x128xf32>,
    } else {
    }
    %c0_i32_8 = arith.constant 0 : i32
    %9 = arith.cmpi eq, %arg1, %c0_i32_8 : i32
    %10 = arith.extui %9 : i1 to i32
    %c0_i32_9 = arith.constant 0 : i32
    %11 = arith.cmpi ne, %10, %c0_i32_9 : i32
    scf.if %11 {
      %c0_14 = arith.constant 0 : index
      %c0_15 = arith.constant 0 : index
      %20 = vector.load %arg6[%c0_14, %c0_15] : memref<128x64xbf16, #tpu.memory_space<vmem>>, vector<128x64xbf16>
      %c0_16 = arith.constant 0 : index
      %c0_17 = arith.constant 0 : index
      %21 = vector.load %arg7[%c0_16, %c0_17] : memref<128x1xf32, #tpu.memory_space<vmem>>, vector<128x1xf32>
      %c0_18 = arith.constant 0 : index
      %c0_19 = arith.constant 0 : index
      %22 = vector.load %arg8[%c0_18, %c0_19] : memref<1024x128xbf16, #tpu.memory_space<vmem>>, vector<1024x128xbf16>
      %23 = vector.extract_strided_slice %2 {offsets = [0, 0], sizes = [64, 1], strides = [1, 1]} : vector<64x3xf32> to vector<64x1xf32>
      %24 = vector.extract_strided_slice %1 {offsets = [0, 0], sizes = [1, 128], strides = [1, 1]} : vector<3x128xf32> to vector<1x128xf32>
      %25 = vector.broadcast %23 : vector<64x1xf32> to vector<64x128xf32>
      %26 = vector.broadcast %24 : vector<1x128xf32> to vector<64x128xf32>
      %27 = arith.mulf %25, %26 : vector<64x128xf32>
      %28 = vector.extract_strided_slice %2 {offsets = [0, 1], sizes = [64, 1], strides = [1, 1]} : vector<64x3xf32> to vector<64x1xf32>
      %29 = vector.extract_strided_slice %1 {offsets = [1, 0], sizes = [1, 128], strides = [1, 1]} : vector<3x128xf32> to vector<1x128xf32>
      %30 = vector.broadcast %28 : vector<64x1xf32> to vector<64x128xf32>
      %31 = vector.broadcast %29 : vector<1x128xf32> to vector<64x128xf32>
      %32 = arith.mulf %30, %31 : vector<64x128xf32>
      %33 = arith.addf %27, %32 : vector<64x128xf32>
      %34 = vector.extract_strided_slice %2 {offsets = [0, 2], sizes = [64, 1], strides = [1, 1]} : vector<64x3xf32> to vector<64x1xf32>
      %35 = vector.extract_strided_slice %1 {offsets = [2, 0], sizes = [1, 128], strides = [1, 1]} : vector<3x128xf32> to vector<1x128xf32>
      %36 = vector.broadcast %34 : vector<64x1xf32> to vector<64x128xf32>
      %37 = vector.broadcast %35 : vector<1x128xf32> to vector<64x128xf32>
      %38 = arith.mulf %36, %37 : vector<64x128xf32>
      %39 = arith.addf %33, %38 : vector<64x128xf32>
      %40 = vector.broadcast %3 : vector<64x1xf32> to vector<64x128xf32>
      %41 = arith.addf %39, %40 : vector<64x128xf32>
      %cst = arith.constant 0.000000e+00 : f32
      %42 = vector.broadcast %cst : f32 to vector<64x128xf32>
      %43 = arith.maximumf %41, %42 : vector<64x128xf32>
      %44 = arith.truncf %43 : vector<64x128xf32> to vector<64x128xbf16>
      %cst_20 = arith.constant dense<0.000000e+00> : vector<128x128xf32>
      %45 = tpu.matmul %20, %44, %cst_20 {dimension_numbers = #tpu.dot_dimension_numbers<[1], [0], [0], [1], [0, 0, 1, 1], [], []>} : vector<128x64xbf16>, vector<64x128xbf16>, vector<128x128xf32> -> vector<128x128xf32>
      %46 = vector.broadcast %21 : vector<128x1xf32> to vector<128x128xf32>
      %47 = arith.addf %45, %46 : vector<128x128xf32>
      %cst_21 = arith.constant 0.000000e+00 : f32
      %48 = vector.broadcast %cst_21 : f32 to vector<128x128xf32>
      %49 = arith.maximumf %47, %48 : vector<128x128xf32>
      %50 = arith.truncf %49 : vector<128x128xf32> to vector<128x128xbf16>
      %cst_22 = arith.constant dense<0.000000e+00> : vector<1024x128xf32>
      %51 = tpu.matmul %22, %50, %cst_22 {dimension_numbers = #tpu.dot_dimension_numbers<[1], [0], [0], [1], [0, 0, 1, 1], [], []>} : vector<1024x128xbf16>, vector<128x128xbf16>, vector<1024x128xf32> -> vector<1024x128xf32>
      %c0_23 = arith.constant 0 : index
      %c0_24 = arith.constant 0 : index
      %52 = vector.load %arg11[%c0_23, %c0_24] : memref<1024x128xf32, #tpu.memory_space<vmem>>, vector<1024x128xf32>
      %53 = arith.maximumf %52, %51 : vector<1024x128xf32>
      %c0_25 = arith.constant 0 : index
      %c0_26 = arith.constant 0 : index
      %54 = vector.load %arg11[%c0_25, %c0_26] : memref<1024x128xf32, #tpu.memory_space<vmem>>, vector<1024x128xf32>
      tpu.vector_store %arg11[%c0_25, %c0_26], %53 {strides = array<i32>} : memref<1024x128xf32, #tpu.memory_space<vmem>>, vector<1024x128xf32>,
    } else {
    }
    %c0_i32_10 = arith.constant 0 : i32
    %12 = arith.cmpi eq, %arg1, %c0_i32_10 : i32
    %c0_i32_11 = arith.constant 0 : i32
    %13 = arith.cmpi eq, %arg2, %c0_i32_11 : i32
    %14 = arith.andi %12, %13 : i1
    %15 = arith.extui %14 : i1 to i32
    %c0_i32_12 = arith.constant 0 : i32
    %16 = arith.cmpi ne, %15, %c0_i32_12 : i32
    scf.if %16 {
      %c0_14 = arith.constant 0 : index
      %c0_15 = arith.constant 0 : index
      %20 = vector.load %arg11[%c0_14, %c0_15] : memref<1024x128xf32, #tpu.memory_space<vmem>>, vector<1024x128xf32>
      %cst = arith.constant dense<0xFF800000> : vector<1024xf32>
      %21 = vector.multi_reduction <maximumf>, %20, %cst [1] : vector<1024x128xf32> to vector<1024xf32>
      %22 = vector.shape_cast %21 : vector<1024xf32> to vector<1024x1xf32>
      %c0_16 = arith.constant 0 : index
      %c0_17 = arith.constant 0 : index
      %23 = vector.load %arg9[%c0_16, %c0_17] : memref<1024x1xf32, #tpu.memory_space<vmem>>, vector<1024x1xf32>
      %24 = arith.addf %22, %23 : vector<1024x1xf32>
      %c0_18 = arith.constant 0 : index
      %c0_19 = arith.constant 0 : index
      %25 = vector.load %arg12[%c0_18, %c0_19] : memref<1024x1xf32, #tpu.memory_space<vmem>>, vector<1024x1xf32>
      tpu.vector_store %arg12[%c0_18, %c0_19], %24 {strides = array<i32>} : memref<1024x1xf32, #tpu.memory_space<vmem>>, vector<1024x1xf32>,
    } else {
    }
    %c1_i32 = arith.constant 1 : i32
    %17 = arith.cmpi eq, %arg1, %c1_i32 : i32
    %18 = arith.extui %17 : i1 to i32
    %c0_i32_13 = arith.constant 0 : i32
    %19 = arith.cmpi ne, %18, %c0_i32_13 : i32
    scf.if %19 {
      %20 = vector.extract_strided_slice %2 {offsets = [0, 0], sizes = [64, 1], strides = [1, 1]} : vector<64x3xf32> to vector<64x1xf32>
      %21 = vector.extract_strided_slice %1 {offsets = [0, 0], sizes = [1, 128], strides = [1, 1]} : vector<3x128xf32> to vector<1x128xf32>
      %22 = vector.broadcast %20 : vector<64x1xf32> to vector<64x128xf32>
      %23 = vector.broadcast %21 : vector<1x128xf32> to vector<64x128xf32>
      %24 = arith.mulf %22, %23 : vector<64x128xf32>
      %25 = vector.extract_strided_slice %2 {offsets = [0, 1], sizes = [64, 1], strides = [1, 1]} : vector<64x3xf32> to vector<64x1xf32>
      %26 = vector.extract_strided_slice %1 {offsets = [1, 0], sizes = [1, 128], strides = [1, 1]} : vector<3x128xf32> to vector<1x128xf32>
      %27 = vector.broadcast %25 : vector<64x1xf32> to vector<64x128xf32>
      %28 = vector.broadcast %26 : vector<1x128xf32> to vector<64x128xf32>
      %29 = arith.mulf %27, %28 : vector<64x128xf32>
      %30 = arith.addf %24, %29 : vector<64x128xf32>
      %31 = vector.extract_strided_slice %2 {offsets = [0, 2], sizes = [64, 1], strides = [1, 1]} : vector<64x3xf32> to vector<64x1xf32>
      %32 = vector.extract_strided_slice %1 {offsets = [2, 0], sizes = [1, 128], strides = [1, 1]} : vector<3x128xf32> to vector<1x128xf32>
      %33 = vector.broadcast %31 : vector<64x1xf32> to vector<64x128xf32>
      %34 = vector.broadcast %32 : vector<1x128xf32> to vector<64x128xf32>
      %35 = arith.mulf %33, %34 : vector<64x128xf32>
      %36 = arith.addf %30, %35 : vector<64x128xf32>
      %37 = vector.broadcast %3 : vector<64x1xf32> to vector<64x128xf32>
      %38 = arith.addf %36, %37 : vector<64x128xf32>
      %cst = arith.constant 0.000000e+00 : f32
      %39 = vector.broadcast %cst : f32 to vector<64x128xf32>
      %40 = arith.maximumf %38, %39 : vector<64x128xf32>
      %c0_14 = arith.constant 0 : index
      %c0_15 = arith.constant 0 : index
      %c0_16 = arith.constant 0 : index
      %41 = vector.load %arg10[%c0_14, %c0_15, %c0_16] : memref<1x1088x128xf32, #tpu.memory_space<vmem>>, vector<1x64x128xf32>
      %42 = vector.shape_cast %41 : vector<1x64x128xf32> to vector<64x128xf32>
      %43 = vector.shape_cast %40 : vector<64x128xf32> to vector<1x64x128xf32>
      tpu.vector_store %arg10[%c0_14, %c0_15, %c0_16], %43 {strides = array<i32>} : memref<1x1088x128xf32, #tpu.memory_space<vmem>>, vector<1x64x128xf32>,
      %c0_17 = arith.constant 0 : index
      %c0_18 = arith.constant 0 : index
      %44 = vector.load %arg12[%c0_17, %c0_18] : memref<1024x1xf32, #tpu.memory_space<vmem>>, vector<1024x1xf32>
      %45 = vector.shape_cast %44 : vector<1024x1xf32> to vector<1024x1xf32>
      %46 = vector.broadcast %45 : vector<1024x1xf32> to vector<1024x128xf32>
      %c0_19 = arith.constant 0 : index
      %c64 = arith.constant 64 : index
      %c0_20 = arith.constant 0 : index
      %47 = vector.load %arg10[%c0_19, %c64, %c0_20] : memref<1x1088x128xf32, #tpu.memory_space<vmem>>, vector<1x1024x128xf32>
      %48 = vector.shape_cast %47 : vector<1x1024x128xf32> to vector<1024x128xf32>
      %49 = vector.shape_cast %46 : vector<1024x128xf32> to vector<1x1024x128xf32>
      tpu.vector_store %arg10[%c0_19, %c64, %c0_20], %49 {strides = array<i32>} : memref<1x1088x128xf32, #tpu.memory_space<vmem>>, vector<1x1024x128xf32>,
    } else {
    }
    return
  }
  func.func @transform_0(%arg0: i32, %arg1: i32, %arg2: i32) -> (i32, i32, i32) {
    %c0_i32 = arith.constant 0 : i32
    %c0_i32_0 = arith.constant 0 : i32
    return %arg0, %c0_i32, %arg2 : i32, i32, i32
  }
  func.func @transform_1(%arg0: i32, %arg1: i32, %arg2: i32) -> (i32, i32) {
    %c0_i32 = arith.constant 0 : i32
    %c0_i32_0 = arith.constant 0 : i32
    %c0_i32_1 = arith.constant 0 : i32
    return %c0_i32, %c0_i32_0 : i32, i32
  }
  func.func @transform_2(%arg0: i32, %arg1: i32, %arg2: i32) -> (i32, i32) {
    %c0_i32 = arith.constant 0 : i32
    %c0_i32_0 = arith.constant 0 : i32
    %c0_i32_1 = arith.constant 0 : i32
    return %c0_i32, %c0_i32_0 : i32, i32
  }
  func.func @transform_3(%arg0: i32, %arg1: i32, %arg2: i32) -> (i32, i32) {
    %c0_i32 = arith.constant 0 : i32
    %c0_i32_0 = arith.constant 0 : i32
    %c0_i32_1 = arith.constant 0 : i32
    return %c0_i32, %c0_i32_0 : i32, i32
  }
  func.func @transform_4(%arg0: i32, %arg1: i32, %arg2: i32) -> (i32, i32) {
    %c0_i32 = arith.constant 0 : i32
    %c0_i32_0 = arith.constant 0 : i32
    %c0_i32_1 = arith.constant 0 : i32
    return %c0_i32, %c0_i32_0 : i32, i32
  }
  func.func @transform_5(%arg0: i32, %arg1: i32, %arg2: i32) -> (i32, i32) {
    %c0_i32 = arith.constant 0 : i32
    %c0_i32_0 = arith.constant 0 : i32
    %c0_i32_1 = arith.constant 0 : i32
    return %c0_i32, %c0_i32_0 : i32, i32
  }
  func.func @transform_6(%arg0: i32, %arg1: i32, %arg2: i32) -> (i32, i32) {
    %c0_i32 = arith.constant 0 : i32
    %c0_i32_0 = arith.constant 0 : i32
    %c0_i32_1 = arith.constant 0 : i32
    return %c0_i32, %c0_i32_0 : i32, i32
  }
  func.func @transform_7(%arg0: i32, %arg1: i32, %arg2: i32) -> (i32, i32, i32) {
    %0 = arith.muli %arg2, %arg1 : i32
    %c0_i32 = arith.constant 0 : i32
    %c0_i32_0 = arith.constant 0 : i32
    return %arg0, %c0_i32, %0 : i32, i32, i32
  }
}

</mosaic_0001>

<llo_original>
// kernel: concat_feature.1
$region0: #{concat_feature.1}
  #allocation0 [shape = 'u32[]', space=smem, size = 0x4, offset = 0x4, fixed_abs, tag = 'smem constant byte address 0x4 - core index']
  #allocation1 [shape = 'u32[72,128]{1,0:T(1,128)}', space=vmem, size = 0x9000, scoped, tag = 'internal scratch']
  #allocation2 [shape = 'f32[1024,128]{1,0:T(8,128)}', space=vmem, size = 0x80000, scoped, tag = 'scratch operand']
  #allocation3 [shape = 'f32[1024,1]{1,0:T(8,128)}', space=vmem, size = 0x80000, scoped, tag = 'scratch operand']
  %s0 = inlined_call_operand.vmem [shape: f32[2,3,128], index: 0, kind: input, shape index: {}]
  %s1 = inlined_call_operand.vmem [shape: f32[64,3], index: 1, kind: input, shape index: {}]
  %s2 = inlined_call_operand.vmem [shape: f32[64,1], index: 2, kind: input, shape index: {}]
  %s3 = inlined_call_operand.vmem [shape: bf16[128,64], index: 3, kind: input, shape index: {}]
  %s4 = inlined_call_operand.vmem [shape: f32[128,1], index: 4, kind: input, shape index: {}]
  %s5 = inlined_call_operand.vmem [shape: bf16[1024,128], index: 5, kind: input, shape index: {}]
  %s6 = inlined_call_operand.vmem [shape: f32[1024,1], index: 6, kind: input, shape index: {}]
  %s7 = inlined_call_operand.vmem [shape: f32[2,1088,128], index: 7, kind: output, shape index: {}]
  %s8 = sld [smem:[#allocation0]]
  $region77: #{concat_feature.1} parent=0
    _
  %s10 = ssub.s32 1, %s8
  %s11 = scalar_select 0, %s10, %s8
  loop: start=0, step=1, limit=6
  $region2: #{concat_feature.1} parent=0 // loop_pre_header
    _
  $region3: #{concat_feature.1} parent=0 // loop_header
    %s13 = sphi 0, %s17
    %p14 = scmp.ge.s32.totalorder %s13, 6
    %s20 = sphi 0, %s39
    %s21 = sphi 0, %s35
    %s22 = sphi 0, %s31
    %s23 = sphi 0, %s20
    %s24 = sphi 0, %s21
    %s25 = sphi 0, %s22
    %s26 = sphi 0, %s23
    %s27 = sphi 0, %s24
    %s28 = sphi 0, %s25
    %s44 = sphi 0, %s46
    %s47 = sphi 0, %s44
    %s48 = sphi 0, %s47
    %s64 = sphi 0, %s48
    %s68 = sphi 0, %s68
    %s70 = sphi 0, %s68
    %s71 = sphi 0, %s70
    %s85 = sphi 0, %s71
    %s89 = sphi 0, %s89
    %s91 = sphi 0, %s89
    %s92 = sphi 0, %s91
    %s106 = sphi 0, %s92
    %s110 = sphi 0, %s110
    %s112 = sphi 0, %s110
    %s113 = sphi 0, %s112
    %s127 = sphi 0, %s113
    %s131 = sphi 0, %s131
    %s133 = sphi 0, %s131
    %s134 = sphi 0, %s133
    %s148 = sphi 0, %s134
    %s152 = sphi 0, %s152
    %s154 = sphi 0, %s152
    %s155 = sphi 0, %s154
    %s169 = sphi 0, %s155
    %s173 = sphi 0, %s173
    %s175 = sphi 0, %s173
    %s176 = sphi 0, %s175
    %s190 = sphi 0, %s176
    %s200 = sphi 0, %s202
    %s203 = sphi 0, %s200
    %s204 = sphi 0, %s203
    %s220 = sphi 0, %s204
  $region4: #{concat_feature.1} parent=0 // loop_header_branch
    %16 = sbr.rel (%p14) target = $region8
  $region5: #{concat_feature.1} parent=0 // loop_body
    %s18 = ssub.s32 %s13, 1
    %s19 = ssub.s32 %s13, 2
    %s29 = sadd.s32 1, %s22
    %p30 = scmp.ge.s32.totalorder %s29, 1
    %s31 = scalar_select %p30, 0, %s29
    %s32 = sadd.s32 1, %s21
    %s33 = scalar_select %p30, %s32, %s21
    %p34 = scmp.ge.s32.totalorder %s33, 2
    %s35 = scalar_select %p34, 0, %s33
    %s36 = sadd.s32 1, %s20
    %s37 = scalar_select %p34, %s36, %s20
    %p38 = scmp.ge.s32.totalorder %s37, 2
    %s39 = scalar_select %p38, 0, %s37
    %s40 = ssub.s32 %s20, %s39
    %s41 = ssub.s32 %s22, %s31
    %s42 = sor.u32 %s40, %s41
    %p43 = scmp.eq.s32.totalorder %s42, 0
    %s45 = sadd.s32 %s44, 1
    %s46 = scalar_select %p43, %s44, %s45
    %p49 = pneg %p43
    %p50 = scmp.eq.s32.totalorder %s13, 3
    %p51 = por %p49, %p50
    %p52 = scmp.ne.s32.totalorder %s44, %s47
    %p53 = scmp.eq.s32.totalorder %s13, 0
    %p54 = por %p52, %p53
    %p55 = scmp.ne.s32.totalorder %s44, %s47
    %p56 = scmp.eq.s32.totalorder %s18, 3
    %p57 = por %p55, %p56
    %p58 = scmp.ne.s32.totalorder %s47, %s48
    %p59 = scmp.eq.s32.totalorder %s18, 0
    %p60 = por %p58, %p59
    %p61 = scmp.ne.s32.totalorder %s47, %s48
    %p62 = scmp.eq.s32.totalorder %s19, 3
    %p63 = por %p61, %p62
    %p65 = scmp.ne.s32.totalorder %s48, %s64
    %p66 = scmp.eq.s32.totalorder %s19, 0
    %p67 = por %p65, %p66
    %s69 = sadd.s32 %s68, 1
    %p72 = scmp.eq.s32.totalorder %s13, 3
    %p73 = scmp.ne.s32.totalorder %s68, %s70
    %p74 = scmp.eq.s32.totalorder %s13, 0
    %p75 = por %p73, %p74
    %p76 = scmp.ne.s32.totalorder %s68, %s70
    %p77 = scmp.eq.s32.totalorder %s18, 3
    %p78 = por %p76, %p77
    %p79 = scmp.ne.s32.totalorder %s70, %s71
    %p80 = scmp.eq.s32.totalorder %s18, 0
    %p81 = por %p79, %p80
    %p82 = scmp.ne.s32.totalorder %s70, %s71
    %p83 = scmp.eq.s32.totalorder %s19, 3
    %p84 = por %p82, %p83
    %p86 = scmp.ne.s32.totalorder %s71, %s85
    %p87 = scmp.eq.s32.totalorder %s19, 0
    %p88 = por %p86, %p87
    %s90 = sadd.s32 %s89, 1
    %p93 = scmp.eq.s32.totalorder %s13, 3
    %p94 = scmp.ne.s32.totalorder %s89, %s91
    %p95 = scmp.eq.s32.totalorder %s13, 0
    %p96 = por %p94, %p95
    %p97 = scmp.ne.s32.totalorder %s89, %s91
    %p98 = scmp.eq.s32.totalorder %s18, 3
    %p99 = por %p97, %p98
    %p100 = scmp.ne.s32.totalorder %s91, %s92
    %p101 = scmp.eq.s32.totalorder %s18, 0
    %p102 = por %p100, %p101
    %p103 = scmp.ne.s32.totalorder %s91, %s92
    %p104 = scmp.eq.s32.totalorder %s19, 3
    %p105 = por %p103, %p104
    %p107 = scmp.ne.s32.totalorder %s92, %s106
    %p108 = scmp.eq.s32.totalorder %s19, 0
    %p109 = por %p107, %p108
    %s111 = sadd.s32 %s110, 1
    %p114 = scmp.eq.s32.totalorder %s13, 3
    %p115 = scmp.ne.s32.totalorder %s110, %s112
    %p116 = scmp.eq.s32.totalorder %s13, 0
    %p117 = por %p115, %p116
    %p118 = scmp.ne.s32.totalorder %s110, %s112
    %p119 = scmp.eq.s32.totalorder %s18, 3
    %p120 = por %p118, %p119
    %p121 = scmp.ne.s32.totalorder %s112, %s113
    %p122 = scmp.eq.s32.totalorder %s18, 0
    %p123 = por %p121, %p122
    %p124 = scmp.ne.s32.totalorder %s112, %s113
    %p125 = scmp.eq.s32.totalorder %s19, 3
    %p126 = por %p124, %p125
    %p128 = scmp.ne.s32.totalorder %s113, %s127
    %p129 = scmp.eq.s32.totalorder %s19, 0
    %p130 = por %p128, %p129
    %s132 = sadd.s32 %s131, 1
    %p135 = scmp.eq.s32.totalorder %s13, 3
    %p136 = scmp.ne.s32.totalorder %s131, %s133
    %p137 = scmp.eq.s32.totalorder %s13, 0
    %p138 = por %p136, %p137
    %p139 = scmp.ne.s32.totalorder %s131, %s133
    %p140 = scmp.eq.s32.totalorder %s18, 3
    %p141 = por %p139, %p140
    %p142 = scmp.ne.s32.totalorder %s133, %s134
    %p143 = scmp.eq.s32.totalorder %s18, 0
    %p144 = por %p142, %p143
    %p145 = scmp.ne.s32.totalorder %s133, %s134
    %p146 = scmp.eq.s32.totalorder %s19, 3
    %p147 = por %p145, %p146
    %p149 = scmp.ne.s32.totalorder %s134, %s148
    %p150 = scmp.eq.s32.totalorder %s19, 0
    %p151 = por %p149, %p150
    %s153 = sadd.s32 %s152, 1
    %p156 = scmp.eq.s32.totalorder %s13, 3
    %p157 = scmp.ne.s32.totalorder %s152, %s154
    %p158 = scmp.eq.s32.totalorder %s13, 0
    %p159 = por %p157, %p158
    %p160 = scmp.ne.s32.totalorder %s152, %s154
    %p161 = scmp.eq.s32.totalorder %s18, 3
    %p162 = por %p160, %p161
    %p163 = scmp.ne.s32.totalorder %s154, %s155
    %p164 = scmp.eq.s32.totalorder %s18, 0
    %p165 = por %p163, %p164
    %p166 = scmp.ne.s32.totalorder %s154, %s155
    %p167 = scmp.eq.s32.totalorder %s19, 3
    %p168 = por %p166, %p167
    %p170 = scmp.ne.s32.totalorder %s155, %s169
    %p171 = scmp.eq.s32.totalorder %s19, 0
    %p172 = por %p170, %p171
    %s174 = sadd.s32 %s173, 1
    %p177 = scmp.eq.s32.totalorder %s13, 3
    %p178 = scmp.ne.s32.totalorder %s173, %s175
    %p179 = scmp.eq.s32.totalorder %s13, 0
    %p180 = por %p178, %p179
    %p181 = scmp.ne.s32.totalorder %s173, %s175
    %p182 = scmp.eq.s32.totalorder %s18, 3
    %p183 = por %p181, %p182
    %p184 = scmp.ne.s32.totalorder %s175, %s176
    %p185 = scmp.eq.s32.totalorder %s18, 0
    %p186 = por %p184, %p185
    %p187 = scmp.ne.s32.totalorder %s175, %s176
    %p188 = scmp.eq.s32.totalorder %s19, 3
    %p189 = por %p187, %p188
    %p191 = scmp.ne.s32.totalorder %s176, %s190
    %p192 = scmp.eq.s32.totalorder %s19, 0
    %p193 = por %p191, %p192
    %s194 = smul.u32 %s22, %s21
    %s195 = smul.u32 %s31, %s35
    %s196 = ssub.s32 %s20, %s39
    %s197 = ssub.s32 %s194, %s195
    %s198 = sor.u32 %s196, %s197
    %p199 = scmp.eq.s32.totalorder %s198, 0
    %s201 = sadd.s32 %s200, 1
    %s202 = scalar_select %p199, %s200, %s201
    %p205 = pneg %p199
    %p206 = scmp.eq.s32.totalorder %s13, 3
    %p207 = por %p205, %p206
    %p208 = scmp.ne.s32.totalorder %s200, %s203
    %p209 = scmp.eq.s32.totalorder %s13, 0
    %p210 = por %p208, %p209
    %p211 = scmp.ne.s32.totalorder %s200, %s203
    %p212 = scmp.eq.s32.totalorder %s18, 3
    %p213 = por %p211, %p212
    %p214 = scmp.ne.s32.totalorder %s203, %s204
    %p215 = scmp.eq.s32.totalorder %s18, 0
    %p216 = por %p214, %p215
    %p217 = scmp.ne.s32.totalorder %s203, %s204
    %p218 = scmp.eq.s32.totalorder %s19, 3
    %p219 = por %p217, %p218
    %p221 = scmp.ne.s32.totalorder %s204, %s220
    %p222 = scmp.eq.s32.totalorder %s19, 0
    %p223 = por %p221, %p222
    %p224 = scmp.le.s32.totalorder 1, %s13
    %p225 = scmp.lt.s32.totalorder %s13, 5
    %p226 = pnand %p224, %p225
    %p227 = pneg %p226
    // Predicated region
    $region9: #{concat_feature.1} parent=5 // pred_check
      _
    $region10: #{concat_feature.1} parent=5 // pred_check_branch
      %229 = sbr.rel (%p226) target = $region12
    $region11: #{concat_feature.1} parent=5 // pred_region
      %s230 = ssub.s32 %s13, 1
      // Predicated region
      $region13: #{concat_feature.1} parent=11 // pred_check
        %p231 = pneg %p81
      $region14: #{concat_feature.1} parent=11 // pred_check_branch
        %233 = sbr.rel (%p231) target = $region16
      $region15: #{concat_feature.1} parent=11 // pred_region
        _
      $region16: #{concat_feature.1} parent=11 // pred_fallthru
        _
      // Predicated region
      $region17: #{concat_feature.1} parent=11 // pred_check
        %p234 = pneg %p102
      $region18: #{concat_feature.1} parent=11 // pred_check_branch
        %236 = sbr.rel (%p234) target = $region20
      $region19: #{concat_feature.1} parent=11 // pred_region
        _
      $region20: #{concat_feature.1} parent=11 // pred_fallthru
        _
      // Predicated region
      $region21: #{concat_feature.1} parent=11 // pred_check
        %p237 = pneg %p123
      $region22: #{concat_feature.1} parent=11 // pred_check_branch
        %239 = sbr.rel (%p237) target = $region24
      $region23: #{concat_feature.1} parent=11 // pred_region
        _
      $region24: #{concat_feature.1} parent=11 // pred_fallthru
        _
      // Predicated region
      $region25: #{concat_feature.1} parent=11 // pred_check
        %p240 = pneg %p144
      $region26: #{concat_feature.1} parent=11 // pred_check_branch
        %242 = sbr.rel (%p240) target = $region28
      $region27: #{concat_feature.1} parent=11 // pred_region
        _
      $region28: #{concat_feature.1} parent=11 // pred_fallthru
        _
      // Predicated region
      $region29: #{concat_feature.1} parent=11 // pred_check
        %p243 = pneg %p165
      $region30: #{concat_feature.1} parent=11 // pred_check_branch
        %245 = sbr.rel (%p243) target = $region32
      $region31: #{concat_feature.1} parent=11 // pred_region
        _
      $region32: #{concat_feature.1} parent=11 // pred_fallthru
        _
      // Predicated region
      $region33: #{concat_feature.1} parent=11 // pred_check
        %p246 = pneg %p186
      $region34: #{concat_feature.1} parent=11 // pred_check_branch
        %248 = sbr.rel (%p246) target = $region36
      $region35: #{concat_feature.1} parent=11 // pred_region
        _
      $region36: #{concat_feature.1} parent=11 // pred_fallthru
        _
    $region12: #{concat_feature.1} parent=5 // pred_fallthru
      _
    %p249 = scmp.lt.s32.totalorder %s13, 4
    // Predicated region
    $region37: #{concat_feature.1} parent=5 // pred_check
      %p250 = pneg %p249
    $region38: #{concat_feature.1} parent=5 // pred_check_branch
      %252 = sbr.rel (%p250) target = $region40
    $region39: #{concat_feature.1} parent=5 // pred_region
      // Predicated region
      $region41: #{concat_feature.1} parent=39 // pred_check
        %p253 = pneg %p54
      $region42: #{concat_feature.1} parent=39 // pred_check_branch
        %255 = sbr.rel (%p253) target = $region44
      $region43: #{concat_feature.1} parent=39 // pred_region
        %p256 = scmp.lt.s32.totalorder %s20, 1
        %s257 = scalar_select %p256, %s20, 1
        %p258 = scmp.lt.s32.totalorder %s22, 0
        %s259 = scalar_select %p258, %s22, 0
        %s260 = sadd.s32 %s259, %s257
        %s261 = smul.addr %s260, 4
        %s262 = scalar_lea.vmem %s0, %s261
      $region44: #{concat_feature.1} parent=39 // pred_fallthru
        _
    $region40: #{concat_feature.1} parent=5 // pred_fallthru
      _
    %p263 = scmp.le.s32.totalorder 1, %s13
    %p264 = scmp.lt.s32.totalorder %s13, 5
    %p265 = pnand %p263, %p264
    %p266 = pneg %p265
    // Predicated region
    $region45: #{concat_feature.1} parent=5 // pred_check
      _
    $region46: #{concat_feature.1} parent=5 // pred_check_branch
      %268 = sbr.rel (%p265) target = $region48
    $region47: #{concat_feature.1} parent=5 // pred_region
      %s269 = ssub.s32 %s13, 1
      %p270 = scmp.lt.s32.totalorder %s23, 1
      %s271 = scalar_select %p270, %s23, 1
      %p272 = scmp.lt.s32.totalorder %s25, 0
      %s273 = scalar_select %p272, %s25, 0
      %s274 = sadd.s32 %s273, %s271
      %s275 = smul.addr %s274, 4
      %s276 = scalar_lea.vmem %s0, %s275
      %p277 = pneg %p60
      %p278 = pneg %p57
      %p279 = pneg %p81
      %p280 = pneg %p78
      %p281 = pneg %p102
      %p282 = pneg %p99
      %p283 = pneg %p123
      %p284 = pneg %p120
      %p285 = pneg %p144
      %p286 = pneg %p141
      %p287 = pneg %p165
      %p288 = pneg %p162
      %p289 = pneg %p186
      %p290 = pneg %p183
      %p291 = pneg %p216
      %p292 = pneg %p213
      %s293 = smul.u32 %s25, %s24
      %p294 = scmp.lt.s32.totalorder %s23, 1
      %s295 = scalar_select %p294, %s23, 1
      %p296 = scmp.lt.s32.totalorder %s293, 0
      %s297 = scalar_select %p296, %s293, 0
      %s298 = smul.addr %s295, 136
      %s299 = sadd.s32 %s297, %s298
      %s300 = smul.addr %s299, 8
      %s301 = scalar_lea.vmem %s7, %s300
      %p302 = scmp.lt.s32.totalorder %s23, 1
      %s303 = scalar_select %p302, %s23, 1
      %p304 = scmp.lt.s32.totalorder %s25, 0
      %s305 = scalar_select %p304, %s25, 0
      %s306 = sadd.s32 %s305, %s303
      %s307 = smul.addr %s306, 4
      %s308 = scalar_lea.vmem %s0, %s307
      %s309 = smul.u32 %s25, %s24
      %p310 = scmp.lt.s32.totalorder %s23, 1
      %s311 = scalar_select %p310, %s23, 1
      %p312 = scmp.lt.s32.totalorder %s309, 0
      %s313 = scalar_select %p312, %s309, 0
      %s314 = smul.addr %s311, 136
      %s315 = sadd.s32 %s313, %s314
      %s316 = smul.addr %s315, 8
      %s317 = scalar_lea.vmem %s7, %s316
      %s318 = smul.u32 %s25, %s24
      %v320 = vld [vmem:[%s308] sm:$0x7]
      %v321 = vld [vmem:[%s1] sm:$0xff]
      %v322 = vld [vmem:[%s1 + $0x8] sm:$0xff]
      %v323 = vld [vmem:[%s1 + $0x10] sm:$0xff]
      %v324 = vld [vmem:[%s1 + $0x18] sm:$0xff]
      %v325 = vld [vmem:[%s1 + $0x20] sm:$0xff]
      %v326 = vld [vmem:[%s1 + $0x28] sm:$0xff]
      %v327 = vld [vmem:[%s1 + $0x30] sm:$0xff]
      %v328 = vld [vmem:[%s1 + $0x38] sm:$0xff]
      %v329 = vld [vmem:[%s2] sm:$0xff]
      %v330 = vld [vmem:[%s2 + $0x8] sm:$0xff]
      %v331 = vld [vmem:[%s2 + $0x10] sm:$0xff]
      %v332 = vld [vmem:[%s2 + $0x18] sm:$0xff]
      %v333 = vld [vmem:[%s2 + $0x20] sm:$0xff]
      %v334 = vld [vmem:[%s2 + $0x28] sm:$0xff]
      %v335 = vld [vmem:[%s2 + $0x30] sm:$0xff]
      %v336 = vld [vmem:[%s2 + $0x38] sm:$0xff]
      %p337 = scmp.eq.s32.totalorder %s24, 0
      %p338 = scmp.eq.s32.totalorder %s25, 0
      %p339 = pnand %p337, %p338
      %p340 = pneg %p339
      // Predicated region
      $region49: #{concat_feature.1} parent=47 // pred_check
        _
      $region50: #{concat_feature.1} parent=47 // pred_check_branch
        %342 = sbr.rel (%p339) target = $region52
      $region51: #{concat_feature.1} parent=47 // pred_region
        %343 = vst [vmem:[#allocation2] sm:$0xff] -inf
        %344 = vst [vmem:[#allocation2 + $0x8] sm:$0xff] -inf
        %345 = vst [vmem:[#allocation2 + $0x10] sm:$0xff] -inf
        %346 = vst [vmem:[#allocation2 + $0x18] sm:$0xff] -inf
        %347 = vst [vmem:[#allocation2 + $0x20] sm:$0xff] -inf
        %348 = vst [vmem:[#allocation2 + $0x28] sm:$0xff] -inf
        %349 = vst [vmem:[#allocation2 + $0x30] sm:$0xff] -inf
        %350 = vst [vmem:[#allocation2 + $0x38] sm:$0xff] -inf
        %351 = vst [vmem:[#allocation2 + $0x40] sm:$0xff] -inf
        %352 = vst [vmem:[#allocation2 + $0x48] sm:$0xff] -inf
        %353 = vst [vmem:[#allocation2 + $0x50] sm:$0xff] -inf
        %354 = vst [vmem:[#allocation2 + $0x58] sm:$0xff] -inf
        %355 = vst [vmem:[#allocation2 + $0x60] sm:$0xff] -inf
        %356 = vst [vmem:[#allocation2 + $0x68] sm:$0xff] -inf
        %357 = vst [vmem:[#allocation2 + $0x70] sm:$0xff] -inf
        %358 = vst [vmem:[#allocation2 + $0x78] sm:$0xff] -inf
        %359 = vst [vmem:[#allocation2 + $0x80] sm:$0xff] -inf
        %360 = vst [vmem:[#allocation2 + $0x88] sm:$0xff] -inf
        %361 = vst [vmem:[#allocation2 + $0x90] sm:$0xff] -inf
        %362 = vst [vmem:[#allocation2 + $0x98] sm:$0xff] -inf
        %363 = vst [vmem:[#allocation2 + $0xa0] sm:$0xff] -inf
        %364 = vst [vmem:[#allocation2 + $0xa8] sm:$0xff] -inf
        %365 = vst [vmem:[#allocation2 + $0xb0] sm:$0xff] -inf
        %366 = vst [vmem:[#allocation2 + $0xb8] sm:$0xff] -inf
        %367 = vst [vmem:[#allocation2 + $0xc0] sm:$0xff] -inf
        %368 = vst [vmem:[#allocation2 + $0xc8] sm:$0xff] -inf
        %369 = vst [vmem:[#allocation2 + $0xd0] sm:$0xff] -inf
        %370 = vst [vmem:[#allocation2 + $0xd8] sm:$0xff] -inf
        %371 = vst [vmem:[#allocation2 + $0xe0] sm:$0xff] -inf
        %372 = vst [vmem:[#allocation2 + $0xe8] sm:$0xff] -inf
        %373 = vst [vmem:[#allocation2 + $0xf0] sm:$0xff] -inf
        %374 = vst [vmem:[#allocation2 + $0xf8] sm:$0xff] -inf
        %375 = vst [vmem:[#allocation2 + $0x100] sm:$0xff] -inf
        %376 = vst [vmem:[#allocation2 + $0x108] sm:$0xff] -inf
        %377 = vst [vmem:[#allocation2 + $0x110] sm:$0xff] -inf
        %378 = vst [vmem:[#allocation2 + $0x118] sm:$0xff] -inf
        %379 = vst [vmem:[#allocation2 + $0x120] sm:$0xff] -inf
        %380 = vst [vmem:[#allocation2 + $0x128] sm:$0xff] -inf
        %381 = vst [vmem:[#allocation2 + $0x130] sm:$0xff] -inf
        %382 = vst [vmem:[#allocation2 + $0x138] sm:$0xff] -inf
        %383 = vst [vmem:[#allocation2 + $0x140] sm:$0xff] -inf
        %384 = vst [vmem:[#allocation2 + $0x148] sm:$0xff] -inf
        %385 = vst [vmem:[#allocation2 + $0x150] sm:$0xff] -inf
        %386 = vst [vmem:[#allocation2 + $0x158] sm:$0xff] -inf
        %387 = vst [vmem:[#allocation2 + $0x160] sm:$0xff] -inf
        %388 = vst [vmem:[#allocation2 + $0x168] sm:$0xff] -inf
        %389 = vst [vmem:[#allocation2 + $0x170] sm:$0xff] -inf
        %390 = vst [vmem:[#allocation2 + $0x178] sm:$0xff] -inf
        %391 = vst [vmem:[#allocation2 + $0x180] sm:$0xff] -inf
        %392 = vst [vmem:[#allocation2 + $0x188] sm:$0xff] -inf
        %393 = vst [vmem:[#allocation2 + $0x190] sm:$0xff] -inf
        %394 = vst [vmem:[#allocation2 + $0x198] sm:$0xff] -inf
        %395 = vst [vmem:[#allocation2 + $0x1a0] sm:$0xff] -inf
        %396 = vst [vmem:[#allocation2 + $0x1a8] sm:$0xff] -inf
        %397 = vst [vmem:[#allocation2 + $0x1b0] sm:$0xff] -inf
        %398 = vst [vmem:[#allocation2 + $0x1b8] sm:$0xff] -inf
        %399 = vst [vmem:[#allocation2 + $0x1c0] sm:$0xff] -inf
        %400 = vst [vmem:[#allocation2 + $0x1c8] sm:$0xff] -inf
        %401 = vst [vmem:[#allocation2 + $0x1d0] sm:$0xff] -inf
        %402 = vst [vmem:[#allocation2 + $0x1d8] sm:$0xff] -inf
        %403 = vst [vmem:[#allocation2 + $0x1e0] sm:$0xff] -inf
        %404 = vst [vmem:[#allocation2 + $0x1e8] sm:$0xff] -inf
        %405 = vst [vmem:[#allocation2 + $0x1f0] sm:$0xff] -inf
        %406 = vst [vmem:[#allocation2 + $0x1f8] sm:$0xff] -inf
        %407 = vst [vmem:[#allocation2 + $0x200] sm:$0xff] -inf
        %408 = vst [vmem:[#allocation2 + $0x208] sm:$0xff] -inf
        %409 = vst [vmem:[#allocation2 + $0x210] sm:$0xff] -inf
        %410 = vst [vmem:[#allocation2 + $0x218] sm:$0xff] -inf
        %411 = vst [vmem:[#allocation2 + $0x220] sm:$0xff] -inf
        %412 = vst [vmem:[#allocation2 + $0x228] sm:$0xff] -inf
        %413 = vst [vmem:[#allocation2 + $0x230] sm:$0xff] -inf
        %414 = vst [vmem:[#allocation2 + $0x238] sm:$0xff] -inf
        %415 = vst [vmem:[#allocation2 + $0x240] sm:$0xff] -inf
        %416 = vst [vmem:[#allocation2 + $0x248] sm:$0xff] -inf
        %417 = vst [vmem:[#allocation2 + $0x250] sm:$0xff] -inf
        %418 = vst [vmem:[#allocation2 + $0x258] sm:$0xff] -inf
        %419 = vst [vmem:[#allocation2 + $0x260] sm:$0xff] -inf
        %420 = vst [vmem:[#allocation2 + $0x268] sm:$0xff] -inf
        %421 = vst [vmem:[#allocation2 + $0x270] sm:$0xff] -inf
        %422 = vst [vmem:[#allocation2 + $0x278] sm:$0xff] -inf
        %423 = vst [vmem:[#allocation2 + $0x280] sm:$0xff] -inf
        %424 = vst [vmem:[#allocation2 + $0x288] sm:$0xff] -inf
        %425 = vst [vmem:[#allocation2 + $0x290] sm:$0xff] -inf
        %426 = vst [vmem:[#allocation2 + $0x298] sm:$0xff] -inf
        %427 = vst [vmem:[#allocation2 + $0x2a0] sm:$0xff] -inf
        %428 = vst [vmem:[#allocation2 + $0x2a8] sm:$0xff] -inf
        %429 = vst [vmem:[#allocation2 + $0x2b0] sm:$0xff] -inf
        %430 = vst [vmem:[#allocation2 + $0x2b8] sm:$0xff] -inf
        %431 = vst [vmem:[#allocation2 + $0x2c0] sm:$0xff] -inf
        %432 = vst [vmem:[#allocation2 + $0x2c8] sm:$0xff] -inf
        %433 = vst [vmem:[#allocation2 + $0x2d0] sm:$0xff] -inf
        %434 = vst [vmem:[#allocation2 + $0x2d8] sm:$0xff] -inf
        %435 = vst [vmem:[#allocation2 + $0x2e0] sm:$0xff] -inf
        %436 = vst [vmem:[#allocation2 + $0x2e8] sm:$0xff] -inf
        %437 = vst [vmem:[#allocation2 + $0x2f0] sm:$0xff] -inf
        %438 = vst [vmem:[#allocation2 + $0x2f8] sm:$0xff] -inf
        %439 = vst [vmem:[#allocation2 + $0x300] sm:$0xff] -inf
        %440 = vst [vmem:[#allocation2 + $0x308] sm:$0xff] -inf
        %441 = vst [vmem:[#allocation2 + $0x310] sm:$0xff] -inf
        %442 = vst [vmem:[#allocation2 + $0x318] sm:$0xff] -inf
        %443 = vst [vmem:[#allocation2 + $0x320] sm:$0xff] -inf
        %444 = vst [vmem:[#allocation2 + $0x328] sm:$0xff] -inf
        %445 = vst [vmem:[#allocation2 + $0x330] sm:$0xff] -inf
        %446 = vst [vmem:[#allocation2 + $0x338] sm:$0xff] -inf
        %447 = vst [vmem:[#allocation2 + $0x340] sm:$0xff] -inf
        %448 = vst [vmem:[#allocation2 + $0x348] sm:$0xff] -inf
        %449 = vst [vmem:[#allocation2 + $0x350] sm:$0xff] -inf
        %450 = vst [vmem:[#allocation2 + $0x358] sm:$0xff] -inf
        %451 = vst [vmem:[#allocation2 + $0x360] sm:$0xff] -inf
        %452 = vst [vmem:[#allocation2 + $0x368] sm:$0xff] -inf
        %453 = vst [vmem:[#allocation2 + $0x370] sm:$0xff] -inf
        %454 = vst [vmem:[#allocation2 + $0x378] sm:$0xff] -inf
        %455 = vst [vmem:[#allocation2 + $0x380] sm:$0xff] -inf
        %456 = vst [vmem:[#allocation2 + $0x388] sm:$0xff] -inf
        %457 = vst [vmem:[#allocation2 + $0x390] sm:$0xff] -inf
        %458 = vst [vmem:[#allocation2 + $0x398] sm:$0xff] -inf
        %459 = vst [vmem:[#allocation2 + $0x3a0] sm:$0xff] -inf
        %460 = vst [vmem:[#allocation2 + $0x3a8] sm:$0xff] -inf
        %461 = vst [vmem:[#allocation2 + $0x3b0] sm:$0xff] -inf
        %462 = vst [vmem:[#allocation2 + $0x3b8] sm:$0xff] -inf
        %463 = vst [vmem:[#allocation2 + $0x3c0] sm:$0xff] -inf
        %464 = vst [vmem:[#allocation2 + $0x3c8] sm:$0xff] -inf
        %465 = vst [vmem:[#allocation2 + $0x3d0] sm:$0xff] -inf
        %466 = vst [vmem:[#allocation2 + $0x3d8] sm:$0xff] -inf
        %467 = vst [vmem:[#allocation2 + $0x3e0] sm:$0xff] -inf
        %468 = vst [vmem:[#allocation2 + $0x3e8] sm:$0xff] -inf
        %469 = vst [vmem:[#allocation2 + $0x3f0] sm:$0xff] -inf
        %470 = vst [vmem:[#allocation2 + $0x3f8] sm:$0xff] -inf
      $region52: #{concat_feature.1} parent=47 // pred_fallthru
        _
      // Predicated region
      $region53: #{concat_feature.1} parent=47 // pred_check
        %p471 = pneg %p337
      $region54: #{concat_feature.1} parent=47 // pred_check_branch
        %473 = sbr.rel (%p471) target = $region56
      $region55: #{concat_feature.1} parent=47 // pred_region
        %v474 = vld [vmem:[%s3] sm:$0xf]
        %v475 = vld [vmem:[%s3 + $0x4] sm:$0xf]
        %v476 = vld [vmem:[%s3 + $0x8] sm:$0xf]
        %v477 = vld [vmem:[%s3 + $0xc] sm:$0xf]
        %v478 = vld [vmem:[%s3 + $0x10] sm:$0xf]
        %v479 = vld [vmem:[%s3 + $0x14] sm:$0xf]
        %v480 = vld [vmem:[%s3 + $0x18] sm:$0xf]
        %v481 = vld [vmem:[%s3 + $0x1c] sm:$0xf]
        %v482 = vld [vmem:[%s3 + $0x20] sm:$0xf]
        %v483 = vld [vmem:[%s3 + $0x24] sm:$0xf]
        %v484 = vld [vmem:[%s3 + $0x28] sm:$0xf]
        %v485 = vld [vmem:[%s3 + $0x2c] sm:$0xf]
        %v486 = vld [vmem:[%s3 + $0x30] sm:$0xf]
        %v487 = vld [vmem:[%s3 + $0x34] sm:$0xf]
        %v488 = vld [vmem:[%s3 + $0x38] sm:$0xf]
        %v489 = vld [vmem:[%s3 + $0x3c] sm:$0xf]
        %v490 = vld [vmem:[%s4] sm:$0xff]
        %v491 = vld [vmem:[%s4 + $0x8] sm:$0xff]
        %v492 = vld [vmem:[%s4 + $0x10] sm:$0xff]
        %v493 = vld [vmem:[%s4 + $0x18] sm:$0xff]
        %v494 = vld [vmem:[%s4 + $0x20] sm:$0xff]
        %v495 = vld [vmem:[%s4 + $0x28] sm:$0xff]
        %v496 = vld [vmem:[%s4 + $0x30] sm:$0xff]
        %v497 = vld [vmem:[%s4 + $0x38] sm:$0xff]
        %v498 = vld [vmem:[%s4 + $0x40] sm:$0xff]
        %v499 = vld [vmem:[%s4 + $0x48] sm:$0xff]
        %v500 = vld [vmem:[%s4 + $0x50] sm:$0xff]
        %v501 = vld [vmem:[%s4 + $0x58] sm:$0xff]
        %v502 = vld [vmem:[%s4 + $0x60] sm:$0xff]
        %v503 = vld [vmem:[%s4 + $0x68] sm:$0xff]
        %v504 = vld [vmem:[%s4 + $0x70] sm:$0xff]
        %v505 = vld [vmem:[%s4 + $0x78] sm:$0xff]
        %v506 = vld [vmem:[%s5] sm:$0xf]
        %v507 = vld [vmem:[%s5 + $0x4] sm:$0xf]
        %v508 = vld [vmem:[%s5 + $0x8] sm:$0xf]
        %v509 = vld [vmem:[%s5 + $0xc] sm:$0xf]
        %v510 = vld [vmem:[%s5 + $0x10] sm:$0xf]
        %v511 = vld [vmem:[%s5 + $0x14] sm:$0xf]
        %v512 = vld [vmem:[%s5 + $0x18] sm:$0xf]
        %v513 = vld [vmem:[%s5 + $0x1c] sm:$0xf]
        %v514 = vld [vmem:[%s5 + $0x20] sm:$0xf]
        %v515 = vld [vmem:[%s5 + $0x24] sm:$0xf]
        %v516 = vld [vmem:[%s5 + $0x28] sm:$0xf]
        %v517 = vld [vmem:[%s5 + $0x2c] sm:$0xf]
        %v518 = vld [vmem:[%s5 + $0x30] sm:$0xf]
        %v519 = vld [vmem:[%s5 + $0x34] sm:$0xf]
        %v520 = vld [vmem:[%s5 + $0x38] sm:$0xf]
        %v521 = vld [vmem:[%s5 + $0x3c] sm:$0xf]
        %v522 = vld [vmem:[%s5 + $0x40] sm:$0xf]
        %v523 = vld [vmem:[%s5 + $0x44] sm:$0xf]
        %v524 = vld [vmem:[%s5 + $0x48] sm:$0xf]
        %v525 = vld [vmem:[%s5 + $0x4c] sm:$0xf]
        %v526 = vld [vmem:[%s5 + $0x50] sm:$0xf]
        %v527 = vld [vmem:[%s5 + $0x54] sm:$0xf]
        %v528 = vld [vmem:[%s5 + $0x58] sm:$0xf]
        %v529 = vld [vmem:[%s5 + $0x5c] sm:$0xf]
        %v530 = vld [vmem:[%s5 + $0x60] sm:$0xf]
        %v531 = vld [vmem:[%s5 + $0x64] sm:$0xf]
        %v532 = vld [vmem:[%s5 + $0x68] sm:$0xf]
        %v533 = vld [vmem:[%s5 + $0x6c] sm:$0xf]
        %v534 = vld [vmem:[%s5 + $0x70] sm:$0xf]
        %v535 = vld [vmem:[%s5 + $0x74] sm:$0xf]
        %v536 = vld [vmem:[%s5 + $0x78] sm:$0xf]
        %v537 = vld [vmem:[%s5 + $0x7c] sm:$0xf]
        %v538 = vld [vmem:[%s5 + $0x80] sm:$0xf]
        %v539 = vld [vmem:[%s5 + $0x84] sm:$0xf]
        %v540 = vld [vmem:[%s5 + $0x88] sm:$0xf]
        %v541 = vld [vmem:[%s5 + $0x8c] sm:$0xf]
        %v542 = vld [vmem:[%s5 + $0x90] sm:$0xf]
        %v543 = vld [vmem:[%s5 + $0x94] sm:$0xf]
        %v544 = vld [vmem:[%s5 + $0x98] sm:$0xf]
        %v545 = vld [vmem:[%s5 + $0x9c] sm:$0xf]
        %v546 = vld [vmem:[%s5 + $0xa0] sm:$0xf]
        %v547 = vld [vmem:[%s5 + $0xa4] sm:$0xf]
        %v548 = vld [vmem:[%s5 + $0xa8] sm:$0xf]
        %v549 = vld [vmem:[%s5 + $0xac] sm:$0xf]
        %v550 = vld [vmem:[%s5 + $0xb0] sm:$0xf]
        %v551 = vld [vmem:[%s5 + $0xb4] sm:$0xf]
        %v552 = vld [vmem:[%s5 + $0xb8] sm:$0xf]
        %v553 = vld [vmem:[%s5 + $0xbc] sm:$0xf]
        %v554 = vld [vmem:[%s5 + $0xc0] sm:$0xf]
        %v555 = vld [vmem:[%s5 + $0xc4] sm:$0xf]
        %v556 = vld [vmem:[%s5 + $0xc8] sm:$0xf]
        %v557 = vld [vmem:[%s5 + $0xcc] sm:$0xf]
        %v558 = vld [vmem:[%s5 + $0xd0] sm:$0xf]
        %v559 = vld [vmem:[%s5 + $0xd4] sm:$0xf]
        %v560 = vld [vmem:[%s5 + $0xd8] sm:$0xf]
        %v561 = vld [vmem:[%s5 + $0xdc] sm:$0xf]
        %v562 = vld [vmem:[%s5 + $0xe0] sm:$0xf]
        %v563 = vld [vmem:[%s5 + $0xe4] sm:$0xf]
        %v564 = vld [vmem:[%s5 + $0xe8] sm:$0xf]
        %v565 = vld [vmem:[%s5 + $0xec] sm:$0xf]
        %v566 = vld [vmem:[%s5 + $0xf0] sm:$0xf]
        %v567 = vld [vmem:[%s5 + $0xf4] sm:$0xf]
        %v568 = vld [vmem:[%s5 + $0xf8] sm:$0xf]
        %v569 = vld [vmem:[%s5 + $0xfc] sm:$0xf]
        %v570 = vld [vmem:[%s5 + $0x100] sm:$0xf]
        %v571 = vld [vmem:[%s5 + $0x104] sm:$0xf]
        %v572 = vld [vmem:[%s5 + $0x108] sm:$0xf]
        %v573 = vld [vmem:[%s5 + $0x10c] sm:$0xf]
        %v574 = vld [vmem:[%s5 + $0x110] sm:$0xf]
        %v575 = vld [vmem:[%s5 + $0x114] sm:$0xf]
        %v576 = vld [vmem:[%s5 + $0x118] sm:$0xf]
        %v577 = vld [vmem:[%s5 + $0x11c] sm:$0xf]
        %v578 = vld [vmem:[%s5 + $0x120] sm:$0xf]
        %v579 = vld [vmem:[%s5 + $0x124] sm:$0xf]
        %v580 = vld [vmem:[%s5 + $0x128] sm:$0xf]
        %v581 = vld [vmem:[%s5 + $0x12c] sm:$0xf]
        %v582 = vld [vmem:[%s5 + $0x130] sm:$0xf]
        %v583 = vld [vmem:[%s5 + $0x134] sm:$0xf]
        %v584 = vld [vmem:[%s5 + $0x138] sm:$0xf]
        %v585 = vld [vmem:[%s5 + $0x13c] sm:$0xf]
        %v586 = vld [vmem:[%s5 + $0x140] sm:$0xf]
        %v587 = vld [vmem:[%s5 + $0x144] sm:$0xf]
        %v588 = vld [vmem:[%s5 + $0x148] sm:$0xf]
        %v589 = vld [vmem:[%s5 + $0x14c] sm:$0xf]
        %v590 = vld [vmem:[%s5 + $0x150] sm:$0xf]
        %v591 = vld [vmem:[%s5 + $0x154] sm:$0xf]
        %v592 = vld [vmem:[%s5 + $0x158] sm:$0xf]
        %v593 = vld [vmem:[%s5 + $0x15c] sm:$0xf]
        %v594 = vld [vmem:[%s5 + $0x160] sm:$0xf]
        %v595 = vld [vmem:[%s5 + $0x164] sm:$0xf]
        %v596 = vld [vmem:[%s5 + $0x168] sm:$0xf]
        %v597 = vld [vmem:[%s5 + $0x16c] sm:$0xf]
        %v598 = vld [vmem:[%s5 + $0x170] sm:$0xf]
        %v599 = vld [vmem:[%s5 + $0x174] sm:$0xf]
        %v600 = vld [vmem:[%s5 + $0x178] sm:$0xf]
        %v601 = vld [vmem:[%s5 + $0x17c] sm:$0xf]
        %v602 = vld [vmem:[%s5 + $0x180] sm:$0xf]
        %v603 = vld [vmem:[%s5 + $0x184] sm:$0xf]
        %v604 = vld [vmem:[%s5 + $0x188] sm:$0xf]
        %v605 = vld [vmem:[%s5 + $0x18c] sm:$0xf]
        %v606 = vld [vmem:[%s5 + $0x190] sm:$0xf]
        %v607 = vld [vmem:[%s5 + $0x194] sm:$0xf]
        %v608 = vld [vmem:[%s5 + $0x198] sm:$0xf]
        %v609 = vld [vmem:[%s5 + $0x19c] sm:$0xf]
        %v610 = vld [vmem:[%s5 + $0x1a0] sm:$0xf]
        %v611 = vld [vmem:[%s5 + $0x1a4] sm:$0xf]
        %v612 = vld [vmem:[%s5 + $0x1a8] sm:$0xf]
        %v613 = vld [vmem:[%s5 + $0x1ac] sm:$0xf]
        %v614 = vld [vmem:[%s5 + $0x1b0] sm:$0xf]
        %v615 = vld [vmem:[%s5 + $0x1b4] sm:$0xf]
        %v616 = vld [vmem:[%s5 + $0x1b8] sm:$0xf]
        %v617 = vld [vmem:[%s5 + $0x1bc] sm:$0xf]
        %v618 = vld [vmem:[%s5 + $0x1c0] sm:$0xf]
        %v619 = vld [vmem:[%s5 + $0x1c4] sm:$0xf]
        %v620 = vld [vmem:[%s5 + $0x1c8] sm:$0xf]
        %v621 = vld [vmem:[%s5 + $0x1cc] sm:$0xf]
        %v622 = vld [vmem:[%s5 + $0x1d0] sm:$0xf]
        %v623 = vld [vmem:[%s5 + $0x1d4] sm:$0xf]
        %v624 = vld [vmem:[%s5 + $0x1d8] sm:$0xf]
        %v625 = vld [vmem:[%s5 + $0x1dc] sm:$0xf]
        %v626 = vld [vmem:[%s5 + $0x1e0] sm:$0xf]
        %v627 = vld [vmem:[%s5 + $0x1e4] sm:$0xf]
        %v628 = vld [vmem:[%s5 + $0x1e8] sm:$0xf]
        %v629 = vld [vmem:[%s5 + $0x1ec] sm:$0xf]
        %v630 = vld [vmem:[%s5 + $0x1f0] sm:$0xf]
        %v631 = vld [vmem:[%s5 + $0x1f4] sm:$0xf]
        %v632 = vld [vmem:[%s5 + $0x1f8] sm:$0xf]
        %v633 = vld [vmem:[%s5 + $0x1fc] sm:$0xf]
        %635 = vset.pattern.permute.xlu0 0
        %636 = vperm.xlu0 %635, %v321
        %v637 = vpop.permute.xlu0 %636
        %640 = vset.pattern.permute.xlu0 0
        %641 = vperm.xlu0 %640, %v322
        %v642 = vpop.permute.xlu0 %641
        %645 = vset.pattern.permute.xlu0 0
        %646 = vperm.xlu0 %645, %v323
        %v647 = vpop.permute.xlu0 %646
        %650 = vset.pattern.permute.xlu0 0
        %651 = vperm.xlu0 %650, %v324
        %v652 = vpop.permute.xlu0 %651
        %655 = vset.pattern.permute.xlu0 0
        %656 = vperm.xlu0 %655, %v325
        %v657 = vpop.permute.xlu0 %656
        %660 = vset.pattern.permute.xlu0 0
        %661 = vperm.xlu0 %660, %v326
        %v662 = vpop.permute.xlu0 %661
        %665 = vset.pattern.permute.xlu0 0
        %666 = vperm.xlu0 %665, %v327
        %v667 = vpop.permute.xlu0 %666
        %670 = vset.pattern.permute.xlu0 0
        %671 = vperm.xlu0 %670, %v328
        %v672 = vpop.permute.xlu0 %671
        %v674 = vperm.slane %v320, 0
        %v675 = vmul.f32 %v637, %v674
        %v676 = vmul.f32 %v642, %v674
        %v677 = vmul.f32 %v647, %v674
        %v678 = vmul.f32 %v652, %v674
        %v679 = vmul.f32 %v657, %v674
        %v680 = vmul.f32 %v662, %v674
        %v681 = vmul.f32 %v667, %v674
        %v682 = vmul.f32 %v672, %v674
        %683 = vset.pattern.permute.xlu0 1
        %684 = vperm.xlu0 %683, %v321
        %v685 = vpop.permute.xlu0 %684
        %687 = vset.pattern.permute.xlu0 1
        %688 = vperm.xlu0 %687, %v322
        %v689 = vpop.permute.xlu0 %688
        %691 = vset.pattern.permute.xlu0 1
        %692 = vperm.xlu0 %691, %v323
        %v693 = vpop.permute.xlu0 %692
        %695 = vset.pattern.permute.xlu0 1
        %696 = vperm.xlu0 %695, %v324
        %v697 = vpop.permute.xlu0 %696
        %699 = vset.pattern.permute.xlu0 1
        %700 = vperm.xlu0 %699, %v325
        %v701 = vpop.permute.xlu0 %700
        %703 = vset.pattern.permute.xlu0 1
        %704 = vperm.xlu0 %703, %v326
        %v705 = vpop.permute.xlu0 %704
        %707 = vset.pattern.permute.xlu0 1
        %708 = vperm.xlu0 %707, %v327
        %v709 = vpop.permute.xlu0 %708
        %711 = vset.pattern.permute.xlu0 1
        %712 = vperm.xlu0 %711, %v328
        %v713 = vpop.permute.xlu0 %712
        %v715 = vperm.slane %v320, 1
        %v716 = vmul.f32 %v685, %v715
        %v717 = vmul.f32 %v689, %v715
        %v718 = vmul.f32 %v693, %v715
        %v719 = vmul.f32 %v697, %v715
        %v720 = vmul.f32 %v701, %v715
        %v721 = vmul.f32 %v705, %v715
        %v722 = vmul.f32 %v709, %v715
        %v723 = vmul.f32 %v713, %v715
        %v724 = vadd.f32 %v675, %v716
        %v725 = vadd.f32 %v676, %v717
        %v726 = vadd.f32 %v677, %v718
        %v727 = vadd.f32 %v678, %v719
        %v728 = vadd.f32 %v679, %v720
        %v729 = vadd.f32 %v680, %v721
        %v730 = vadd.f32 %v681, %v722
        %v731 = vadd.f32 %v682, %v723
        %732 = vset.pattern.permute.xlu0 2
        %733 = vperm.xlu0 %732, %v321
        %v734 = vpop.permute.xlu0 %733
        %736 = vset.pattern.permute.xlu0 2
        %737 = vperm.xlu0 %736, %v322
        %v738 = vpop.permute.xlu0 %737
        %740 = vset.pattern.permute.xlu0 2
        %741 = vperm.xlu0 %740, %v323
        %v742 = vpop.permute.xlu0 %741
        %744 = vset.pattern.permute.xlu0 2
        %745 = vperm.xlu0 %744, %v324
        %v746 = vpop.permute.xlu0 %745
        %748 = vset.pattern.permute.xlu0 2
        %749 = vperm.xlu0 %748, %v325
        %v750 = vpop.permute.xlu0 %749
        %752 = vset.pattern.permute.xlu0 2
        %753 = vperm.xlu0 %752, %v326
        %v754 = vpop.permute.xlu0 %753
        %756 = vset.pattern.permute.xlu0 2
        %757 = vperm.xlu0 %756, %v327
        %v758 = vpop.permute.xlu0 %757
        %760 = vset.pattern.permute.xlu0 2
        %761 = vperm.xlu0 %760, %v328
        %v762 = vpop.permute.xlu0 %761
        %v764 = vperm.slane %v320, 2
        %v765 = vmul.f32 %v734, %v764
        %v766 = vmul.f32 %v738, %v764
        %v767 = vmul.f32 %v742, %v764
        %v768 = vmul.f32 %v746, %v764
        %v769 = vmul.f32 %v750, %v764
        %v770 = vmul.f32 %v754, %v764
        %v771 = vmul.f32 %v758, %v764
        %v772 = vmul.f32 %v762, %v764
        %v773 = vadd.f32 %v724, %v765
        %v774 = vadd.f32 %v725, %v766
        %v775 = vadd.f32 %v726, %v767
        %v776 = vadd.f32 %v727, %v768
        %v777 = vadd.f32 %v728, %v769
        %v778 = vadd.f32 %v729, %v770
        %v779 = vadd.f32 %v730, %v771
        %v780 = vadd.f32 %v731, %v772
        %782 = vset.pattern.permute.xlu0 0
        %783 = vperm.xlu0 %782, %v329
        %v784 = vpop.permute.xlu0 %783
        %787 = vset.pattern.permute.xlu0 0
        %788 = vperm.xlu0 %787, %v330
        %v789 = vpop.permute.xlu0 %788
        %792 = vset.pattern.permute.xlu0 0
        %793 = vperm.xlu0 %792, %v331
        %v794 = vpop.permute.xlu0 %793
        %797 = vset.pattern.permute.xlu0 0
        %798 = vperm.xlu0 %797, %v332
        %v799 = vpop.permute.xlu0 %798
        %802 = vset.pattern.permute.xlu0 0
        %803 = vperm.xlu0 %802, %v333
        %v804 = vpop.permute.xlu0 %803
        %807 = vset.pattern.permute.xlu0 0
        %808 = vperm.xlu0 %807, %v334
        %v809 = vpop.permute.xlu0 %808
        %812 = vset.pattern.permute.xlu0 0
        %813 = vperm.xlu0 %812, %v335
        %v814 = vpop.permute.xlu0 %813
        %817 = vset.pattern.permute.xlu0 0
        %818 = vperm.xlu0 %817, %v336
        %v819 = vpop.permute.xlu0 %818
        %v821 = vadd.f32 %v773, %v784
        %v822 = vadd.f32 %v774, %v789
        %v823 = vadd.f32 %v775, %v794
        %v824 = vadd.f32 %v776, %v799
        %v825 = vadd.f32 %v777, %v804
        %v826 = vadd.f32 %v778, %v809
        %v827 = vadd.f32 %v779, %v814
        %v828 = vadd.f32 %v780, %v819
        %v829 = vmax.f32 %v821, 0.0
        %v830 = vmax.f32 %v822, 0.0
        %v831 = vmax.f32 %v823, 0.0
        %v832 = vmax.f32 %v824, 0.0
        %v833 = vmax.f32 %v825, 0.0
        %v834 = vmax.f32 %v826, 0.0
        %v835 = vmax.f32 %v827, 0.0
        %v836 = vmax.f32 %v828, 0.0
        %v837 = vpack.c.bf16 %v830, %v829
        %v838 = vpack.c.bf16 %v832, %v831
        %v839 = vpack.c.bf16 %v834, %v833
        %v840 = vpack.c.bf16 %v836, %v835
        %842 = vset.pattern.permute.xlu0 0
        %843 = vperm.xlu0 %842, %v490
        %v844 = vpop.permute.xlu0 %843
        %847 = vset.pattern.permute.xlu0 0
        %848 = vperm.xlu0 %847, %v491
        %v849 = vpop.permute.xlu0 %848
        %852 = vset.pattern.permute.xlu0 0
        %853 = vperm.xlu0 %852, %v492
        %v854 = vpop.permute.xlu0 %853
        %857 = vset.pattern.permute.xlu0 0
        %858 = vperm.xlu0 %857, %v493
        %v859 = vpop.permute.xlu0 %858
        %862 = vset.pattern.permute.xlu0 0
        %863 = vperm.xlu0 %862, %v494
        %v864 = vpop.permute.xlu0 %863
        %867 = vset.pattern.permute.xlu0 0
        %868 = vperm.xlu0 %867, %v495
        %v869 = vpop.permute.xlu0 %868
        %872 = vset.pattern.permute.xlu0 0
        %873 = vperm.xlu0 %872, %v496
        %v874 = vpop.permute.xlu0 %873
        %877 = vset.pattern.permute.xlu0 0
        %878 = vperm.xlu0 %877, %v497
        %v879 = vpop.permute.xlu0 %878
        %882 = vset.pattern.permute.xlu0 0
        %883 = vperm.xlu0 %882, %v498
        %v884 = vpop.permute.xlu0 %883
        %887 = vset.pattern.permute.xlu0 0
        %888 = vperm.xlu0 %887, %v499
        %v889 = vpop.permute.xlu0 %888
        %892 = vset.pattern.permute.xlu0 0
        %893 = vperm.xlu0 %892, %v500
        %v894 = vpop.permute.xlu0 %893
        %897 = vset.pattern.permute.xlu0 0
        %898 = vperm.xlu0 %897, %v501
        %v899 = vpop.permute.xlu0 %898
        %902 = vset.pattern.permute.xlu0 0
        %903 = vperm.xlu0 %902, %v502
        %v904 = vpop.permute.xlu0 %903
        %907 = vset.pattern.permute.xlu0 0
        %908 = vperm.xlu0 %907, %v503
        %v909 = vpop.permute.xlu0 %908
        %912 = vset.pattern.permute.xlu0 0
        %913 = vperm.xlu0 %912, %v504
        %v914 = vpop.permute.xlu0 %913
        %917 = vset.pattern.permute.xlu0 0
        %918 = vperm.xlu0 %917, %v505
        %v919 = vpop.permute.xlu0 %918
        %v937 = vunpack.c.l.b16 %v474
        %v938 = vunpack.c.l.b16 %v475
        %v939 = vunpack.c.l.b16 %v476
        %v940 = vunpack.c.l.b16 %v477
        %v941 = vunpack.c.l.b16 %v478
        %v942 = vunpack.c.l.b16 %v479
        %v943 = vunpack.c.l.b16 %v480
        %v944 = vunpack.c.l.b16 %v481
        %v945 = vunpack.c.l.b16 %v482
        %v946 = vunpack.c.l.b16 %v483
        %v947 = vunpack.c.l.b16 %v484
        %v948 = vunpack.c.l.b16 %v485
        %v949 = vunpack.c.l.b16 %v486
        %v950 = vunpack.c.l.b16 %v487
        %v951 = vunpack.c.l.b16 %v488
        %v952 = vunpack.c.l.b16 %v489
        %v953 = vpack.c.b16 %v938, %v937
        %v954 = vpack.c.b16 %v940, %v939
        %v955 = vpack.c.b16 %v942, %v941
        %v956 = vpack.c.b16 %v944, %v943
        %v957 = vpack.c.b16 %v946, %v945
        %v958 = vpack.c.b16 %v948, %v947
        %v959 = vpack.c.b16 %v950, %v949
        %v960 = vpack.c.b16 %v952, %v951
        %vm961 = vcmask 523264
        %v963 = vsel %vm961, %v953, 0
        %v966 = vsel %vm961, %v954, 0
        %v969 = vsel %vm961, %v955, 0
        %v972 = vsel %vm961, %v956, 0
        %v975 = vsel %vm961, %v957, 0
        %v978 = vsel %vm961, %v958, 0
        %v981 = vsel %vm961, %v959, 0
        %v984 = vsel %vm961, %v960, 0
        %986 = vmatpush.bf16.msra.mxu0 0
        %987 = vmatpush.bf16.msra.mxu0 0
        %988 = vmatpush.bf16.msra.mxu0 0
        %989 = vmatpush.bf16.msra.mxu0 0
        %990 = vmatpush.bf16.msra.mxu0 %v840
        %991 = vmatpush.bf16.msra.mxu0 %v839
        %992 = vmatpush.bf16.msra.mxu0 %v838
        %993 = vmatpush.bf16.msra.mxu0 %v837
        %994 = vmatmul.bf16.gmra.mxu0 %v963
        %v995 = vpop.f32.mrf.mxu0
        %v996 = vadd.f32 %v844, %v995
        %v997 = vpop.f32.mrf.mxu0
        %v998 = vadd.f32 %v849, %v997
        %999 = vmatmul.bf16.gmra.mxu0 %v966
        %v1000 = vpop.f32.mrf.mxu0
        %v1001 = vadd.f32 %v854, %v1000
        %v1002 = vpop.f32.mrf.mxu0
        %v1003 = vadd.f32 %v859, %v1002
        %1004 = vmatmul.bf16.gmra.mxu0 %v969
        %v1005 = vpop.f32.mrf.mxu0
        %v1006 = vadd.f32 %v864, %v1005
        %v1007 = vpop.f32.mrf.mxu0
        %v1008 = vadd.f32 %v869, %v1007
        %1009 = vmatmul.bf16.gmra.mxu0 %v972
        %v1010 = vpop.f32.mrf.mxu0
        %v1011 = vadd.f32 %v874, %v1010
        %v1012 = vpop.f32.mrf.mxu0
        %v1013 = vadd.f32 %v879, %v1012
        %1014 = vmatmul.bf16.gmra.mxu0 %v975
        %v1015 = vpop.f32.mrf.mxu0
        %v1016 = vadd.f32 %v884, %v1015
        %v1017 = vpop.f32.mrf.mxu0
        %v1018 = vadd.f32 %v889, %v1017
        %1019 = vmatmul.bf16.gmra.mxu0 %v978
        %v1020 = vpop.f32.mrf.mxu0
        %v1021 = vadd.f32 %v894, %v1020
        %v1022 = vpop.f32.mrf.mxu0
        %v1023 = vadd.f32 %v899, %v1022
        %1024 = vmatmul.bf16.gmra.mxu0 %v981
        %v1025 = vpop.f32.mrf.mxu0
        %v1026 = vadd.f32 %v904, %v1025
        %v1027 = vpop.f32.mrf.mxu0
        %v1028 = vadd.f32 %v909, %v1027
        %1029 = vmatmul.bf16.gmra.mxu0 %v984
        %v1030 = vpop.f32.mrf.mxu0
        %v1031 = vadd.f32 %v914, %v1030
        %v1032 = vpop.f32.mrf.mxu0
        %v1033 = vadd.f32 %v919, %v1032
        %1034 = vdwg.mxu0
        %v1035 = vmax.f32 %v996, 0.0
        %v1036 = vmax.f32 %v998, 0.0
        %v1037 = vmax.f32 %v1001, 0.0
        %v1038 = vmax.f32 %v1003, 0.0
        %v1039 = vmax.f32 %v1006, 0.0
        %v1040 = vmax.f32 %v1008, 0.0
        %v1041 = vmax.f32 %v1011, 0.0
        %v1042 = vmax.f32 %v1013, 0.0
        %v1043 = vmax.f32 %v1016, 0.0
        %v1044 = vmax.f32 %v1018, 0.0
        %v1045 = vmax.f32 %v1021, 0.0
        %v1046 = vmax.f32 %v1023, 0.0
        %v1047 = vmax.f32 %v1026, 0.0
        %v1048 = vmax.f32 %v1028, 0.0
        %v1049 = vmax.f32 %v1031, 0.0
        %v1050 = vmax.f32 %v1033, 0.0
        %v1051 = vpack.c.bf16 %v1036, %v1035
        %v1052 = vpack.c.bf16 %v1038, %v1037
        %v1053 = vpack.c.bf16 %v1040, %v1039
        %v1054 = vpack.c.bf16 %v1042, %v1041
        %v1055 = vpack.c.bf16 %v1044, %v1043
        %v1056 = vpack.c.bf16 %v1046, %v1045
        %v1057 = vpack.c.bf16 %v1048, %v1047
        %v1058 = vpack.c.bf16 %v1050, %v1049
        %v1187 = vunpack.c.l.b16 %v506
        %v1188 = vunpack.c.l.b16 %v507
        %v1189 = vunpack.c.l.b16 %v508
        %v1190 = vunpack.c.l.b16 %v509
        %v1191 = vunpack.c.l.b16 %v510
        %v1192 = vunpack.c.l.b16 %v511
        %v1193 = vunpack.c.l.b16 %v512
        %v1194 = vunpack.c.l.b16 %v513
        %v1195 = vunpack.c.l.b16 %v514
        %v1196 = vunpack.c.l.b16 %v515
        %v1197 = vunpack.c.l.b16 %v516
        %v1198 = vunpack.c.l.b16 %v517
        %v1199 = vunpack.c.l.b16 %v518
        %v1200 = vunpack.c.l.b16 %v519
        %v1201 = vunpack.c.l.b16 %v520
        %v1202 = vunpack.c.l.b16 %v521
        %v1203 = vunpack.c.l.b16 %v522
        %v1204 = vunpack.c.l.b16 %v523
        %v1205 = vunpack.c.l.b16 %v524
        %v1206 = vunpack.c.l.b16 %v525
        %v1207 = vunpack.c.l.b16 %v526
        %v1208 = vunpack.c.l.b16 %v527
        %v1209 = vunpack.c.l.b16 %v528
        %v1210 = vunpack.c.l.b16 %v529
        %v1211 = vunpack.c.l.b16 %v530
        %v1212 = vunpack.c.l.b16 %v531
        %v1213 = vunpack.c.l.b16 %v532
        %v1214 = vunpack.c.l.b16 %v533
        %v1215 = vunpack.c.l.b16 %v534
        %v1216 = vunpack.c.l.b16 %v535
        %v1217 = vunpack.c.l.b16 %v536
        %v1218 = vunpack.c.l.b16 %v537
        %v1219 = vunpack.c.l.b16 %v538
        %v1220 = vunpack.c.l.b16 %v539
        %v1221 = vunpack.c.l.b16 %v540
        %v1222 = vunpack.c.l.b16 %v541
        %v1223 = vunpack.c.l.b16 %v542
        %v1224 = vunpack.c.l.b16 %v543
        %v1225 = vunpack.c.l.b16 %v544
        %v1226 = vunpack.c.l.b16 %v545
        %v1227 = vunpack.c.l.b16 %v546
        %v1228 = vunpack.c.l.b16 %v547
        %v1229 = vunpack.c.l.b16 %v548
        %v1230 = vunpack.c.l.b16 %v549
        %v1231 = vunpack.c.l.b16 %v550
        %v1232 = vunpack.c.l.b16 %v551
        %v1233 = vunpack.c.l.b16 %v552
        %v1234 = vunpack.c.l.b16 %v553
        %v1235 = vunpack.c.l.b16 %v554
        %v1236 = vunpack.c.l.b16 %v555
        %v1237 = vunpack.c.l.b16 %v556
        %v1238 = vunpack.c.l.b16 %v557
        %v1239 = vunpack.c.l.b16 %v558
        %v1240 = vunpack.c.l.b16 %v559
        %v1241 = vunpack.c.l.b16 %v560
        %v1242 = vunpack.c.l.b16 %v561
        %v1243 = vunpack.c.l.b16 %v562
        %v1244 = vunpack.c.l.b16 %v563
        %v1245 = vunpack.c.l.b16 %v564
        %v1246 = vunpack.c.l.b16 %v565
        %v1247 = vunpack.c.l.b16 %v566
        %v1248 = vunpack.c.l.b16 %v567
        %v1249 = vunpack.c.l.b16 %v568
        %v1250 = vunpack.c.l.b16 %v569
        %v1251 = vunpack.c.l.b16 %v570
        %v1252 = vunpack.c.l.b16 %v571
        %v1253 = vunpack.c.l.b16 %v572
        %v1254 = vunpack.c.l.b16 %v573
        %v1255 = vunpack.c.l.b16 %v574
        %v1256 = vunpack.c.l.b16 %v575
        %v1257 = vunpack.c.l.b16 %v576
        %v1258 = vunpack.c.l.b16 %v577
        %v1259 = vunpack.c.l.b16 %v578
        %v1260 = vunpack.c.l.b16 %v579
        %v1261 = vunpack.c.l.b16 %v580
        %v1262 = vunpack.c.l.b16 %v581
        %v1263 = vunpack.c.l.b16 %v582
        %v1264 = vunpack.c.l.b16 %v583
        %v1265 = vunpack.c.l.b16 %v584
        %v1266 = vunpack.c.l.b16 %v585
        %v1267 = vunpack.c.l.b16 %v586
        %v1268 = vunpack.c.l.b16 %v587
        %v1269 = vunpack.c.l.b16 %v588
        %v1270 = vunpack.c.l.b16 %v589
        %v1271 = vunpack.c.l.b16 %v590
        %v1272 = vunpack.c.l.b16 %v591
        %v1273 = vunpack.c.l.b16 %v592
        %v1274 = vunpack.c.l.b16 %v593
        %v1275 = vunpack.c.l.b16 %v594
        %v1276 = vunpack.c.l.b16 %v595
        %v1277 = vunpack.c.l.b16 %v596
        %v1278 = vunpack.c.l.b16 %v597
        %v1279 = vunpack.c.l.b16 %v598
        %v1280 = vunpack.c.l.b16 %v599
        %v1281 = vunpack.c.l.b16 %v600
        %v1282 = vunpack.c.l.b16 %v601
        %v1283 = vunpack.c.l.b16 %v602
        %v1284 = vunpack.c.l.b16 %v603
        %v1285 = vunpack.c.l.b16 %v604
        %v1286 = vunpack.c.l.b16 %v605
        %v1287 = vunpack.c.l.b16 %v606
        %v1288 = vunpack.c.l.b16 %v607
        %v1289 = vunpack.c.l.b16 %v608
        %v1290 = vunpack.c.l.b16 %v609
        %v1291 = vunpack.c.l.b16 %v610
        %v1292 = vunpack.c.l.b16 %v611
        %v1293 = vunpack.c.l.b16 %v612
        %v1294 = vunpack.c.l.b16 %v613
        %v1295 = vunpack.c.l.b16 %v614
        %v1296 = vunpack.c.l.b16 %v615
        %v1297 = vunpack.c.l.b16 %v616
        %v1298 = vunpack.c.l.b16 %v617
        %v1299 = vunpack.c.l.b16 %v618
        %v1300 = vunpack.c.l.b16 %v619
        %v1301 = vunpack.c.l.b16 %v620
        %v1302 = vunpack.c.l.b16 %v621
        %v1303 = vunpack.c.l.b16 %v622
        %v1304 = vunpack.c.l.b16 %v623
        %v1305 = vunpack.c.l.b16 %v624
        %v1306 = vunpack.c.l.b16 %v625
        %v1307 = vunpack.c.l.b16 %v626
        %v1308 = vunpack.c.l.b16 %v627
        %v1309 = vunpack.c.l.b16 %v628
        %v1310 = vunpack.c.l.b16 %v629
        %v1311 = vunpack.c.l.b16 %v630
        %v1312 = vunpack.c.l.b16 %v631
        %v1313 = vunpack.c.l.b16 %v632
        %v1314 = vunpack.c.l.b16 %v633
        %v1315 = vpack.c.b16 %v1188, %v1187
        %v1316 = vpack.c.b16 %v1190, %v1189
        %v1317 = vpack.c.b16 %v1192, %v1191
        %v1318 = vpack.c.b16 %v1194, %v1193
        %v1319 = vpack.c.b16 %v1196, %v1195
        %v1320 = vpack.c.b16 %v1198, %v1197
        %v1321 = vpack.c.b16 %v1200, %v1199
        %v1322 = vpack.c.b16 %v1202, %v1201
        %v1323 = vpack.c.b16 %v1204, %v1203
        %v1324 = vpack.c.b16 %v1206, %v1205
        %v1325 = vpack.c.b16 %v1208, %v1207
        %v1326 = vpack.c.b16 %v1210, %v1209
        %v1327 = vpack.c.b16 %v1212, %v1211
        %v1328 = vpack.c.b16 %v1214, %v1213
        %v1329 = vpack.c.b16 %v1216, %v1215
        %v1330 = vpack.c.b16 %v1218, %v1217
        %v1331 = vpack.c.b16 %v1220, %v1219
        %v1332 = vpack.c.b16 %v1222, %v1221
        %v1333 = vpack.c.b16 %v1224, %v1223
        %v1334 = vpack.c.b16 %v1226, %v1225
        %v1335 = vpack.c.b16 %v1228, %v1227
        %v1336 = vpack.c.b16 %v1230, %v1229
        %v1337 = vpack.c.b16 %v1232, %v1231
        %v1338 = vpack.c.b16 %v1234, %v1233
        %v1339 = vpack.c.b16 %v1236, %v1235
        %v1340 = vpack.c.b16 %v1238, %v1237
        %v1341 = vpack.c.b16 %v1240, %v1239
        %v1342 = vpack.c.b16 %v1242, %v1241
        %v1343 = vpack.c.b16 %v1244, %v1243
        %v1344 = vpack.c.b16 %v1246, %v1245
        %v1345 = vpack.c.b16 %v1248, %v1247
        %v1346 = vpack.c.b16 %v1250, %v1249
        %v1347 = vpack.c.b16 %v1252, %v1251
        %v1348 = vpack.c.b16 %v1254, %v1253
        %v1349 = vpack.c.b16 %v1256, %v1255
        %v1350 = vpack.c.b16 %v1258, %v1257
        %v1351 = vpack.c.b16 %v1260, %v1259
        %v1352 = vpack.c.b16 %v1262, %v1261
        %v1353 = vpack.c.b16 %v1264, %v1263
        %v1354 = vpack.c.b16 %v1266, %v1265
        %v1355 = vpack.c.b16 %v1268, %v1267
        %v1356 = vpack.c.b16 %v1270, %v1269
        %v1357 = vpack.c.b16 %v1272, %v1271
        %v1358 = vpack.c.b16 %v1274, %v1273
        %v1359 = vpack.c.b16 %v1276, %v1275
        %v1360 = vpack.c.b16 %v1278, %v1277
        %v1361 = vpack.c.b16 %v1280, %v1279
        %v1362 = vpack.c.b16 %v1282, %v1281
        %v1363 = vpack.c.b16 %v1284, %v1283
        %v1364 = vpack.c.b16 %v1286, %v1285
        %v1365 = vpack.c.b16 %v1288, %v1287
        %v1366 = vpack.c.b16 %v1290, %v1289
        %v1367 = vpack.c.b16 %v1292, %v1291
        %v1368 = vpack.c.b16 %v1294, %v1293
        %v1369 = vpack.c.b16 %v1296, %v1295
        %v1370 = vpack.c.b16 %v1298, %v1297
        %v1371 = vpack.c.b16 %v1300, %v1299
        %v1372 = vpack.c.b16 %v1302, %v1301
        %v1373 = vpack.c.b16 %v1304, %v1303
        %v1374 = vpack.c.b16 %v1306, %v1305
        %v1375 = vpack.c.b16 %v1308, %v1307
        %v1376 = vpack.c.b16 %v1310, %v1309
        %v1377 = vpack.c.b16 %v1312, %v1311
        %v1378 = vpack.c.b16 %v1314, %v1313
        %1443 = vmatpush.bf16.msra.mxu0 %v1058
        %1444 = vmatpush.bf16.msra.mxu0 %v1057
        %1445 = vmatpush.bf16.msra.mxu0 %v1056
        %1446 = vmatpush.bf16.msra.mxu0 %v1055
        %1447 = vmatpush.bf16.msra.mxu0 %v1054
        %1448 = vmatpush.bf16.msra.mxu0 %v1053
        %1449 = vmatpush.bf16.msra.mxu0 %v1052
        %1450 = vmatpush.bf16.msra.mxu0 %v1051
        %1451 = vmatmul.bf16.gmra.mxu0 %v1315
        %v1452 = vpop.f32.mrf.mxu0
        %v1453 = vadd.f32 0.0, %v1452
        %v1454 = vpop.f32.mrf.mxu0
        %v1455 = vadd.f32 0.0, %v1454
        %1456 = vmatmul.bf16.gmra.mxu0 %v1316
        %v1457 = vpop.f32.mrf.mxu0
        %v1458 = vadd.f32 0.0, %v1457
        %v1459 = vpop.f32.mrf.mxu0
        %v1460 = vadd.f32 0.0, %v1459
        %1461 = vmatmul.bf16.gmra.mxu0 %v1317
        %v1462 = vpop.f32.mrf.mxu0
        %v1463 = vadd.f32 0.0, %v1462
        %v1464 = vpop.f32.mrf.mxu0
        %v1465 = vadd.f32 0.0, %v1464
        %1466 = vmatmul.bf16.gmra.mxu0 %v1318
        %v1467 = vpop.f32.mrf.mxu0
        %v1468 = vadd.f32 0.0, %v1467
        %v1469 = vpop.f32.mrf.mxu0
        %v1470 = vadd.f32 0.0, %v1469
        %1471 = vmatmul.bf16.gmra.mxu0 %v1319
        %v1472 = vpop.f32.mrf.mxu0
        %v1473 = vadd.f32 0.0, %v1472
        %v1474 = vpop.f32.mrf.mxu0
        %v1475 = vadd.f32 0.0, %v1474
        %1476 = vmatmul.bf16.gmra.mxu0 %v1320
        %v1477 = vpop.f32.mrf.mxu0
        %v1478 = vadd.f32 0.0, %v1477
        %v1479 = vpop.f32.mrf.mxu0
        %v1480 = vadd.f32 0.0, %v1479
        %1481 = vmatmul.bf16.gmra.mxu0 %v1321
        %v1482 = vpop.f32.mrf.mxu0
        %v1483 = vadd.f32 0.0, %v1482
        %v1484 = vpop.f32.mrf.mxu0
        %v1485 = vadd.f32 0.0, %v1484
        %1486 = vmatmul.bf16.gmra.mxu0 %v1322
        %v1487 = vpop.f32.mrf.mxu0
        %v1488 = vadd.f32 0.0, %v1487
        %v1489 = vpop.f32.mrf.mxu0
        %v1490 = vadd.f32 0.0, %v1489
        %1491 = vmatmul.bf16.gmra.mxu0 %v1323
        %v1492 = vpop.f32.mrf.mxu0
        %v1493 = vadd.f32 0.0, %v1492
        %v1494 = vpop.f32.mrf.mxu0
        %v1495 = vadd.f32 0.0, %v1494
        %1496 = vmatmul.bf16.gmra.mxu0 %v1324
        %v1497 = vpop.f32.mrf.mxu0
        %v1498 = vadd.f32 0.0, %v1497
        %v1499 = vpop.f32.mrf.mxu0
        %v1500 = vadd.f32 0.0, %v1499
        %1501 = vmatmul.bf16.gmra.mxu0 %v1325
        %v1502 = vpop.f32.mrf.mxu0
        %v1503 = vadd.f32 0.0, %v1502
        %v1504 = vpop.f32.mrf.mxu0
        %v1505 = vadd.f32 0.0, %v1504
        %1506 = vmatmul.bf16.gmra.mxu0 %v1326
        %v1507 = vpop.f32.mrf.mxu0
        %v1508 = vadd.f32 0.0, %v1507
        %v1509 = vpop.f32.mrf.mxu0
        %v1510 = vadd.f32 0.0, %v1509
        %1511 = vmatmul.bf16.gmra.mxu0 %v1327
        %v1512 = vpop.f32.mrf.mxu0
        %v1513 = vadd.f32 0.0, %v1512
        %v1514 = vpop.f32.mrf.mxu0
        %v1515 = vadd.f32 0.0, %v1514
        %1516 = vmatmul.bf16.gmra.mxu0 %v1328
        %v1517 = vpop.f32.mrf.mxu0
        %v1518 = vadd.f32 0.0, %v1517
        %v1519 = vpop.f32.mrf.mxu0
        %v1520 = vadd.f32 0.0, %v1519
        %1521 = vmatmul.bf16.gmra.mxu0 %v1329
        %v1522 = vpop.f32.mrf.mxu0
        %v1523 = vadd.f32 0.0, %v1522
        %v1524 = vpop.f32.mrf.mxu0
        %v1525 = vadd.f32 0.0, %v1524
        %1526 = vmatmul.bf16.gmra.mxu0 %v1330
        %v1527 = vpop.f32.mrf.mxu0
        %v1528 = vadd.f32 0.0, %v1527
        %v1529 = vpop.f32.mrf.mxu0
        %v1530 = vadd.f32 0.0, %v1529
        %1531 = vmatmul.bf16.gmra.mxu0 %v1331
        %v1532 = vpop.f32.mrf.mxu0
        %v1533 = vadd.f32 0.0, %v1532
        %v1534 = vpop.f32.mrf.mxu0
        %v1535 = vadd.f32 0.0, %v1534
        %1536 = vmatmul.bf16.gmra.mxu0 %v1332
        %v1537 = vpop.f32.mrf.mxu0
        %v1538 = vadd.f32 0.0, %v1537
        %v1539 = vpop.f32.mrf.mxu0
        %v1540 = vadd.f32 0.0, %v1539
        %1541 = vmatmul.bf16.gmra.mxu0 %v1333
        %v1542 = vpop.f32.mrf.mxu0
        %v1543 = vadd.f32 0.0, %v1542
        %v1544 = vpop.f32.mrf.mxu0
        %v1545 = vadd.f32 0.0, %v1544
        %1546 = vmatmul.bf16.gmra.mxu0 %v1334
        %v1547 = vpop.f32.mrf.mxu0
        %v1548 = vadd.f32 0.0, %v1547
        %v1549 = vpop.f32.mrf.mxu0
        %v1550 = vadd.f32 0.0, %v1549
        %1551 = vmatmul.bf16.gmra.mxu0 %v1335
        %v1552 = vpop.f32.mrf.mxu0
        %v1553 = vadd.f32 0.0, %v1552
        %v1554 = vpop.f32.mrf.mxu0
        %v1555 = vadd.f32 0.0, %v1554
        %1556 = vmatmul.bf16.gmra.mxu0 %v1336
        %v1557 = vpop.f32.mrf.mxu0
        %v1558 = vadd.f32 0.0, %v1557
        %v1559 = vpop.f32.mrf.mxu0
        %v1560 = vadd.f32 0.0, %v1559
        %1561 = vmatmul.bf16.gmra.mxu0 %v1337
        %v1562 = vpop.f32.mrf.mxu0
        %v1563 = vadd.f32 0.0, %v1562
        %v1564 = vpop.f32.mrf.mxu0
        %v1565 = vadd.f32 0.0, %v1564
        %1566 = vmatmul.bf16.gmra.mxu0 %v1338
        %v1567 = vpop.f32.mrf.mxu0
        %v1568 = vadd.f32 0.0, %v1567
        %v1569 = vpop.f32.mrf.mxu0
        %v1570 = vadd.f32 0.0, %v1569
        %1571 = vmatmul.bf16.gmra.mxu0 %v1339
        %v1572 = vpop.f32.mrf.mxu0
        %v1573 = vadd.f32 0.0, %v1572
        %v1574 = vpop.f32.mrf.mxu0
        %v1575 = vadd.f32 0.0, %v1574
        %1576 = vmatmul.bf16.gmra.mxu0 %v1340
        %v1577 = vpop.f32.mrf.mxu0
        %v1578 = vadd.f32 0.0, %v1577
        %v1579 = vpop.f32.mrf.mxu0
        %v1580 = vadd.f32 0.0, %v1579
        %1581 = vmatmul.bf16.gmra.mxu0 %v1341
        %v1582 = vpop.f32.mrf.mxu0
        %v1583 = vadd.f32 0.0, %v1582
        %v1584 = vpop.f32.mrf.mxu0
        %v1585 = vadd.f32 0.0, %v1584
        %1586 = vmatmul.bf16.gmra.mxu0 %v1342
        %v1587 = vpop.f32.mrf.mxu0
        %v1588 = vadd.f32 0.0, %v1587
        %v1589 = vpop.f32.mrf.mxu0
        %v1590 = vadd.f32 0.0, %v1589
        %1591 = vmatmul.bf16.gmra.mxu0 %v1343
        %v1592 = vpop.f32.mrf.mxu0
        %v1593 = vadd.f32 0.0, %v1592
        %v1594 = vpop.f32.mrf.mxu0
        %v1595 = vadd.f32 0.0, %v1594
        %1596 = vmatmul.bf16.gmra.mxu0 %v1344
        %v1597 = vpop.f32.mrf.mxu0
        %v1598 = vadd.f32 0.0, %v1597
        %v1599 = vpop.f32.mrf.mxu0
        %v1600 = vadd.f32 0.0, %v1599
        %1601 = vmatmul.bf16.gmra.mxu0 %v1345
        %v1602 = vpop.f32.mrf.mxu0
        %v1603 = vadd.f32 0.0, %v1602
        %v1604 = vpop.f32.mrf.mxu0
        %v1605 = vadd.f32 0.0, %v1604
        %1606 = vmatmul.bf16.gmra.mxu0 %v1346
        %v1607 = vpop.f32.mrf.mxu0
        %v1608 = vadd.f32 0.0, %v1607
        %v1609 = vpop.f32.mrf.mxu0
        %v1610 = vadd.f32 0.0, %v1609
        %1611 = vmatmul.bf16.gmra.mxu0 %v1347
        %v1612 = vpop.f32.mrf.mxu0
        %v1613 = vadd.f32 0.0, %v1612
        %v1614 = vpop.f32.mrf.mxu0
        %v1615 = vadd.f32 0.0, %v1614
        %1616 = vmatmul.bf16.gmra.mxu0 %v1348
        %v1617 = vpop.f32.mrf.mxu0
        %v1618 = vadd.f32 0.0, %v1617
        %v1619 = vpop.f32.mrf.mxu0
        %v1620 = vadd.f32 0.0, %v1619
        %1621 = vmatmul.bf16.gmra.mxu0 %v1349
        %v1622 = vpop.f32.mrf.mxu0
        %v1623 = vadd.f32 0.0, %v1622
        %v1624 = vpop.f32.mrf.mxu0
        %v1625 = vadd.f32 0.0, %v1624
        %1626 = vmatmul.bf16.gmra.mxu0 %v1350
        %v1627 = vpop.f32.mrf.mxu0
        %v1628 = vadd.f32 0.0, %v1627
        %v1629 = vpop.f32.mrf.mxu0
        %v1630 = vadd.f32 0.0, %v1629
        %1631 = vmatmul.bf16.gmra.mxu0 %v1351
        %v1632 = vpop.f32.mrf.mxu0
        %v1633 = vadd.f32 0.0, %v1632
        %v1634 = vpop.f32.mrf.mxu0
        %v1635 = vadd.f32 0.0, %v1634
        %1636 = vmatmul.bf16.gmra.mxu0 %v1352
        %v1637 = vpop.f32.mrf.mxu0
        %v1638 = vadd.f32 0.0, %v1637
        %v1639 = vpop.f32.mrf.mxu0
        %v1640 = vadd.f32 0.0, %v1639
        %1641 = vmatmul.bf16.gmra.mxu0 %v1353
        %v1642 = vpop.f32.mrf.mxu0
        %v1643 = vadd.f32 0.0, %v1642
        %v1644 = vpop.f32.mrf.mxu0
        %v1645 = vadd.f32 0.0, %v1644
        %1646 = vmatmul.bf16.gmra.mxu0 %v1354
        %v1647 = vpop.f32.mrf.mxu0
        %v1648 = vadd.f32 0.0, %v1647
        %v1649 = vpop.f32.mrf.mxu0
        %v1650 = vadd.f32 0.0, %v1649
        %1651 = vmatmul.bf16.gmra.mxu0 %v1355
        %v1652 = vpop.f32.mrf.mxu0
        %v1653 = vadd.f32 0.0, %v1652
        %v1654 = vpop.f32.mrf.mxu0
        %v1655 = vadd.f32 0.0, %v1654
        %1656 = vmatmul.bf16.gmra.mxu0 %v1356
        %v1657 = vpop.f32.mrf.mxu0
        %v1658 = vadd.f32 0.0, %v1657
        %v1659 = vpop.f32.mrf.mxu0
        %v1660 = vadd.f32 0.0, %v1659
        %1661 = vmatmul.bf16.gmra.mxu0 %v1357
        %v1662 = vpop.f32.mrf.mxu0
        %v1663 = vadd.f32 0.0, %v1662
        %v1664 = vpop.f32.mrf.mxu0
        %v1665 = vadd.f32 0.0, %v1664
        %1666 = vmatmul.bf16.gmra.mxu0 %v1358
        %v1667 = vpop.f32.mrf.mxu0
        %v1668 = vadd.f32 0.0, %v1667
        %v1669 = vpop.f32.mrf.mxu0
        %v1670 = vadd.f32 0.0, %v1669
        %1671 = vmatmul.bf16.gmra.mxu0 %v1359
        %v1672 = vpop.f32.mrf.mxu0
        %v1673 = vadd.f32 0.0, %v1672
        %v1674 = vpop.f32.mrf.mxu0
        %v1675 = vadd.f32 0.0, %v1674
        %1676 = vmatmul.bf16.gmra.mxu0 %v1360
        %v1677 = vpop.f32.mrf.mxu0
        %v1678 = vadd.f32 0.0, %v1677
        %v1679 = vpop.f32.mrf.mxu0
        %v1680 = vadd.f32 0.0, %v1679
        %1681 = vmatmul.bf16.gmra.mxu0 %v1361
        %v1682 = vpop.f32.mrf.mxu0
        %v1683 = vadd.f32 0.0, %v1682
        %v1684 = vpop.f32.mrf.mxu0
        %v1685 = vadd.f32 0.0, %v1684
        %1686 = vmatmul.bf16.gmra.mxu0 %v1362
        %v1687 = vpop.f32.mrf.mxu0
        %v1688 = vadd.f32 0.0, %v1687
        %v1689 = vpop.f32.mrf.mxu0
        %v1690 = vadd.f32 0.0, %v1689
        %1691 = vmatmul.bf16.gmra.mxu0 %v1363
        %v1692 = vpop.f32.mrf.mxu0
        %v1693 = vadd.f32 0.0, %v1692
        %v1694 = vpop.f32.mrf.mxu0
        %v1695 = vadd.f32 0.0, %v1694
        %1696 = vmatmul.bf16.gmra.mxu0 %v1364
        %v1697 = vpop.f32.mrf.mxu0
        %v1698 = vadd.f32 0.0, %v1697
        %v1699 = vpop.f32.mrf.mxu0
        %v1700 = vadd.f32 0.0, %v1699
        %1701 = vmatmul.bf16.gmra.mxu0 %v1365
        %v1702 = vpop.f32.mrf.mxu0
        %v1703 = vadd.f32 0.0, %v1702
        %v1704 = vpop.f32.mrf.mxu0
        %v1705 = vadd.f32 0.0, %v1704
        %1706 = vmatmul.bf16.gmra.mxu0 %v1366
        %v1707 = vpop.f32.mrf.mxu0
        %v1708 = vadd.f32 0.0, %v1707
        %v1709 = vpop.f32.mrf.mxu0
        %v1710 = vadd.f32 0.0, %v1709
        %1711 = vmatmul.bf16.gmra.mxu0 %v1367
        %v1712 = vpop.f32.mrf.mxu0
        %v1713 = vadd.f32 0.0, %v1712
        %v1714 = vpop.f32.mrf.mxu0
        %v1715 = vadd.f32 0.0, %v1714
        %1716 = vmatmul.bf16.gmra.mxu0 %v1368
        %v1717 = vpop.f32.mrf.mxu0
        %v1718 = vadd.f32 0.0, %v1717
        %v1719 = vpop.f32.mrf.mxu0
        %v1720 = vadd.f32 0.0, %v1719
        %1721 = vmatmul.bf16.gmra.mxu0 %v1369
        %v1722 = vpop.f32.mrf.mxu0
        %v1723 = vadd.f32 0.0, %v1722
        %v1724 = vpop.f32.mrf.mxu0
        %v1725 = vadd.f32 0.0, %v1724
        %1726 = vmatmul.bf16.gmra.mxu0 %v1370
        %v1727 = vpop.f32.mrf.mxu0
        %v1728 = vadd.f32 0.0, %v1727
        %v1729 = vpop.f32.mrf.mxu0
        %v1730 = vadd.f32 0.0, %v1729
        %1731 = vmatmul.bf16.gmra.mxu0 %v1371
        %v1732 = vpop.f32.mrf.mxu0
        %v1733 = vadd.f32 0.0, %v1732
        %v1734 = vpop.f32.mrf.mxu0
        %v1735 = vadd.f32 0.0, %v1734
        %1736 = vmatmul.bf16.gmra.mxu0 %v1372
        %v1737 = vpop.f32.mrf.mxu0
        %v1738 = vadd.f32 0.0, %v1737
        %v1739 = vpop.f32.mrf.mxu0
        %v1740 = vadd.f32 0.0, %v1739
        %1741 = vmatmul.bf16.gmra.mxu0 %v1373
        %v1742 = vpop.f32.mrf.mxu0
        %v1743 = vadd.f32 0.0, %v1742
        %v1744 = vpop.f32.mrf.mxu0
        %v1745 = vadd.f32 0.0, %v1744
        %1746 = vmatmul.bf16.gmra.mxu0 %v1374
        %v1747 = vpop.f32.mrf.mxu0
        %v1748 = vadd.f32 0.0, %v1747
        %v1749 = vpop.f32.mrf.mxu0
        %v1750 = vadd.f32 0.0, %v1749
        %1751 = vmatmul.bf16.gmra.mxu0 %v1375
        %v1752 = vpop.f32.mrf.mxu0
        %v1753 = vadd.f32 0.0, %v1752
        %v1754 = vpop.f32.mrf.mxu0
        %v1755 = vadd.f32 0.0, %v1754
        %1756 = vmatmul.bf16.gmra.mxu0 %v1376
        %v1757 = vpop.f32.mrf.mxu0
        %v1758 = vadd.f32 0.0, %v1757
        %v1759 = vpop.f32.mrf.mxu0
        %v1760 = vadd.f32 0.0, %v1759
        %1761 = vmatmul.bf16.gmra.mxu0 %v1377
        %v1762 = vpop.f32.mrf.mxu0
        %v1763 = vadd.f32 0.0, %v1762
        %v1764 = vpop.f32.mrf.mxu0
        %v1765 = vadd.f32 0.0, %v1764
        %1766 = vmatmul.bf16.gmra.mxu0 %v1378
        %v1767 = vpop.f32.mrf.mxu0
        %v1768 = vadd.f32 0.0, %v1767
        %v1769 = vpop.f32.mrf.mxu0
        %v1770 = vadd.f32 0.0, %v1769
        %1771 = vdwg.mxu0
        %v1772 = vld [vmem:[#allocation2] sm:$0xff]
        %v1773 = vld [vmem:[#allocation2 + $0x8] sm:$0xff]
        %v1774 = vld [vmem:[#allocation2 + $0x10] sm:$0xff]
        %v1775 = vld [vmem:[#allocation2 + $0x18] sm:$0xff]
        %v1776 = vld [vmem:[#allocation2 + $0x20] sm:$0xff]
        %v1777 = vld [vmem:[#allocation2 + $0x28] sm:$0xff]
        %v1778 = vld [vmem:[#allocation2 + $0x30] sm:$0xff]
        %v1779 = vld [vmem:[#allocation2 + $0x38] sm:$0xff]
        %v1780 = vld [vmem:[#allocation2 + $0x40] sm:$0xff]
        %v1781 = vld [vmem:[#allocation2 + $0x48] sm:$0xff]
        %v1782 = vld [vmem:[#allocation2 + $0x50] sm:$0xff]
        %v1783 = vld [vmem:[#allocation2 + $0x58] sm:$0xff]
        %v1784 = vld [vmem:[#allocation2 + $0x60] sm:$0xff]
        %v1785 = vld [vmem:[#allocation2 + $0x68] sm:$0xff]
        %v1786 = vld [vmem:[#allocation2 + $0x70] sm:$0xff]
        %v1787 = vld [vmem:[#allocation2 + $0x78] sm:$0xff]
        %v1788 = vld [vmem:[#allocation2 + $0x80] sm:$0xff]
        %v1789 = vld [vmem:[#allocation2 + $0x88] sm:$0xff]
        %v1790 = vld [vmem:[#allocation2 + $0x90] sm:$0xff]
        %v1791 = vld [vmem:[#allocation2 + $0x98] sm:$0xff]
        %v1792 = vld [vmem:[#allocation2 + $0xa0] sm:$0xff]
        %v1793 = vld [vmem:[#allocation2 + $0xa8] sm:$0xff]
        %v1794 = vld [vmem:[#allocation2 + $0xb0] sm:$0xff]
        %v1795 = vld [vmem:[#allocation2 + $0xb8] sm:$0xff]
        %v1796 = vld [vmem:[#allocation2 + $0xc0] sm:$0xff]
        %v1797 = vld [vmem:[#allocation2 + $0xc8] sm:$0xff]
        %v1798 = vld [vmem:[#allocation2 + $0xd0] sm:$0xff]
        %v1799 = vld [vmem:[#allocation2 + $0xd8] sm:$0xff]
        %v1800 = vld [vmem:[#allocation2 + $0xe0] sm:$0xff]
        %v1801 = vld [vmem:[#allocation2 + $0xe8] sm:$0xff]
        %v1802 = vld [vmem:[#allocation2 + $0xf0] sm:$0xff]
        %v1803 = vld [vmem:[#allocation2 + $0xf8] sm:$0xff]
        %v1804 = vld [vmem:[#allocation2 + $0x100] sm:$0xff]
        %v1805 = vld [vmem:[#allocation2 + $0x108] sm:$0xff]
        %v1806 = vld [vmem:[#allocation2 + $0x110] sm:$0xff]
        %v1807 = vld [vmem:[#allocation2 + $0x118] sm:$0xff]
        %v1808 = vld [vmem:[#allocation2 + $0x120] sm:$0xff]
        %v1809 = vld [vmem:[#allocation2 + $0x128] sm:$0xff]
        %v1810 = vld [vmem:[#allocation2 + $0x130] sm:$0xff]
        %v1811 = vld [vmem:[#allocation2 + $0x138] sm:$0xff]
        %v1812 = vld [vmem:[#allocation2 + $0x140] sm:$0xff]
        %v1813 = vld [vmem:[#allocation2 + $0x148] sm:$0xff]
        %v1814 = vld [vmem:[#allocation2 + $0x150] sm:$0xff]
        %v1815 = vld [vmem:[#allocation2 + $0x158] sm:$0xff]
        %v1816 = vld [vmem:[#allocation2 + $0x160] sm:$0xff]
        %v1817 = vld [vmem:[#allocation2 + $0x168] sm:$0xff]
        %v1818 = vld [vmem:[#allocation2 + $0x170] sm:$0xff]
        %v1819 = vld [vmem:[#allocation2 + $0x178] sm:$0xff]
        %v1820 = vld [vmem:[#allocation2 + $0x180] sm:$0xff]
        %v1821 = vld [vmem:[#allocation2 + $0x188] sm:$0xff]
        %v1822 = vld [vmem:[#allocation2 + $0x190] sm:$0xff]
        %v1823 = vld [vmem:[#allocation2 + $0x198] sm:$0xff]
        %v1824 = vld [vmem:[#allocation2 + $0x1a0] sm:$0xff]
        %v1825 = vld [vmem:[#allocation2 + $0x1a8] sm:$0xff]
        %v1826 = vld [vmem:[#allocation2 + $0x1b0] sm:$0xff]
        %v1827 = vld [vmem:[#allocation2 + $0x1b8] sm:$0xff]
        %v1828 = vld [vmem:[#allocation2 + $0x1c0] sm:$0xff]
        %v1829 = vld [vmem:[#allocation2 + $0x1c8] sm:$0xff]
        %v1830 = vld [vmem:[#allocation2 + $0x1d0] sm:$0xff]
        %v1831 = vld [vmem:[#allocation2 + $0x1d8] sm:$0xff]
        %v1832 = vld [vmem:[#allocation2 + $0x1e0] sm:$0xff]
        %v1833 = vld [vmem:[#allocation2 + $0x1e8] sm:$0xff]
        %v1834 = vld [vmem:[#allocation2 + $0x1f0] sm:$0xff]
        %v1835 = vld [vmem:[#allocation2 + $0x1f8] sm:$0xff]
        %v1836 = vld [vmem:[#allocation2 + $0x200] sm:$0xff]
        %v1837 = vld [vmem:[#allocation2 + $0x208] sm:$0xff]
        %v1838 = vld [vmem:[#allocation2 + $0x210] sm:$0xff]
        %v1839 = vld [vmem:[#allocation2 + $0x218] sm:$0xff]
        %v1840 = vld [vmem:[#allocation2 + $0x220] sm:$0xff]
        %v1841 = vld [vmem:[#allocation2 + $0x228] sm:$0xff]
        %v1842 = vld [vmem:[#allocation2 + $0x230] sm:$0xff]
        %v1843 = vld [vmem:[#allocation2 + $0x238] sm:$0xff]
        %v1844 = vld [vmem:[#allocation2 + $0x240] sm:$0xff]
        %v1845 = vld [vmem:[#allocation2 + $0x248] sm:$0xff]
        %v1846 = vld [vmem:[#allocation2 + $0x250] sm:$0xff]
        %v1847 = vld [vmem:[#allocation2 + $0x258] sm:$0xff]
        %v1848 = vld [vmem:[#allocation2 + $0x260] sm:$0xff]
        %v1849 = vld [vmem:[#allocation2 + $0x268] sm:$0xff]
        %v1850 = vld [vmem:[#allocation2 + $0x270] sm:$0xff]
        %v1851 = vld [vmem:[#allocation2 + $0x278] sm:$0xff]
        %v1852 = vld [vmem:[#allocation2 + $0x280] sm:$0xff]
        %v1853 = vld [vmem:[#allocation2 + $0x288] sm:$0xff]
        %v1854 = vld [vmem:[#allocation2 + $0x290] sm:$0xff]
        %v1855 = vld [vmem:[#allocation2 + $0x298] sm:$0xff]
        %v1856 = vld [vmem:[#allocation2 + $0x2a0] sm:$0xff]
        %v1857 = vld [vmem:[#allocation2 + $0x2a8] sm:$0xff]
        %v1858 = vld [vmem:[#allocation2 + $0x2b0] sm:$0xff]
        %v1859 = vld [vmem:[#allocation2 + $0x2b8] sm:$0xff]
        %v1860 = vld [vmem:[#allocation2 + $0x2c0] sm:$0xff]
        %v1861 = vld [vmem:[#allocation2 + $0x2c8] sm:$0xff]
        %v1862 = vld [vmem:[#allocation2 + $0x2d0] sm:$0xff]
        %v1863 = vld [vmem:[#allocation2 + $0x2d8] sm:$0xff]
        %v1864 = vld [vmem:[#allocation2 + $0x2e0] sm:$0xff]
        %v1865 = vld [vmem:[#allocation2 + $0x2e8] sm:$0xff]
        %v1866 = vld [vmem:[#allocation2 + $0x2f0] sm:$0xff]
        %v1867 = vld [vmem:[#allocation2 + $0x2f8] sm:$0xff]
        %v1868 = vld [vmem:[#allocation2 + $0x300] sm:$0xff]
        %v1869 = vld [vmem:[#allocation2 + $0x308] sm:$0xff]
        %v1870 = vld [vmem:[#allocation2 + $0x310] sm:$0xff]
        %v1871 = vld [vmem:[#allocation2 + $0x318] sm:$0xff]
        %v1872 = vld [vmem:[#allocation2 + $0x320] sm:$0xff]
        %v1873 = vld [vmem:[#allocation2 + $0x328] sm:$0xff]
        %v1874 = vld [vmem:[#allocation2 + $0x330] sm:$0xff]
        %v1875 = vld [vmem:[#allocation2 + $0x338] sm:$0xff]
        %v1876 = vld [vmem:[#allocation2 + $0x340] sm:$0xff]
        %v1877 = vld [vmem:[#allocation2 + $0x348] sm:$0xff]
        %v1878 = vld [vmem:[#allocation2 + $0x350] sm:$0xff]
        %v1879 = vld [vmem:[#allocation2 + $0x358] sm:$0xff]
        %v1880 = vld [vmem:[#allocation2 + $0x360] sm:$0xff]
        %v1881 = vld [vmem:[#allocation2 + $0x368] sm:$0xff]
        %v1882 = vld [vmem:[#allocation2 + $0x370] sm:$0xff]
        %v1883 = vld [vmem:[#allocation2 + $0x378] sm:$0xff]
        %v1884 = vld [vmem:[#allocation2 + $0x380] sm:$0xff]
        %v1885 = vld [vmem:[#allocation2 + $0x388] sm:$0xff]
        %v1886 = vld [vmem:[#allocation2 + $0x390] sm:$0xff]
        %v1887 = vld [vmem:[#allocation2 + $0x398] sm:$0xff]
        %v1888 = vld [vmem:[#allocation2 + $0x3a0] sm:$0xff]
        %v1889 = vld [vmem:[#allocation2 + $0x3a8] sm:$0xff]
        %v1890 = vld [vmem:[#allocation2 + $0x3b0] sm:$0xff]
        %v1891 = vld [vmem:[#allocation2 + $0x3b8] sm:$0xff]
        %v1892 = vld [vmem:[#allocation2 + $0x3c0] sm:$0xff]
        %v1893 = vld [vmem:[#allocation2 + $0x3c8] sm:$0xff]
        %v1894 = vld [vmem:[#allocation2 + $0x3d0] sm:$0xff]
        %v1895 = vld [vmem:[#allocation2 + $0x3d8] sm:$0xff]
        %v1896 = vld [vmem:[#allocation2 + $0x3e0] sm:$0xff]
        %v1897 = vld [vmem:[#allocation2 + $0x3e8] sm:$0xff]
        %v1898 = vld [vmem:[#allocation2 + $0x3f0] sm:$0xff]
        %v1899 = vld [vmem:[#allocation2 + $0x3f8] sm:$0xff]
        %v1900 = vmax.f32 %v1772, %v1453
        %v1901 = vmax.f32 %v1773, %v1455
        %v1902 = vmax.f32 %v1774, %v1458
        %v1903 = vmax.f32 %v1775, %v1460
        %v1904 = vmax.f32 %v1776, %v1463
        %v1905 = vmax.f32 %v1777, %v1465
        %v1906 = vmax.f32 %v1778, %v1468
        %v1907 = vmax.f32 %v1779, %v1470
        %v1908 = vmax.f32 %v1780, %v1473
        %v1909 = vmax.f32 %v1781, %v1475
        %v1910 = vmax.f32 %v1782, %v1478
        %v1911 = vmax.f32 %v1783, %v1480
        %v1912 = vmax.f32 %v1784, %v1483
        %v1913 = vmax.f32 %v1785, %v1485
        %v1914 = vmax.f32 %v1786, %v1488
        %v1915 = vmax.f32 %v1787, %v1490
        %v1916 = vmax.f32 %v1788, %v1493
        %v1917 = vmax.f32 %v1789, %v1495
        %v1918 = vmax.f32 %v1790, %v1498
        %v1919 = vmax.f32 %v1791, %v1500
        %v1920 = vmax.f32 %v1792, %v1503
        %v1921 = vmax.f32 %v1793, %v1505
        %v1922 = vmax.f32 %v1794, %v1508
        %v1923 = vmax.f32 %v1795, %v1510
        %v1924 = vmax.f32 %v1796, %v1513
        %v1925 = vmax.f32 %v1797, %v1515
        %v1926 = vmax.f32 %v1798, %v1518
        %v1927 = vmax.f32 %v1799, %v1520
        %v1928 = vmax.f32 %v1800, %v1523
        %v1929 = vmax.f32 %v1801, %v1525
        %v1930 = vmax.f32 %v1802, %v1528
        %v1931 = vmax.f32 %v1803, %v1530
        %v1932 = vmax.f32 %v1804, %v1533
        %v1933 = vmax.f32 %v1805, %v1535
        %v1934 = vmax.f32 %v1806, %v1538
        %v1935 = vmax.f32 %v1807, %v1540
        %v1936 = vmax.f32 %v1808, %v1543
        %v1937 = vmax.f32 %v1809, %v1545
        %v1938 = vmax.f32 %v1810, %v1548
        %v1939 = vmax.f32 %v1811, %v1550
        %v1940 = vmax.f32 %v1812, %v1553
        %v1941 = vmax.f32 %v1813, %v1555
        %v1942 = vmax.f32 %v1814, %v1558
        %v1943 = vmax.f32 %v1815, %v1560
        %v1944 = vmax.f32 %v1816, %v1563
        %v1945 = vmax.f32 %v1817, %v1565
        %v1946 = vmax.f32 %v1818, %v1568
        %v1947 = vmax.f32 %v1819, %v1570
        %v1948 = vmax.f32 %v1820, %v1573
        %v1949 = vmax.f32 %v1821, %v1575
        %v1950 = vmax.f32 %v1822, %v1578
        %v1951 = vmax.f32 %v1823, %v1580
        %v1952 = vmax.f32 %v1824, %v1583
        %v1953 = vmax.f32 %v1825, %v1585
        %v1954 = vmax.f32 %v1826, %v1588
        %v1955 = vmax.f32 %v1827, %v1590
        %v1956 = vmax.f32 %v1828, %v1593
        %v1957 = vmax.f32 %v1829, %v1595
        %v1958 = vmax.f32 %v1830, %v1598
        %v1959 = vmax.f32 %v1831, %v1600
        %v1960 = vmax.f32 %v1832, %v1603
        %v1961 = vmax.f32 %v1833, %v1605
        %v1962 = vmax.f32 %v1834, %v1608
        %v1963 = vmax.f32 %v1835, %v1610
        %v1964 = vmax.f32 %v1836, %v1613
        %v1965 = vmax.f32 %v1837, %v1615
        %v1966 = vmax.f32 %v1838, %v1618
        %v1967 = vmax.f32 %v1839, %v1620
        %v1968 = vmax.f32 %v1840, %v1623
        %v1969 = vmax.f32 %v1841, %v1625
        %v1970 = vmax.f32 %v1842, %v1628
        %v1971 = vmax.f32 %v1843, %v1630
        %v1972 = vmax.f32 %v1844, %v1633
        %v1973 = vmax.f32 %v1845, %v1635
        %v1974 = vmax.f32 %v1846, %v1638
        %v1975 = vmax.f32 %v1847, %v1640
        %v1976 = vmax.f32 %v1848, %v1643
        %v1977 = vmax.f32 %v1849, %v1645
        %v1978 = vmax.f32 %v1850, %v1648
        %v1979 = vmax.f32 %v1851, %v1650
        %v1980 = vmax.f32 %v1852, %v1653
        %v1981 = vmax.f32 %v1853, %v1655
        %v1982 = vmax.f32 %v1854, %v1658
        %v1983 = vmax.f32 %v1855, %v1660
        %v1984 = vmax.f32 %v1856, %v1663
        %v1985 = vmax.f32 %v1857, %v1665
        %v1986 = vmax.f32 %v1858, %v1668
        %v1987 = vmax.f32 %v1859, %v1670
        %v1988 = vmax.f32 %v1860, %v1673
        %v1989 = vmax.f32 %v1861, %v1675
        %v1990 = vmax.f32 %v1862, %v1678
        %v1991 = vmax.f32 %v1863, %v1680
        %v1992 = vmax.f32 %v1864, %v1683
        %v1993 = vmax.f32 %v1865, %v1685
        %v1994 = vmax.f32 %v1866, %v1688
        %v1995 = vmax.f32 %v1867, %v1690
        %v1996 = vmax.f32 %v1868, %v1693
        %v1997 = vmax.f32 %v1869, %v1695
        %v1998 = vmax.f32 %v1870, %v1698
        %v1999 = vmax.f32 %v1871, %v1700
        %v2000 = vmax.f32 %v1872, %v1703
        %v2001 = vmax.f32 %v1873, %v1705
        %v2002 = vmax.f32 %v1874, %v1708
        %v2003 = vmax.f32 %v1875, %v1710
        %v2004 = vmax.f32 %v1876, %v1713
        %v2005 = vmax.f32 %v1877, %v1715
        %v2006 = vmax.f32 %v1878, %v1718
        %v2007 = vmax.f32 %v1879, %v1720
        %v2008 = vmax.f32 %v1880, %v1723
        %v2009 = vmax.f32 %v1881, %v1725
        %v2010 = vmax.f32 %v1882, %v1728
        %v2011 = vmax.f32 %v1883, %v1730
        %v2012 = vmax.f32 %v1884, %v1733
        %v2013 = vmax.f32 %v1885, %v1735
        %v2014 = vmax.f32 %v1886, %v1738
        %v2015 = vmax.f32 %v1887, %v1740
        %v2016 = vmax.f32 %v1888, %v1743
        %v2017 = vmax.f32 %v1889, %v1745
        %v2018 = vmax.f32 %v1890, %v1748
        %v2019 = vmax.f32 %v1891, %v1750
        %v2020 = vmax.f32 %v1892, %v1753
        %v2021 = vmax.f32 %v1893, %v1755
        %v2022 = vmax.f32 %v1894, %v1758
        %v2023 = vmax.f32 %v1895, %v1760
        %v2024 = vmax.f32 %v1896, %v1763
        %v2025 = vmax.f32 %v1897, %v1765
        %v2026 = vmax.f32 %v1898, %v1768
        %v2027 = vmax.f32 %v1899, %v1770
        %2028 = vst [vmem:[#allocation2] sm:$0xff] %v1900
        %2029 = vst [vmem:[#allocation2 + $0x8] sm:$0xff] %v1901
        %2030 = vst [vmem:[#allocation2 + $0x10] sm:$0xff] %v1902
        %2031 = vst [vmem:[#allocation2 + $0x18] sm:$0xff] %v1903
        %2032 = vst [vmem:[#allocation2 + $0x20] sm:$0xff] %v1904
        %2033 = vst [vmem:[#allocation2 + $0x28] sm:$0xff] %v1905
        %2034 = vst [vmem:[#allocation2 + $0x30] sm:$0xff] %v1906
        %2035 = vst [vmem:[#allocation2 + $0x38] sm:$0xff] %v1907
        %2036 = vst [vmem:[#allocation2 + $0x40] sm:$0xff] %v1908
        %2037 = vst [vmem:[#allocation2 + $0x48] sm:$0xff] %v1909
        %2038 = vst [vmem:[#allocation2 + $0x50] sm:$0xff] %v1910
        %2039 = vst [vmem:[#allocation2 + $0x58] sm:$0xff] %v1911
        %2040 = vst [vmem:[#allocation2 + $0x60] sm:$0xff] %v1912
        %2041 = vst [vmem:[#allocation2 + $0x68] sm:$0xff] %v1913
        %2042 = vst [vmem:[#allocation2 + $0x70] sm:$0xff] %v1914
        %2043 = vst [vmem:[#allocation2 + $0x78] sm:$0xff] %v1915
        %2044 = vst [vmem:[#allocation2 + $0x80] sm:$0xff] %v1916
        %2045 = vst [vmem:[#allocation2 + $0x88] sm:$0xff] %v1917
        %2046 = vst [vmem:[#allocation2 + $0x90] sm:$0xff] %v1918
        %2047 = vst [vmem:[#allocation2 + $0x98] sm:$0xff] %v1919
        %2048 = vst [vmem:[#allocation2 + $0xa0] sm:$0xff] %v1920
        %2049 = vst [vmem:[#allocation2 + $0xa8] sm:$0xff] %v1921
        %2050 = vst [vmem:[#allocation2 + $0xb0] sm:$0xff] %v1922
        %2051 = vst [vmem:[#allocation2 + $0xb8] sm:$0xff] %v1923
        %2052 = vst [vmem:[#allocation2 + $0xc0] sm:$0xff] %v1924
        %2053 = vst [vmem:[#allocation2 + $0xc8] sm:$0xff] %v1925
        %2054 = vst [vmem:[#allocation2 + $0xd0] sm:$0xff] %v1926
        %2055 = vst [vmem:[#allocation2 + $0xd8] sm:$0xff] %v1927
        %2056 = vst [vmem:[#allocation2 + $0xe0] sm:$0xff] %v1928
        %2057 = vst [vmem:[#allocation2 + $0xe8] sm:$0xff] %v1929
        %2058 = vst [vmem:[#allocation2 + $0xf0] sm:$0xff] %v1930
        %2059 = vst [vmem:[#allocation2 + $0xf8] sm:$0xff] %v1931
        %2060 = vst [vmem:[#allocation2 + $0x100] sm:$0xff] %v1932
        %2061 = vst [vmem:[#allocation2 + $0x108] sm:$0xff] %v1933
        %2062 = vst [vmem:[#allocation2 + $0x110] sm:$0xff] %v1934
        %2063 = vst [vmem:[#allocation2 + $0x118] sm:$0xff] %v1935
        %2064 = vst [vmem:[#allocation2 + $0x120] sm:$0xff] %v1936
        %2065 = vst [vmem:[#allocation2 + $0x128] sm:$0xff] %v1937
        %2066 = vst [vmem:[#allocation2 + $0x130] sm:$0xff] %v1938
        %2067 = vst [vmem:[#allocation2 + $0x138] sm:$0xff] %v1939
        %2068 = vst [vmem:[#allocation2 + $0x140] sm:$0xff] %v1940
        %2069 = vst [vmem:[#allocation2 + $0x148] sm:$0xff] %v1941
        %2070 = vst [vmem:[#allocation2 + $0x150] sm:$0xff] %v1942
        %2071 = vst [vmem:[#allocation2 + $0x158] sm:$0xff] %v1943
        %2072 = vst [vmem:[#allocation2 + $0x160] sm:$0xff] %v1944
        %2073 = vst [vmem:[#allocation2 + $0x168] sm:$0xff] %v1945
        %2074 = vst [vmem:[#allocation2 + $0x170] sm:$0xff] %v1946
        %2075 = vst [vmem:[#allocation2 + $0x178] sm:$0xff] %v1947
        %2076 = vst [vmem:[#allocation2 + $0x180] sm:$0xff] %v1948
        %2077 = vst [vmem:[#allocation2 + $0x188] sm:$0xff] %v1949
        %2078 = vst [vmem:[#allocation2 + $0x190] sm:$0xff] %v1950
        %2079 = vst [vmem:[#allocation2 + $0x198] sm:$0xff] %v1951
        %2080 = vst [vmem:[#allocation2 + $0x1a0] sm:$0xff] %v1952
        %2081 = vst [vmem:[#allocation2 + $0x1a8] sm:$0xff] %v1953
        %2082 = vst [vmem:[#allocation2 + $0x1b0] sm:$0xff] %v1954
        %2083 = vst [vmem:[#allocation2 + $0x1b8] sm:$0xff] %v1955
        %2084 = vst [vmem:[#allocation2 + $0x1c0] sm:$0xff] %v1956
        %2085 = vst [vmem:[#allocation2 + $0x1c8] sm:$0xff] %v1957
        %2086 = vst [vmem:[#allocation2 + $0x1d0] sm:$0xff] %v1958
        %2087 = vst [vmem:[#allocation2 + $0x1d8] sm:$0xff] %v1959
        %2088 = vst [vmem:[#allocation2 + $0x1e0] sm:$0xff] %v1960
        %2089 = vst [vmem:[#allocation2 + $0x1e8] sm:$0xff] %v1961
        %2090 = vst [vmem:[#allocation2 + $0x1f0] sm:$0xff] %v1962
        %2091 = vst [vmem:[#allocation2 + $0x1f8] sm:$0xff] %v1963
        %2092 = vst [vmem:[#allocation2 + $0x200] sm:$0xff] %v1964
        %2093 = vst [vmem:[#allocation2 + $0x208] sm:$0xff] %v1965
        %2094 = vst [vmem:[#allocation2 + $0x210] sm:$0xff] %v1966
        %2095 = vst [vmem:[#allocation2 + $0x218] sm:$0xff] %v1967
        %2096 = vst [vmem:[#allocation2 + $0x220] sm:$0xff] %v1968
        %2097 = vst [vmem:[#allocation2 + $0x228] sm:$0xff] %v1969
        %2098 = vst [vmem:[#allocation2 + $0x230] sm:$0xff] %v1970
        %2099 = vst [vmem:[#allocation2 + $0x238] sm:$0xff] %v1971
        %2100 = vst [vmem:[#allocation2 + $0x240] sm:$0xff] %v1972
        %2101 = vst [vmem:[#allocation2 + $0x248] sm:$0xff] %v1973
        %2102 = vst [vmem:[#allocation2 + $0x250] sm:$0xff] %v1974
        %2103 = vst [vmem:[#allocation2 + $0x258] sm:$0xff] %v1975
        %2104 = vst [vmem:[#allocation2 + $0x260] sm:$0xff] %v1976
        %2105 = vst [vmem:[#allocation2 + $0x268] sm:$0xff] %v1977
        %2106 = vst [vmem:[#allocation2 + $0x270] sm:$0xff] %v1978
        %2107 = vst [vmem:[#allocation2 + $0x278] sm:$0xff] %v1979
        %2108 = vst [vmem:[#allocation2 + $0x280] sm:$0xff] %v1980
        %2109 = vst [vmem:[#allocation2 + $0x288] sm:$0xff] %v1981
        %2110 = vst [vmem:[#allocation2 + $0x290] sm:$0xff] %v1982
        %2111 = vst [vmem:[#allocation2 + $0x298] sm:$0xff] %v1983
        %2112 = vst [vmem:[#allocation2 + $0x2a0] sm:$0xff] %v1984
        %2113 = vst [vmem:[#allocation2 + $0x2a8] sm:$0xff] %v1985
        %2114 = vst [vmem:[#allocation2 + $0x2b0] sm:$0xff] %v1986
        %2115 = vst [vmem:[#allocation2 + $0x2b8] sm:$0xff] %v1987
        %2116 = vst [vmem:[#allocation2 + $0x2c0] sm:$0xff] %v1988
        %2117 = vst [vmem:[#allocation2 + $0x2c8] sm:$0xff] %v1989
        %2118 = vst [vmem:[#allocation2 + $0x2d0] sm:$0xff] %v1990
        %2119 = vst [vmem:[#allocation2 + $0x2d8] sm:$0xff] %v1991
        %2120 = vst [vmem:[#allocation2 + $0x2e0] sm:$0xff] %v1992
        %2121 = vst [vmem:[#allocation2 + $0x2e8] sm:$0xff] %v1993
        %2122 = vst [vmem:[#allocation2 + $0x2f0] sm:$0xff] %v1994
        %2123 = vst [vmem:[#allocation2 + $0x2f8] sm:$0xff] %v1995
        %2124 = vst [vmem:[#allocation2 + $0x300] sm:$0xff] %v1996
        %2125 = vst [vmem:[#allocation2 + $0x308] sm:$0xff] %v1997
        %2126 = vst [vmem:[#allocation2 + $0x310] sm:$0xff] %v1998
        %2127 = vst [vmem:[#allocation2 + $0x318] sm:$0xff] %v1999
        %2128 = vst [vmem:[#allocation2 + $0x320] sm:$0xff] %v2000
        %2129 = vst [vmem:[#allocation2 + $0x328] sm:$0xff] %v2001
        %2130 = vst [vmem:[#allocation2 + $0x330] sm:$0xff] %v2002
        %2131 = vst [vmem:[#allocation2 + $0x338] sm:$0xff] %v2003
        %2132 = vst [vmem:[#allocation2 + $0x340] sm:$0xff] %v2004
        %2133 = vst [vmem:[#allocation2 + $0x348] sm:$0xff] %v2005
        %2134 = vst [vmem:[#allocation2 + $0x350] sm:$0xff] %v2006
        %2135 = vst [vmem:[#allocation2 + $0x358] sm:$0xff] %v2007
        %2136 = vst [vmem:[#allocation2 + $0x360] sm:$0xff] %v2008
        %2137 = vst [vmem:[#allocation2 + $0x368] sm:$0xff] %v2009
        %2138 = vst [vmem:[#allocation2 + $0x370] sm:$0xff] %v2010
        %2139 = vst [vmem:[#allocation2 + $0x378] sm:$0xff] %v2011
        %2140 = vst [vmem:[#allocation2 + $0x380] sm:$0xff] %v2012
        %2141 = vst [vmem:[#allocation2 + $0x388] sm:$0xff] %v2013
        %2142 = vst [vmem:[#allocation2 + $0x390] sm:$0xff] %v2014
        %2143 = vst [vmem:[#allocation2 + $0x398] sm:$0xff] %v2015
        %2144 = vst [vmem:[#allocation2 + $0x3a0] sm:$0xff] %v2016
        %2145 = vst [vmem:[#allocation2 + $0x3a8] sm:$0xff] %v2017
        %2146 = vst [vmem:[#allocation2 + $0x3b0] sm:$0xff] %v2018
        %2147 = vst [vmem:[#allocation2 + $0x3b8] sm:$0xff] %v2019
        %2148 = vst [vmem:[#allocation2 + $0x3c0] sm:$0xff] %v2020
        %2149 = vst [vmem:[#allocation2 + $0x3c8] sm:$0xff] %v2021
        %2150 = vst [vmem:[#allocation2 + $0x3d0] sm:$0xff] %v2022
        %2151 = vst [vmem:[#allocation2 + $0x3d8] sm:$0xff] %v2023
        %2152 = vst [vmem:[#allocation2 + $0x3e0] sm:$0xff] %v2024
        %2153 = vst [vmem:[#allocation2 + $0x3e8] sm:$0xff] %v2025
        %2154 = vst [vmem:[#allocation2 + $0x3f0] sm:$0xff] %v2026
        %2155 = vst [vmem:[#allocation2 + $0x3f8] sm:$0xff] %v2027
      $region56: #{concat_feature.1} parent=47 // pred_fallthru
        _
      // Predicated region
      $region57: #{concat_feature.1} parent=47 // pred_check
        _
      $region58: #{concat_feature.1} parent=47 // pred_check_branch
        %2157 = sbr.rel (%p339) target = $region60
      $region59: #{concat_feature.1} parent=47 // pred_region
        %v2158 = vld [vmem:[#allocation2] sm:$0xff]
        %v2159 = vld [vmem:[#allocation2 + $0x8] sm:$0xff]
        %v2160 = vld [vmem:[#allocation2 + $0x10] sm:$0xff]
        %v2161 = vld [vmem:[#allocation2 + $0x18] sm:$0xff]
        %v2162 = vld [vmem:[#allocation2 + $0x20] sm:$0xff]
        %v2163 = vld [vmem:[#allocation2 + $0x28] sm:$0xff]
        %v2164 = vld [vmem:[#allocation2 + $0x30] sm:$0xff]
        %v2165 = vld [vmem:[#allocation2 + $0x38] sm:$0xff]
        %v2166 = vld [vmem:[#allocation2 + $0x40] sm:$0xff]
        %v2167 = vld [vmem:[#allocation2 + $0x48] sm:$0xff]
        %v2168 = vld [vmem:[#allocation2 + $0x50] sm:$0xff]
        %v2169 = vld [vmem:[#allocation2 + $0x58] sm:$0xff]
        %v2170 = vld [vmem:[#allocation2 + $0x60] sm:$0xff]
        %v2171 = vld [vmem:[#allocation2 + $0x68] sm:$0xff]
        %v2172 = vld [vmem:[#allocation2 + $0x70] sm:$0xff]
        %v2173 = vld [vmem:[#allocation2 + $0x78] sm:$0xff]
        %v2174 = vld [vmem:[#allocation2 + $0x80] sm:$0xff]
        %v2175 = vld [vmem:[#allocation2 + $0x88] sm:$0xff]
        %v2176 = vld [vmem:[#allocation2 + $0x90] sm:$0xff]
        %v2177 = vld [vmem:[#allocation2 + $0x98] sm:$0xff]
        %v2178 = vld [vmem:[#allocation2 + $0xa0] sm:$0xff]
        %v2179 = vld [vmem:[#allocation2 + $0xa8] sm:$0xff]
        %v2180 = vld [vmem:[#allocation2 + $0xb0] sm:$0xff]
        %v2181 = vld [vmem:[#allocation2 + $0xb8] sm:$0xff]
        %v2182 = vld [vmem:[#allocation2 + $0xc0] sm:$0xff]
        %v2183 = vld [vmem:[#allocation2 + $0xc8] sm:$0xff]
        %v2184 = vld [vmem:[#allocation2 + $0xd0] sm:$0xff]
        %v2185 = vld [vmem:[#allocation2 + $0xd8] sm:$0xff]
        %v2186 = vld [vmem:[#allocation2 + $0xe0] sm:$0xff]
        %v2187 = vld [vmem:[#allocation2 + $0xe8] sm:$0xff]
        %v2188 = vld [vmem:[#allocation2 + $0xf0] sm:$0xff]
        %v2189 = vld [vmem:[#allocation2 + $0xf8] sm:$0xff]
        %v2190 = vld [vmem:[#allocation2 + $0x100] sm:$0xff]
        %v2191 = vld [vmem:[#allocation2 + $0x108] sm:$0xff]
        %v2192 = vld [vmem:[#allocation2 + $0x110] sm:$0xff]
        %v2193 = vld [vmem:[#allocation2 + $0x118] sm:$0xff]
        %v2194 = vld [vmem:[#allocation2 + $0x120] sm:$0xff]
        %v2195 = vld [vmem:[#allocation2 + $0x128] sm:$0xff]
        %v2196 = vld [vmem:[#allocation2 + $0x130] sm:$0xff]
        %v2197 = vld [vmem:[#allocation2 + $0x138] sm:$0xff]
        %v2198 = vld [vmem:[#allocation2 + $0x140] sm:$0xff]
        %v2199 = vld [vmem:[#allocation2 + $0x148] sm:$0xff]
        %v2200 = vld [vmem:[#allocation2 + $0x150] sm:$0xff]
        %v2201 = vld [vmem:[#allocation2 + $0x158] sm:$0xff]
        %v2202 = vld [vmem:[#allocation2 + $0x160] sm:$0xff]
        %v2203 = vld [vmem:[#allocation2 + $0x168] sm:$0xff]
        %v2204 = vld [vmem:[#allocation2 + $0x170] sm:$0xff]
        %v2205 = vld [vmem:[#allocation2 + $0x178] sm:$0xff]
        %v2206 = vld [vmem:[#allocation2 + $0x180] sm:$0xff]
        %v2207 = vld [vmem:[#allocation2 + $0x188] sm:$0xff]
        %v2208 = vld [vmem:[#allocation2 + $0x190] sm:$0xff]
        %v2209 = vld [vmem:[#allocation2 + $0x198] sm:$0xff]
        %v2210 = vld [vmem:[#allocation2 + $0x1a0] sm:$0xff]
        %v2211 = vld [vmem:[#allocation2 + $0x1a8] sm:$0xff]
        %v2212 = vld [vmem:[#allocation2 + $0x1b0] sm:$0xff]
        %v2213 = vld [vmem:[#allocation2 + $0x1b8] sm:$0xff]
        %v2214 = vld [vmem:[#allocation2 + $0x1c0] sm:$0xff]
        %v2215 = vld [vmem:[#allocation2 + $0x1c8] sm:$0xff]
        %v2216 = vld [vmem:[#allocation2 + $0x1d0] sm:$0xff]
        %v2217 = vld [vmem:[#allocation2 + $0x1d8] sm:$0xff]
        %v2218 = vld [vmem:[#allocation2 + $0x1e0] sm:$0xff]
        %v2219 = vld [vmem:[#allocation2 + $0x1e8] sm:$0xff]
        %v2220 = vld [vmem:[#allocation2 + $0x1f0] sm:$0xff]
        %v2221 = vld [vmem:[#allocation2 + $0x1f8] sm:$0xff]
        %v2222 = vld [vmem:[#allocation2 + $0x200] sm:$0xff]
        %v2223 = vld [vmem:[#allocation2 + $0x208] sm:$0xff]
        %v2224 = vld [vmem:[#allocation2 + $0x210] sm:$0xff]
        %v2225 = vld [vmem:[#allocation2 + $0x218] sm:$0xff]
        %v2226 = vld [vmem:[#allocation2 + $0x220] sm:$0xff]
        %v2227 = vld [vmem:[#allocation2 + $0x228] sm:$0xff]
        %v2228 = vld [vmem:[#allocation2 + $0x230] sm:$0xff]
        %v2229 = vld [vmem:[#allocation2 + $0x238] sm:$0xff]
        %v2230 = vld [vmem:[#allocation2 + $0x240] sm:$0xff]
        %v2231 = vld [vmem:[#allocation2 + $0x248] sm:$0xff]
        %v2232 = vld [vmem:[#allocation2 + $0x250] sm:$0xff]
        %v2233 = vld [vmem:[#allocation2 + $0x258] sm:$0xff]
        %v2234 = vld [vmem:[#allocation2 + $0x260] sm:$0xff]
        %v2235 = vld [vmem:[#allocation2 + $0x268] sm:$0xff]
        %v2236 = vld [vmem:[#allocation2 + $0x270] sm:$0xff]
        %v2237 = vld [vmem:[#allocation2 + $0x278] sm:$0xff]
        %v2238 = vld [vmem:[#allocation2 + $0x280] sm:$0xff]
        %v2239 = vld [vmem:[#allocation2 + $0x288] sm:$0xff]
        %v2240 = vld [vmem:[#allocation2 + $0x290] sm:$0xff]
        %v2241 = vld [vmem:[#allocation2 + $0x298] sm:$0xff]
        %v2242 = vld [vmem:[#allocation2 + $0x2a0] sm:$0xff]
        %v2243 = vld [vmem:[#allocation2 + $0x2a8] sm:$0xff]
        %v2244 = vld [vmem:[#allocation2 + $0x2b0] sm:$0xff]
        %v2245 = vld [vmem:[#allocation2 + $0x2b8] sm:$0xff]
        %v2246 = vld [vmem:[#allocation2 + $0x2c0] sm:$0xff]
        %v2247 = vld [vmem:[#allocation2 + $0x2c8] sm:$0xff]
        %v2248 = vld [vmem:[#allocation2 + $0x2d0] sm:$0xff]
        %v2249 = vld [vmem:[#allocation2 + $0x2d8] sm:$0xff]
        %v2250 = vld [vmem:[#allocation2 + $0x2e0] sm:$0xff]
        %v2251 = vld [vmem:[#allocation2 + $0x2e8] sm:$0xff]
        %v2252 = vld [vmem:[#allocation2 + $0x2f0] sm:$0xff]
        %v2253 = vld [vmem:[#allocation2 + $0x2f8] sm:$0xff]
        %v2254 = vld [vmem:[#allocation2 + $0x300] sm:$0xff]
        %v2255 = vld [vmem:[#allocation2 + $0x308] sm:$0xff]
        %v2256 = vld [vmem:[#allocation2 + $0x310] sm:$0xff]
        %v2257 = vld [vmem:[#allocation2 + $0x318] sm:$0xff]
        %v2258 = vld [vmem:[#allocation2 + $0x320] sm:$0xff]
        %v2259 = vld [vmem:[#allocation2 + $0x328] sm:$0xff]
        %v2260 = vld [vmem:[#allocation2 + $0x330] sm:$0xff]
        %v2261 = vld [vmem:[#allocation2 + $0x338] sm:$0xff]
        %v2262 = vld [vmem:[#allocation2 + $0x340] sm:$0xff]
        %v2263 = vld [vmem:[#allocation2 + $0x348] sm:$0xff]
        %v2264 = vld [vmem:[#allocation2 + $0x350] sm:$0xff]
        %v2265 = vld [vmem:[#allocation2 + $0x358] sm:$0xff]
        %v2266 = vld [vmem:[#allocation2 + $0x360] sm:$0xff]
        %v2267 = vld [vmem:[#allocation2 + $0x368] sm:$0xff]
        %v2268 = vld [vmem:[#allocation2 + $0x370] sm:$0xff]
        %v2269 = vld [vmem:[#allocation2 + $0x378] sm:$0xff]
        %v2270 = vld [vmem:[#allocation2 + $0x380] sm:$0xff]
        %v2271 = vld [vmem:[#allocation2 + $0x388] sm:$0xff]
        %v2272 = vld [vmem:[#allocation2 + $0x390] sm:$0xff]
        %v2273 = vld [vmem:[#allocation2 + $0x398] sm:$0xff]
        %v2274 = vld [vmem:[#allocation2 + $0x3a0] sm:$0xff]
        %v2275 = vld [vmem:[#allocation2 + $0x3a8] sm:$0xff]
        %v2276 = vld [vmem:[#allocation2 + $0x3b0] sm:$0xff]
        %v2277 = vld [vmem:[#allocation2 + $0x3b8] sm:$0xff]
        %v2278 = vld [vmem:[#allocation2 + $0x3c0] sm:$0xff]
        %v2279 = vld [vmem:[#allocation2 + $0x3c8] sm:$0xff]
        %v2280 = vld [vmem:[#allocation2 + $0x3d0] sm:$0xff]
        %v2281 = vld [vmem:[#allocation2 + $0x3d8] sm:$0xff]
        %v2282 = vld [vmem:[#allocation2 + $0x3e0] sm:$0xff]
        %v2283 = vld [vmem:[#allocation2 + $0x3e8] sm:$0xff]
        %v2284 = vld [vmem:[#allocation2 + $0x3f0] sm:$0xff]
        %v2285 = vld [vmem:[#allocation2 + $0x3f8] sm:$0xff]
        %2286 = vmax.xlane.f32.xlu0 %v2158
        %v2287 = vpop.xlane.xlu0 %2286
        %2288 = vmax.xlane.f32.xlu0 %v2159
        %v2289 = vpop.xlane.xlu0 %2288
        %2290 = vmax.xlane.f32.xlu0 %v2160
        %v2291 = vpop.xlane.xlu0 %2290
        %2292 = vmax.xlane.f32.xlu0 %v2161
        %v2293 = vpop.xlane.xlu0 %2292
        %2294 = vmax.xlane.f32.xlu0 %v2162
        %v2295 = vpop.xlane.xlu0 %2294
        %2296 = vmax.xlane.f32.xlu0 %v2163
        %v2297 = vpop.xlane.xlu0 %2296
        %2298 = vmax.xlane.f32.xlu0 %v2164
        %v2299 = vpop.xlane.xlu0 %2298
        %2300 = vmax.xlane.f32.xlu0 %v2165
        %v2301 = vpop.xlane.xlu0 %2300
        %2302 = vmax.xlane.f32.xlu0 %v2166
        %v2303 = vpop.xlane.xlu0 %2302
        %2304 = vmax.xlane.f32.xlu0 %v2167
        %v2305 = vpop.xlane.xlu0 %2304
        %2306 = vmax.xlane.f32.xlu0 %v2168
        %v2307 = vpop.xlane.xlu0 %2306
        %2308 = vmax.xlane.f32.xlu0 %v2169
        %v2309 = vpop.xlane.xlu0 %2308
        %2310 = vmax.xlane.f32.xlu0 %v2170
        %v2311 = vpop.xlane.xlu0 %2310
        %2312 = vmax.xlane.f32.xlu0 %v2171
        %v2313 = vpop.xlane.xlu0 %2312
        %2314 = vmax.xlane.f32.xlu0 %v2172
        %v2315 = vpop.xlane.xlu0 %2314
        %2316 = vmax.xlane.f32.xlu0 %v2173
        %v2317 = vpop.xlane.xlu0 %2316
        %2318 = vmax.xlane.f32.xlu0 %v2174
        %v2319 = vpop.xlane.xlu0 %2318
        %2320 = vmax.xlane.f32.xlu0 %v2175
        %v2321 = vpop.xlane.xlu0 %2320
        %2322 = vmax.xlane.f32.xlu0 %v2176
        %v2323 = vpop.xlane.xlu0 %2322
        %2324 = vmax.xlane.f32.xlu0 %v2177
        %v2325 = vpop.xlane.xlu0 %2324
        %2326 = vmax.xlane.f32.xlu0 %v2178
        %v2327 = vpop.xlane.xlu0 %2326
        %2328 = vmax.xlane.f32.xlu0 %v2179
        %v2329 = vpop.xlane.xlu0 %2328
        %2330 = vmax.xlane.f32.xlu0 %v2180
        %v2331 = vpop.xlane.xlu0 %2330
        %2332 = vmax.xlane.f32.xlu0 %v2181
        %v2333 = vpop.xlane.xlu0 %2332
        %2334 = vmax.xlane.f32.xlu0 %v2182
        %v2335 = vpop.xlane.xlu0 %2334
        %2336 = vmax.xlane.f32.xlu0 %v2183
        %v2337 = vpop.xlane.xlu0 %2336
        %2338 = vmax.xlane.f32.xlu0 %v2184
        %v2339 = vpop.xlane.xlu0 %2338
        %2340 = vmax.xlane.f32.xlu0 %v2185
        %v2341 = vpop.xlane.xlu0 %2340
        %2342 = vmax.xlane.f32.xlu0 %v2186
        %v2343 = vpop.xlane.xlu0 %2342
        %2344 = vmax.xlane.f32.xlu0 %v2187
        %v2345 = vpop.xlane.xlu0 %2344
        %2346 = vmax.xlane.f32.xlu0 %v2188
        %v2347 = vpop.xlane.xlu0 %2346
        %2348 = vmax.xlane.f32.xlu0 %v2189
        %v2349 = vpop.xlane.xlu0 %2348
        %2350 = vmax.xlane.f32.xlu0 %v2190
        %v2351 = vpop.xlane.xlu0 %2350
        %2352 = vmax.xlane.f32.xlu0 %v2191
        %v2353 = vpop.xlane.xlu0 %2352
        %2354 = vmax.xlane.f32.xlu0 %v2192
        %v2355 = vpop.xlane.xlu0 %2354
        %2356 = vmax.xlane.f32.xlu0 %v2193
        %v2357 = vpop.xlane.xlu0 %2356
        %2358 = vmax.xlane.f32.xlu0 %v2194
        %v2359 = vpop.xlane.xlu0 %2358
        %2360 = vmax.xlane.f32.xlu0 %v2195
        %v2361 = vpop.xlane.xlu0 %2360
        %2362 = vmax.xlane.f32.xlu0 %v2196
        %v2363 = vpop.xlane.xlu0 %2362
        %2364 = vmax.xlane.f32.xlu0 %v2197
        %v2365 = vpop.xlane.xlu0 %2364
        %2366 = vmax.xlane.f32.xlu0 %v2198
        %v2367 = vpop.xlane.xlu0 %2366
        %2368 = vmax.xlane.f32.xlu0 %v2199
        %v2369 = vpop.xlane.xlu0 %2368
        %2370 = vmax.xlane.f32.xlu0 %v2200
        %v2371 = vpop.xlane.xlu0 %2370
        %2372 = vmax.xlane.f32.xlu0 %v2201
        %v2373 = vpop.xlane.xlu0 %2372
        %2374 = vmax.xlane.f32.xlu0 %v2202
        %v2375 = vpop.xlane.xlu0 %2374
        %2376 = vmax.xlane.f32.xlu0 %v2203
        %v2377 = vpop.xlane.xlu0 %2376
        %2378 = vmax.xlane.f32.xlu0 %v2204
        %v2379 = vpop.xlane.xlu0 %2378
        %2380 = vmax.xlane.f32.xlu0 %v2205
        %v2381 = vpop.xlane.xlu0 %2380
        %2382 = vmax.xlane.f32.xlu0 %v2206
        %v2383 = vpop.xlane.xlu0 %2382
        %2384 = vmax.xlane.f32.xlu0 %v2207
        %v2385 = vpop.xlane.xlu0 %2384
        %2386 = vmax.xlane.f32.xlu0 %v2208
        %v2387 = vpop.xlane.xlu0 %2386
        %2388 = vmax.xlane.f32.xlu0 %v2209
        %v2389 = vpop.xlane.xlu0 %2388
        %2390 = vmax.xlane.f32.xlu0 %v2210
        %v2391 = vpop.xlane.xlu0 %2390
        %2392 = vmax.xlane.f32.xlu0 %v2211
        %v2393 = vpop.xlane.xlu0 %2392
        %2394 = vmax.xlane.f32.xlu0 %v2212
        %v2395 = vpop.xlane.xlu0 %2394
        %2396 = vmax.xlane.f32.xlu0 %v2213
        %v2397 = vpop.xlane.xlu0 %2396
        %2398 = vmax.xlane.f32.xlu0 %v2214
        %v2399 = vpop.xlane.xlu0 %2398
        %2400 = vmax.xlane.f32.xlu0 %v2215
        %v2401 = vpop.xlane.xlu0 %2400
        %2402 = vmax.xlane.f32.xlu0 %v2216
        %v2403 = vpop.xlane.xlu0 %2402
        %2404 = vmax.xlane.f32.xlu0 %v2217
        %v2405 = vpop.xlane.xlu0 %2404
        %2406 = vmax.xlane.f32.xlu0 %v2218
        %v2407 = vpop.xlane.xlu0 %2406
        %2408 = vmax.xlane.f32.xlu0 %v2219
        %v2409 = vpop.xlane.xlu0 %2408
        %2410 = vmax.xlane.f32.xlu0 %v2220
        %v2411 = vpop.xlane.xlu0 %2410
        %2412 = vmax.xlane.f32.xlu0 %v2221
        %v2413 = vpop.xlane.xlu0 %2412
        %2414 = vmax.xlane.f32.xlu0 %v2222
        %v2415 = vpop.xlane.xlu0 %2414
        %2416 = vmax.xlane.f32.xlu0 %v2223
        %v2417 = vpop.xlane.xlu0 %2416
        %2418 = vmax.xlane.f32.xlu0 %v2224
        %v2419 = vpop.xlane.xlu0 %2418
        %2420 = vmax.xlane.f32.xlu0 %v2225
        %v2421 = vpop.xlane.xlu0 %2420
        %2422 = vmax.xlane.f32.xlu0 %v2226
        %v2423 = vpop.xlane.xlu0 %2422
        %2424 = vmax.xlane.f32.xlu0 %v2227
        %v2425 = vpop.xlane.xlu0 %2424
        %2426 = vmax.xlane.f32.xlu0 %v2228
        %v2427 = vpop.xlane.xlu0 %2426
        %2428 = vmax.xlane.f32.xlu0 %v2229
        %v2429 = vpop.xlane.xlu0 %2428
        %2430 = vmax.xlane.f32.xlu0 %v2230
        %v2431 = vpop.xlane.xlu0 %2430
        %2432 = vmax.xlane.f32.xlu0 %v2231
        %v2433 = vpop.xlane.xlu0 %2432
        %2434 = vmax.xlane.f32.xlu0 %v2232
        %v2435 = vpop.xlane.xlu0 %2434
        %2436 = vmax.xlane.f32.xlu0 %v2233
        %v2437 = vpop.xlane.xlu0 %2436
        %2438 = vmax.xlane.f32.xlu0 %v2234
        %v2439 = vpop.xlane.xlu0 %2438
        %2440 = vmax.xlane.f32.xlu0 %v2235
        %v2441 = vpop.xlane.xlu0 %2440
        %2442 = vmax.xlane.f32.xlu0 %v2236
        %v2443 = vpop.xlane.xlu0 %2442
        %2444 = vmax.xlane.f32.xlu0 %v2237
        %v2445 = vpop.xlane.xlu0 %2444
        %2446 = vmax.xlane.f32.xlu0 %v2238
        %v2447 = vpop.xlane.xlu0 %2446
        %2448 = vmax.xlane.f32.xlu0 %v2239
        %v2449 = vpop.xlane.xlu0 %2448
        %2450 = vmax.xlane.f32.xlu0 %v2240
        %v2451 = vpop.xlane.xlu0 %2450
        %2452 = vmax.xlane.f32.xlu0 %v2241
        %v2453 = vpop.xlane.xlu0 %2452
        %2454 = vmax.xlane.f32.xlu0 %v2242
        %v2455 = vpop.xlane.xlu0 %2454
        %2456 = vmax.xlane.f32.xlu0 %v2243
        %v2457 = vpop.xlane.xlu0 %2456
        %2458 = vmax.xlane.f32.xlu0 %v2244
        %v2459 = vpop.xlane.xlu0 %2458
        %2460 = vmax.xlane.f32.xlu0 %v2245
        %v2461 = vpop.xlane.xlu0 %2460
        %2462 = vmax.xlane.f32.xlu0 %v2246
        %v2463 = vpop.xlane.xlu0 %2462
        %2464 = vmax.xlane.f32.xlu0 %v2247
        %v2465 = vpop.xlane.xlu0 %2464
        %2466 = vmax.xlane.f32.xlu0 %v2248
        %v2467 = vpop.xlane.xlu0 %2466
        %2468 = vmax.xlane.f32.xlu0 %v2249
        %v2469 = vpop.xlane.xlu0 %2468
        %2470 = vmax.xlane.f32.xlu0 %v2250
        %v2471 = vpop.xlane.xlu0 %2470
        %2472 = vmax.xlane.f32.xlu0 %v2251
        %v2473 = vpop.xlane.xlu0 %2472
        %2474 = vmax.xlane.f32.xlu0 %v2252
        %v2475 = vpop.xlane.xlu0 %2474
        %2476 = vmax.xlane.f32.xlu0 %v2253
        %v2477 = vpop.xlane.xlu0 %2476
        %2478 = vmax.xlane.f32.xlu0 %v2254
        %v2479 = vpop.xlane.xlu0 %2478
        %2480 = vmax.xlane.f32.xlu0 %v2255
        %v2481 = vpop.xlane.xlu0 %2480
        %2482 = vmax.xlane.f32.xlu0 %v2256
        %v2483 = vpop.xlane.xlu0 %2482
        %2484 = vmax.xlane.f32.xlu0 %v2257
        %v2485 = vpop.xlane.xlu0 %2484
        %2486 = vmax.xlane.f32.xlu0 %v2258
        %v2487 = vpop.xlane.xlu0 %2486
        %2488 = vmax.xlane.f32.xlu0 %v2259
        %v2489 = vpop.xlane.xlu0 %2488
        %2490 = vmax.xlane.f32.xlu0 %v2260
        %v2491 = vpop.xlane.xlu0 %2490
        %2492 = vmax.xlane.f32.xlu0 %v2261
        %v2493 = vpop.xlane.xlu0 %2492
        %2494 = vmax.xlane.f32.xlu0 %v2262
        %v2495 = vpop.xlane.xlu0 %2494
        %2496 = vmax.xlane.f32.xlu0 %v2263
        %v2497 = vpop.xlane.xlu0 %2496
        %2498 = vmax.xlane.f32.xlu0 %v2264
        %v2499 = vpop.xlane.xlu0 %2498
        %2500 = vmax.xlane.f32.xlu0 %v2265
        %v2501 = vpop.xlane.xlu0 %2500
        %2502 = vmax.xlane.f32.xlu0 %v2266
        %v2503 = vpop.xlane.xlu0 %2502
        %2504 = vmax.xlane.f32.xlu0 %v2267
        %v2505 = vpop.xlane.xlu0 %2504
        %2506 = vmax.xlane.f32.xlu0 %v2268
        %v2507 = vpop.xlane.xlu0 %2506
        %2508 = vmax.xlane.f32.xlu0 %v2269
        %v2509 = vpop.xlane.xlu0 %2508
        %2510 = vmax.xlane.f32.xlu0 %v2270
        %v2511 = vpop.xlane.xlu0 %2510
        %2512 = vmax.xlane.f32.xlu0 %v2271
        %v2513 = vpop.xlane.xlu0 %2512
        %2514 = vmax.xlane.f32.xlu0 %v2272
        %v2515 = vpop.xlane.xlu0 %2514
        %2516 = vmax.xlane.f32.xlu0 %v2273
        %v2517 = vpop.xlane.xlu0 %2516
        %2518 = vmax.xlane.f32.xlu0 %v2274
        %v2519 = vpop.xlane.xlu0 %2518
        %2520 = vmax.xlane.f32.xlu0 %v2275
        %v2521 = vpop.xlane.xlu0 %2520
        %2522 = vmax.xlane.f32.xlu0 %v2276
        %v2523 = vpop.xlane.xlu0 %2522
        %2524 = vmax.xlane.f32.xlu0 %v2277
        %v2525 = vpop.xlane.xlu0 %2524
        %2526 = vmax.xlane.f32.xlu0 %v2278
        %v2527 = vpop.xlane.xlu0 %2526
        %2528 = vmax.xlane.f32.xlu0 %v2279
        %v2529 = vpop.xlane.xlu0 %2528
        %2530 = vmax.xlane.f32.xlu0 %v2280
        %v2531 = vpop.xlane.xlu0 %2530
        %2532 = vmax.xlane.f32.xlu0 %v2281
        %v2533 = vpop.xlane.xlu0 %2532
        %2534 = vmax.xlane.f32.xlu0 %v2282
        %v2535 = vpop.xlane.xlu0 %2534
        %2536 = vmax.xlane.f32.xlu0 %v2283
        %v2537 = vpop.xlane.xlu0 %2536
        %2538 = vmax.xlane.f32.xlu0 %v2284
        %v2539 = vpop.xlane.xlu0 %2538
        %2540 = vmax.xlane.f32.xlu0 %v2285
        %v2541 = vpop.xlane.xlu0 %2540
        %v2542 = vld [vmem:[%s6] sm:$0xff]
        %v2543 = vld [vmem:[%s6 + $0x8] sm:$0xff]
        %v2544 = vld [vmem:[%s6 + $0x10] sm:$0xff]
        %v2545 = vld [vmem:[%s6 + $0x18] sm:$0xff]
        %v2546 = vld [vmem:[%s6 + $0x20] sm:$0xff]
        %v2547 = vld [vmem:[%s6 + $0x28] sm:$0xff]
        %v2548 = vld [vmem:[%s6 + $0x30] sm:$0xff]
        %v2549 = vld [vmem:[%s6 + $0x38] sm:$0xff]
        %v2550 = vld [vmem:[%s6 + $0x40] sm:$0xff]
        %v2551 = vld [vmem:[%s6 + $0x48] sm:$0xff]
        %v2552 = vld [vmem:[%s6 + $0x50] sm:$0xff]
        %v2553 = vld [vmem:[%s6 + $0x58] sm:$0xff]
        %v2554 = vld [vmem:[%s6 + $0x60] sm:$0xff]
        %v2555 = vld [vmem:[%s6 + $0x68] sm:$0xff]
        %v2556 = vld [vmem:[%s6 + $0x70] sm:$0xff]
        %v2557 = vld [vmem:[%s6 + $0x78] sm:$0xff]
        %v2558 = vld [vmem:[%s6 + $0x80] sm:$0xff]
        %v2559 = vld [vmem:[%s6 + $0x88] sm:$0xff]
        %v2560 = vld [vmem:[%s6 + $0x90] sm:$0xff]
        %v2561 = vld [vmem:[%s6 + $0x98] sm:$0xff]
        %v2562 = vld [vmem:[%s6 + $0xa0] sm:$0xff]
        %v2563 = vld [vmem:[%s6 + $0xa8] sm:$0xff]
        %v2564 = vld [vmem:[%s6 + $0xb0] sm:$0xff]
        %v2565 = vld [vmem:[%s6 + $0xb8] sm:$0xff]
        %v2566 = vld [vmem:[%s6 + $0xc0] sm:$0xff]
        %v2567 = vld [vmem:[%s6 + $0xc8] sm:$0xff]
        %v2568 = vld [vmem:[%s6 + $0xd0] sm:$0xff]
        %v2569 = vld [vmem:[%s6 + $0xd8] sm:$0xff]
        %v2570 = vld [vmem:[%s6 + $0xe0] sm:$0xff]
        %v2571 = vld [vmem:[%s6 + $0xe8] sm:$0xff]
        %v2572 = vld [vmem:[%s6 + $0xf0] sm:$0xff]
        %v2573 = vld [vmem:[%s6 + $0xf8] sm:$0xff]
        %v2574 = vld [vmem:[%s6 + $0x100] sm:$0xff]
        %v2575 = vld [vmem:[%s6 + $0x108] sm:$0xff]
        %v2576 = vld [vmem:[%s6 + $0x110] sm:$0xff]
        %v2577 = vld [vmem:[%s6 + $0x118] sm:$0xff]
        %v2578 = vld [vmem:[%s6 + $0x120] sm:$0xff]
        %v2579 = vld [vmem:[%s6 + $0x128] sm:$0xff]
        %v2580 = vld [vmem:[%s6 + $0x130] sm:$0xff]
        %v2581 = vld [vmem:[%s6 + $0x138] sm:$0xff]
        %v2582 = vld [vmem:[%s6 + $0x140] sm:$0xff]
        %v2583 = vld [vmem:[%s6 + $0x148] sm:$0xff]
        %v2584 = vld [vmem:[%s6 + $0x150] sm:$0xff]
        %v2585 = vld [vmem:[%s6 + $0x158] sm:$0xff]
        %v2586 = vld [vmem:[%s6 + $0x160] sm:$0xff]
        %v2587 = vld [vmem:[%s6 + $0x168] sm:$0xff]
        %v2588 = vld [vmem:[%s6 + $0x170] sm:$0xff]
        %v2589 = vld [vmem:[%s6 + $0x178] sm:$0xff]
        %v2590 = vld [vmem:[%s6 + $0x180] sm:$0xff]
        %v2591 = vld [vmem:[%s6 + $0x188] sm:$0xff]
        %v2592 = vld [vmem:[%s6 + $0x190] sm:$0xff]
        %v2593 = vld [vmem:[%s6 + $0x198] sm:$0xff]
        %v2594 = vld [vmem:[%s6 + $0x1a0] sm:$0xff]
        %v2595 = vld [vmem:[%s6 + $0x1a8] sm:$0xff]
        %v2596 = vld [vmem:[%s6 + $0x1b0] sm:$0xff]
        %v2597 = vld [vmem:[%s6 + $0x1b8] sm:$0xff]
        %v2598 = vld [vmem:[%s6 + $0x1c0] sm:$0xff]
        %v2599 = vld [vmem:[%s6 + $0x1c8] sm:$0xff]
        %v2600 = vld [vmem:[%s6 + $0x1d0] sm:$0xff]
        %v2601 = vld [vmem:[%s6 + $0x1d8] sm:$0xff]
        %v2602 = vld [vmem:[%s6 + $0x1e0] sm:$0xff]
        %v2603 = vld [vmem:[%s6 + $0x1e8] sm:$0xff]
        %v2604 = vld [vmem:[%s6 + $0x1f0] sm:$0xff]
        %v2605 = vld [vmem:[%s6 + $0x1f8] sm:$0xff]
        %v2606 = vld [vmem:[%s6 + $0x200] sm:$0xff]
        %v2607 = vld [vmem:[%s6 + $0x208] sm:$0xff]
        %v2608 = vld [vmem:[%s6 + $0x210] sm:$0xff]
        %v2609 = vld [vmem:[%s6 + $0x218] sm:$0xff]
        %v2610 = vld [vmem:[%s6 + $0x220] sm:$0xff]
        %v2611 = vld [vmem:[%s6 + $0x228] sm:$0xff]
        %v2612 = vld [vmem:[%s6 + $0x230] sm:$0xff]
        %v2613 = vld [vmem:[%s6 + $0x238] sm:$0xff]
        %v2614 = vld [vmem:[%s6 + $0x240] sm:$0xff]
        %v2615 = vld [vmem:[%s6 + $0x248] sm:$0xff]
        %v2616 = vld [vmem:[%s6 + $0x250] sm:$0xff]
        %v2617 = vld [vmem:[%s6 + $0x258] sm:$0xff]
        %v2618 = vld [vmem:[%s6 + $0x260] sm:$0xff]
        %v2619 = vld [vmem:[%s6 + $0x268] sm:$0xff]
        %v2620 = vld [vmem:[%s6 + $0x270] sm:$0xff]
        %v2621 = vld [vmem:[%s6 + $0x278] sm:$0xff]
        %v2622 = vld [vmem:[%s6 + $0x280] sm:$0xff]
        %v2623 = vld [vmem:[%s6 + $0x288] sm:$0xff]
        %v2624 = vld [vmem:[%s6 + $0x290] sm:$0xff]
        %v2625 = vld [vmem:[%s6 + $0x298] sm:$0xff]
        %v2626 = vld [vmem:[%s6 + $0x2a0] sm:$0xff]
        %v2627 = vld [vmem:[%s6 + $0x2a8] sm:$0xff]
        %v2628 = vld [vmem:[%s6 + $0x2b0] sm:$0xff]
        %v2629 = vld [vmem:[%s6 + $0x2b8] sm:$0xff]
        %v2630 = vld [vmem:[%s6 + $0x2c0] sm:$0xff]
        %v2631 = vld [vmem:[%s6 + $0x2c8] sm:$0xff]
        %v2632 = vld [vmem:[%s6 + $0x2d0] sm:$0xff]
        %v2633 = vld [vmem:[%s6 + $0x2d8] sm:$0xff]
        %v2634 = vld [vmem:[%s6 + $0x2e0] sm:$0xff]
        %v2635 = vld [vmem:[%s6 + $0x2e8] sm:$0xff]
        %v2636 = vld [vmem:[%s6 + $0x2f0] sm:$0xff]
        %v2637 = vld [vmem:[%s6 + $0x2f8] sm:$0xff]
        %v2638 = vld [vmem:[%s6 + $0x300] sm:$0xff]
        %v2639 = vld [vmem:[%s6 + $0x308] sm:$0xff]
        %v2640 = vld [vmem:[%s6 + $0x310] sm:$0xff]
        %v2641 = vld [vmem:[%s6 + $0x318] sm:$0xff]
        %v2642 = vld [vmem:[%s6 + $0x320] sm:$0xff]
        %v2643 = vld [vmem:[%s6 + $0x328] sm:$0xff]
        %v2644 = vld [vmem:[%s6 + $0x330] sm:$0xff]
        %v2645 = vld [vmem:[%s6 + $0x338] sm:$0xff]
        %v2646 = vld [vmem:[%s6 + $0x340] sm:$0xff]
        %v2647 = vld [vmem:[%s6 + $0x348] sm:$0xff]
        %v2648 = vld [vmem:[%s6 + $0x350] sm:$0xff]
        %v2649 = vld [vmem:[%s6 + $0x358] sm:$0xff]
        %v2650 = vld [vmem:[%s6 + $0x360] sm:$0xff]
        %v2651 = vld [vmem:[%s6 + $0x368] sm:$0xff]
        %v2652 = vld [vmem:[%s6 + $0x370] sm:$0xff]
        %v2653 = vld [vmem:[%s6 + $0x378] sm:$0xff]
        %v2654 = vld [vmem:[%s6 + $0x380] sm:$0xff]
        %v2655 = vld [vmem:[%s6 + $0x388] sm:$0xff]
        %v2656 = vld [vmem:[%s6 + $0x390] sm:$0xff]
        %v2657 = vld [vmem:[%s6 + $0x398] sm:$0xff]
        %v2658 = vld [vmem:[%s6 + $0x3a0] sm:$0xff]
        %v2659 = vld [vmem:[%s6 + $0x3a8] sm:$0xff]
        %v2660 = vld [vmem:[%s6 + $0x3b0] sm:$0xff]
        %v2661 = vld [vmem:[%s6 + $0x3b8] sm:$0xff]
        %v2662 = vld [vmem:[%s6 + $0x3c0] sm:$0xff]
        %v2663 = vld [vmem:[%s6 + $0x3c8] sm:$0xff]
        %v2664 = vld [vmem:[%s6 + $0x3d0] sm:$0xff]
        %v2665 = vld [vmem:[%s6 + $0x3d8] sm:$0xff]
        %v2666 = vld [vmem:[%s6 + $0x3e0] sm:$0xff]
        %v2667 = vld [vmem:[%s6 + $0x3e8] sm:$0xff]
        %v2668 = vld [vmem:[%s6 + $0x3f0] sm:$0xff]
        %v2669 = vld [vmem:[%s6 + $0x3f8] sm:$0xff]
        %v2670 = vadd.f32 %v2287, %v2542
        %v2671 = vadd.f32 %v2289, %v2543
        %v2672 = vadd.f32 %v2291, %v2544
        %v2673 = vadd.f32 %v2293, %v2545
        %v2674 = vadd.f32 %v2295, %v2546
        %v2675 = vadd.f32 %v2297, %v2547
        %v2676 = vadd.f32 %v2299, %v2548
        %v2677 = vadd.f32 %v2301, %v2549
        %v2678 = vadd.f32 %v2303, %v2550
        %v2679 = vadd.f32 %v2305, %v2551
        %v2680 = vadd.f32 %v2307, %v2552
        %v2681 = vadd.f32 %v2309, %v2553
        %v2682 = vadd.f32 %v2311, %v2554
        %v2683 = vadd.f32 %v2313, %v2555
        %v2684 = vadd.f32 %v2315, %v2556
        %v2685 = vadd.f32 %v2317, %v2557
        %v2686 = vadd.f32 %v2319, %v2558
        %v2687 = vadd.f32 %v2321, %v2559
        %v2688 = vadd.f32 %v2323, %v2560
        %v2689 = vadd.f32 %v2325, %v2561
        %v2690 = vadd.f32 %v2327, %v2562
        %v2691 = vadd.f32 %v2329, %v2563
        %v2692 = vadd.f32 %v2331, %v2564
        %v2693 = vadd.f32 %v2333, %v2565
        %v2694 = vadd.f32 %v2335, %v2566
        %v2695 = vadd.f32 %v2337, %v2567
        %v2696 = vadd.f32 %v2339, %v2568
        %v2697 = vadd.f32 %v2341, %v2569
        %v2698 = vadd.f32 %v2343, %v2570
        %v2699 = vadd.f32 %v2345, %v2571
        %v2700 = vadd.f32 %v2347, %v2572
        %v2701 = vadd.f32 %v2349, %v2573
        %v2702 = vadd.f32 %v2351, %v2574
        %v2703 = vadd.f32 %v2353, %v2575
        %v2704 = vadd.f32 %v2355, %v2576
        %v2705 = vadd.f32 %v2357, %v2577
        %v2706 = vadd.f32 %v2359, %v2578
        %v2707 = vadd.f32 %v2361, %v2579
        %v2708 = vadd.f32 %v2363, %v2580
        %v2709 = vadd.f32 %v2365, %v2581
        %v2710 = vadd.f32 %v2367, %v2582
        %v2711 = vadd.f32 %v2369, %v2583
        %v2712 = vadd.f32 %v2371, %v2584
        %v2713 = vadd.f32 %v2373, %v2585
        %v2714 = vadd.f32 %v2375, %v2586
        %v2715 = vadd.f32 %v2377, %v2587
        %v2716 = vadd.f32 %v2379, %v2588
        %v2717 = vadd.f32 %v2381, %v2589
        %v2718 = vadd.f32 %v2383, %v2590
        %v2719 = vadd.f32 %v2385, %v2591
        %v2720 = vadd.f32 %v2387, %v2592
        %v2721 = vadd.f32 %v2389, %v2593
        %v2722 = vadd.f32 %v2391, %v2594
        %v2723 = vadd.f32 %v2393, %v2595
        %v2724 = vadd.f32 %v2395, %v2596
        %v2725 = vadd.f32 %v2397, %v2597
        %v2726 = vadd.f32 %v2399, %v2598
        %v2727 = vadd.f32 %v2401, %v2599
        %v2728 = vadd.f32 %v2403, %v2600
        %v2729 = vadd.f32 %v2405, %v2601
        %v2730 = vadd.f32 %v2407, %v2602
        %v2731 = vadd.f32 %v2409, %v2603
        %v2732 = vadd.f32 %v2411, %v2604
        %v2733 = vadd.f32 %v2413, %v2605
        %v2734 = vadd.f32 %v2415, %v2606
        %v2735 = vadd.f32 %v2417, %v2607
        %v2736 = vadd.f32 %v2419, %v2608
        %v2737 = vadd.f32 %v2421, %v2609
        %v2738 = vadd.f32 %v2423, %v2610
        %v2739 = vadd.f32 %v2425, %v2611
        %v2740 = vadd.f32 %v2427, %v2612
        %v2741 = vadd.f32 %v2429, %v2613
        %v2742 = vadd.f32 %v2431, %v2614
        %v2743 = vadd.f32 %v2433, %v2615
        %v2744 = vadd.f32 %v2435, %v2616
        %v2745 = vadd.f32 %v2437, %v2617
        %v2746 = vadd.f32 %v2439, %v2618
        %v2747 = vadd.f32 %v2441, %v2619
        %v2748 = vadd.f32 %v2443, %v2620
        %v2749 = vadd.f32 %v2445, %v2621
        %v2750 = vadd.f32 %v2447, %v2622
        %v2751 = vadd.f32 %v2449, %v2623
        %v2752 = vadd.f32 %v2451, %v2624
        %v2753 = vadd.f32 %v2453, %v2625
        %v2754 = vadd.f32 %v2455, %v2626
        %v2755 = vadd.f32 %v2457, %v2627
        %v2756 = vadd.f32 %v2459, %v2628
        %v2757 = vadd.f32 %v2461, %v2629
        %v2758 = vadd.f32 %v2463, %v2630
        %v2759 = vadd.f32 %v2465, %v2631
        %v2760 = vadd.f32 %v2467, %v2632
        %v2761 = vadd.f32 %v2469, %v2633
        %v2762 = vadd.f32 %v2471, %v2634
        %v2763 = vadd.f32 %v2473, %v2635
        %v2764 = vadd.f32 %v2475, %v2636
        %v2765 = vadd.f32 %v2477, %v2637
        %v2766 = vadd.f32 %v2479, %v2638
        %v2767 = vadd.f32 %v2481, %v2639
        %v2768 = vadd.f32 %v2483, %v2640
        %v2769 = vadd.f32 %v2485, %v2641
        %v2770 = vadd.f32 %v2487, %v2642
        %v2771 = vadd.f32 %v2489, %v2643
        %v2772 = vadd.f32 %v2491, %v2644
        %v2773 = vadd.f32 %v2493, %v2645
        %v2774 = vadd.f32 %v2495, %v2646
        %v2775 = vadd.f32 %v2497, %v2647
        %v2776 = vadd.f32 %v2499, %v2648
        %v2777 = vadd.f32 %v2501, %v2649
        %v2778 = vadd.f32 %v2503, %v2650
        %v2779 = vadd.f32 %v2505, %v2651
        %v2780 = vadd.f32 %v2507, %v2652
        %v2781 = vadd.f32 %v2509, %v2653
        %v2782 = vadd.f32 %v2511, %v2654
        %v2783 = vadd.f32 %v2513, %v2655
        %v2784 = vadd.f32 %v2515, %v2656
        %v2785 = vadd.f32 %v2517, %v2657
        %v2786 = vadd.f32 %v2519, %v2658
        %v2787 = vadd.f32 %v2521, %v2659
        %v2788 = vadd.f32 %v2523, %v2660
        %v2789 = vadd.f32 %v2525, %v2661
        %v2790 = vadd.f32 %v2527, %v2662
        %v2791 = vadd.f32 %v2529, %v2663
        %v2792 = vadd.f32 %v2531, %v2664
        %v2793 = vadd.f32 %v2533, %v2665
        %v2794 = vadd.f32 %v2535, %v2666
        %v2795 = vadd.f32 %v2537, %v2667
        %v2796 = vadd.f32 %v2539, %v2668
        %v2797 = vadd.f32 %v2541, %v2669
        %vm2798 = vcmask 7168
        %2799 = vst.msk [vmem:[#allocation3] sm:$0xff] %vm2798, %v2670
        %2800 = vst.msk [vmem:[#allocation3 + $0x8] sm:$0xff] %vm2798, %v2671
        %2801 = vst.msk [vmem:[#allocation3 + $0x10] sm:$0xff] %vm2798, %v2672
        %2802 = vst.msk [vmem:[#allocation3 + $0x18] sm:$0xff] %vm2798, %v2673
        %2803 = vst.msk [vmem:[#allocation3 + $0x20] sm:$0xff] %vm2798, %v2674
        %2804 = vst.msk [vmem:[#allocation3 + $0x28] sm:$0xff] %vm2798, %v2675
        %2805 = vst.msk [vmem:[#allocation3 + $0x30] sm:$0xff] %vm2798, %v2676
        %2806 = vst.msk [vmem:[#allocation3 + $0x38] sm:$0xff] %vm2798, %v2677
        %2807 = vst.msk [vmem:[#allocation3 + $0x40] sm:$0xff] %vm2798, %v2678
        %2808 = vst.msk [vmem:[#allocation3 + $0x48] sm:$0xff] %vm2798, %v2679
        %2809 = vst.msk [vmem:[#allocation3 + $0x50] sm:$0xff] %vm2798, %v2680
        %2810 = vst.msk [vmem:[#allocation3 + $0x58] sm:$0xff] %vm2798, %v2681
        %2811 = vst.msk [vmem:[#allocation3 + $0x60] sm:$0xff] %vm2798, %v2682
        %2812 = vst.msk [vmem:[#allocation3 + $0x68] sm:$0xff] %vm2798, %v2683
        %2813 = vst.msk [vmem:[#allocation3 + $0x70] sm:$0xff] %vm2798, %v2684
        %2814 = vst.msk [vmem:[#allocation3 + $0x78] sm:$0xff] %vm2798, %v2685
        %2815 = vst.msk [vmem:[#allocation3 + $0x80] sm:$0xff] %vm2798, %v2686
        %2816 = vst.msk [vmem:[#allocation3 + $0x88] sm:$0xff] %vm2798, %v2687
        %2817 = vst.msk [vmem:[#allocation3 + $0x90] sm:$0xff] %vm2798, %v2688
        %2818 = vst.msk [vmem:[#allocation3 + $0x98] sm:$0xff] %vm2798, %v2689
        %2819 = vst.msk [vmem:[#allocation3 + $0xa0] sm:$0xff] %vm2798, %v2690
        %2820 = vst.msk [vmem:[#allocation3 + $0xa8] sm:$0xff] %vm2798, %v2691
        %2821 = vst.msk [vmem:[#allocation3 + $0xb0] sm:$0xff] %vm2798, %v2692
        %2822 = vst.msk [vmem:[#allocation3 + $0xb8] sm:$0xff] %vm2798, %v2693
        %2823 = vst.msk [vmem:[#allocation3 + $0xc0] sm:$0xff] %vm2798, %v2694
        %2824 = vst.msk [vmem:[#allocation3 + $0xc8] sm:$0xff] %vm2798, %v2695
        %2825 = vst.msk [vmem:[#allocation3 + $0xd0] sm:$0xff] %vm2798, %v2696
        %2826 = vst.msk [vmem:[#allocation3 + $0xd8] sm:$0xff] %vm2798, %v2697
        %2827 = vst.msk [vmem:[#allocation3 + $0xe0] sm:$0xff] %vm2798, %v2698
        %2828 = vst.msk [vmem:[#allocation3 + $0xe8] sm:$0xff] %vm2798, %v2699
        %2829 = vst.msk [vmem:[#allocation3 + $0xf0] sm:$0xff] %vm2798, %v2700
        %2830 = vst.msk [vmem:[#allocation3 + $0xf8] sm:$0xff] %vm2798, %v2701
        %2831 = vst.msk [vmem:[#allocation3 + $0x100] sm:$0xff] %vm2798, %v2702
        %2832 = vst.msk [vmem:[#allocation3 + $0x108] sm:$0xff] %vm2798, %v2703
        %2833 = vst.msk [vmem:[#allocation3 + $0x110] sm:$0xff] %vm2798, %v2704
        %2834 = vst.msk [vmem:[#allocation3 + $0x118] sm:$0xff] %vm2798, %v2705
        %2835 = vst.msk [vmem:[#allocation3 + $0x120] sm:$0xff] %vm2798, %v2706
        %2836 = vst.msk [vmem:[#allocation3 + $0x128] sm:$0xff] %vm2798, %v2707
        %2837 = vst.msk [vmem:[#allocation3 + $0x130] sm:$0xff] %vm2798, %v2708
        %2838 = vst.msk [vmem:[#allocation3 + $0x138] sm:$0xff] %vm2798, %v2709
        %2839 = vst.msk [vmem:[#allocation3 + $0x140] sm:$0xff] %vm2798, %v2710
        %2840 = vst.msk [vmem:[#allocation3 + $0x148] sm:$0xff] %vm2798, %v2711
        %2841 = vst.msk [vmem:[#allocation3 + $0x150] sm:$0xff] %vm2798, %v2712
        %2842 = vst.msk [vmem:[#allocation3 + $0x158] sm:$0xff] %vm2798, %v2713
        %2843 = vst.msk [vmem:[#allocation3 + $0x160] sm:$0xff] %vm2798, %v2714
        %2844 = vst.msk [vmem:[#allocation3 + $0x168] sm:$0xff] %vm2798, %v2715
        %2845 = vst.msk [vmem:[#allocation3 + $0x170] sm:$0xff] %vm2798, %v2716
        %2846 = vst.msk [vmem:[#allocation3 + $0x178] sm:$0xff] %vm2798, %v2717
        %2847 = vst.msk [vmem:[#allocation3 + $0x180] sm:$0xff] %vm2798, %v2718
        %2848 = vst.msk [vmem:[#allocation3 + $0x188] sm:$0xff] %vm2798, %v2719
        %2849 = vst.msk [vmem:[#allocation3 + $0x190] sm:$0xff] %vm2798, %v2720
        %2850 = vst.msk [vmem:[#allocation3 + $0x198] sm:$0xff] %vm2798, %v2721
        %2851 = vst.msk [vmem:[#allocation3 + $0x1a0] sm:$0xff] %vm2798, %v2722
        %2852 = vst.msk [vmem:[#allocation3 + $0x1a8] sm:$0xff] %vm2798, %v2723
        %2853 = vst.msk [vmem:[#allocation3 + $0x1b0] sm:$0xff] %vm2798, %v2724
        %2854 = vst.msk [vmem:[#allocation3 + $0x1b8] sm:$0xff] %vm2798, %v2725
        %2855 = vst.msk [vmem:[#allocation3 + $0x1c0] sm:$0xff] %vm2798, %v2726
        %2856 = vst.msk [vmem:[#allocation3 + $0x1c8] sm:$0xff] %vm2798, %v2727
        %2857 = vst.msk [vmem:[#allocation3 + $0x1d0] sm:$0xff] %vm2798, %v2728
        %2858 = vst.msk [vmem:[#allocation3 + $0x1d8] sm:$0xff] %vm2798, %v2729
        %2859 = vst.msk [vmem:[#allocation3 + $0x1e0] sm:$0xff] %vm2798, %v2730
        %2860 = vst.msk [vmem:[#allocation3 + $0x1e8] sm:$0xff] %vm2798, %v2731
        %2861 = vst.msk [vmem:[#allocation3 + $0x1f0] sm:$0xff] %vm2798, %v2732
        %2862 = vst.msk [vmem:[#allocation3 + $0x1f8] sm:$0xff] %vm2798, %v2733
        %2863 = vst.msk [vmem:[#allocation3 + $0x200] sm:$0xff] %vm2798, %v2734
        %2864 = vst.msk [vmem:[#allocation3 + $0x208] sm:$0xff] %vm2798, %v2735
        %2865 = vst.msk [vmem:[#allocation3 + $0x210] sm:$0xff] %vm2798, %v2736
        %2866 = vst.msk [vmem:[#allocation3 + $0x218] sm:$0xff] %vm2798, %v2737
        %2867 = vst.msk [vmem:[#allocation3 + $0x220] sm:$0xff] %vm2798, %v2738
        %2868 = vst.msk [vmem:[#allocation3 + $0x228] sm:$0xff] %vm2798, %v2739
        %2869 = vst.msk [vmem:[#allocation3 + $0x230] sm:$0xff] %vm2798, %v2740
        %2870 = vst.msk [vmem:[#allocation3 + $0x238] sm:$0xff] %vm2798, %v2741
        %2871 = vst.msk [vmem:[#allocation3 + $0x240] sm:$0xff] %vm2798, %v2742
        %2872 = vst.msk [vmem:[#allocation3 + $0x248] sm:$0xff] %vm2798, %v2743
        %2873 = vst.msk [vmem:[#allocation3 + $0x250] sm:$0xff] %vm2798, %v2744
        %2874 = vst.msk [vmem:[#allocation3 + $0x258] sm:$0xff] %vm2798, %v2745
        %2875 = vst.msk [vmem:[#allocation3 + $0x260] sm:$0xff] %vm2798, %v2746
        %2876 = vst.msk [vmem:[#allocation3 + $0x268] sm:$0xff] %vm2798, %v2747
        %2877 = vst.msk [vmem:[#allocation3 + $0x270] sm:$0xff] %vm2798, %v2748
        %2878 = vst.msk [vmem:[#allocation3 + $0x278] sm:$0xff] %vm2798, %v2749
        %2879 = vst.msk [vmem:[#allocation3 + $0x280] sm:$0xff] %vm2798, %v2750
        %2880 = vst.msk [vmem:[#allocation3 + $0x288] sm:$0xff] %vm2798, %v2751
        %2881 = vst.msk [vmem:[#allocation3 + $0x290] sm:$0xff] %vm2798, %v2752
        %2882 = vst.msk [vmem:[#allocation3 + $0x298] sm:$0xff] %vm2798, %v2753
        %2883 = vst.msk [vmem:[#allocation3 + $0x2a0] sm:$0xff] %vm2798, %v2754
        %2884 = vst.msk [vmem:[#allocation3 + $0x2a8] sm:$0xff] %vm2798, %v2755
        %2885 = vst.msk [vmem:[#allocation3 + $0x2b0] sm:$0xff] %vm2798, %v2756
        %2886 = vst.msk [vmem:[#allocation3 + $0x2b8] sm:$0xff] %vm2798, %v2757
        %2887 = vst.msk [vmem:[#allocation3 + $0x2c0] sm:$0xff] %vm2798, %v2758
        %2888 = vst.msk [vmem:[#allocation3 + $0x2c8] sm:$0xff] %vm2798, %v2759
        %2889 = vst.msk [vmem:[#allocation3 + $0x2d0] sm:$0xff] %vm2798, %v2760
        %2890 = vst.msk [vmem:[#allocation3 + $0x2d8] sm:$0xff] %vm2798, %v2761
        %2891 = vst.msk [vmem:[#allocation3 + $0x2e0] sm:$0xff] %vm2798, %v2762
        %2892 = vst.msk [vmem:[#allocation3 + $0x2e8] sm:$0xff] %vm2798, %v2763
        %2893 = vst.msk [vmem:[#allocation3 + $0x2f0] sm:$0xff] %vm2798, %v2764
        %2894 = vst.msk [vmem:[#allocation3 + $0x2f8] sm:$0xff] %vm2798, %v2765
        %2895 = vst.msk [vmem:[#allocation3 + $0x300] sm:$0xff] %vm2798, %v2766
        %2896 = vst.msk [vmem:[#allocation3 + $0x308] sm:$0xff] %vm2798, %v2767
        %2897 = vst.msk [vmem:[#allocation3 + $0x310] sm:$0xff] %vm2798, %v2768
        %2898 = vst.msk [vmem:[#allocation3 + $0x318] sm:$0xff] %vm2798, %v2769
        %2899 = vst.msk [vmem:[#allocation3 + $0x320] sm:$0xff] %vm2798, %v2770
        %2900 = vst.msk [vmem:[#allocation3 + $0x328] sm:$0xff] %vm2798, %v2771
        %2901 = vst.msk [vmem:[#allocation3 + $0x330] sm:$0xff] %vm2798, %v2772
        %2902 = vst.msk [vmem:[#allocation3 + $0x338] sm:$0xff] %vm2798, %v2773
        %2903 = vst.msk [vmem:[#allocation3 + $0x340] sm:$0xff] %vm2798, %v2774
        %2904 = vst.msk [vmem:[#allocation3 + $0x348] sm:$0xff] %vm2798, %v2775
        %2905 = vst.msk [vmem:[#allocation3 + $0x350] sm:$0xff] %vm2798, %v2776
        %2906 = vst.msk [vmem:[#allocation3 + $0x358] sm:$0xff] %vm2798, %v2777
        %2907 = vst.msk [vmem:[#allocation3 + $0x360] sm:$0xff] %vm2798, %v2778
        %2908 = vst.msk [vmem:[#allocation3 + $0x368] sm:$0xff] %vm2798, %v2779
        %2909 = vst.msk [vmem:[#allocation3 + $0x370] sm:$0xff] %vm2798, %v2780
        %2910 = vst.msk [vmem:[#allocation3 + $0x378] sm:$0xff] %vm2798, %v2781
        %2911 = vst.msk [vmem:[#allocation3 + $0x380] sm:$0xff] %vm2798, %v2782
        %2912 = vst.msk [vmem:[#allocation3 + $0x388] sm:$0xff] %vm2798, %v2783
        %2913 = vst.msk [vmem:[#allocation3 + $0x390] sm:$0xff] %vm2798, %v2784
        %2914 = vst.msk [vmem:[#allocation3 + $0x398] sm:$0xff] %vm2798, %v2785
        %2915 = vst.msk [vmem:[#allocation3 + $0x3a0] sm:$0xff] %vm2798, %v2786
        %2916 = vst.msk [vmem:[#allocation3 + $0x3a8] sm:$0xff] %vm2798, %v2787
        %2917 = vst.msk [vmem:[#allocation3 + $0x3b0] sm:$0xff] %vm2798, %v2788
        %2918 = vst.msk [vmem:[#allocation3 + $0x3b8] sm:$0xff] %vm2798, %v2789
        %2919 = vst.msk [vmem:[#allocation3 + $0x3c0] sm:$0xff] %vm2798, %v2790
        %2920 = vst.msk [vmem:[#allocation3 + $0x3c8] sm:$0xff] %vm2798, %v2791
        %2921 = vst.msk [vmem:[#allocation3 + $0x3d0] sm:$0xff] %vm2798, %v2792
        %2922 = vst.msk [vmem:[#allocation3 + $0x3d8] sm:$0xff] %vm2798, %v2793
        %2923 = vst.msk [vmem:[#allocation3 + $0x3e0] sm:$0xff] %vm2798, %v2794
        %2924 = vst.msk [vmem:[#allocation3 + $0x3e8] sm:$0xff] %vm2798, %v2795
        %2925 = vst.msk [vmem:[#allocation3 + $0x3f0] sm:$0xff] %vm2798, %v2796
        %2926 = vst.msk [vmem:[#allocation3 + $0x3f8] sm:$0xff] %vm2798, %v2797
      $region60: #{concat_feature.1} parent=47 // pred_fallthru
        _
      %p2927 = scmp.eq.s32.totalorder %s24, 1
      // Predicated region
      $region61: #{concat_feature.1} parent=47 // pred_check
        %p2928 = pneg %p2927
      $region62: #{concat_feature.1} parent=47 // pred_check_branch
        %2930 = sbr.rel (%p2928) target = $region64
      $region63: #{concat_feature.1} parent=47 // pred_region
        %2932 = vset.pattern.permute.xlu0 0
        %2933 = vperm.xlu0 %2932, %v321
        %v2934 = vpop.permute.xlu0 %2933
        %2937 = vset.pattern.permute.xlu0 0
        %2938 = vperm.xlu0 %2937, %v322
        %v2939 = vpop.permute.xlu0 %2938
        %2942 = vset.pattern.permute.xlu0 0
        %2943 = vperm.xlu0 %2942, %v323
        %v2944 = vpop.permute.xlu0 %2943
        %2947 = vset.pattern.permute.xlu0 0
        %2948 = vperm.xlu0 %2947, %v324
        %v2949 = vpop.permute.xlu0 %2948
        %2952 = vset.pattern.permute.xlu0 0
        %2953 = vperm.xlu0 %2952, %v325
        %v2954 = vpop.permute.xlu0 %2953
        %2957 = vset.pattern.permute.xlu0 0
        %2958 = vperm.xlu0 %2957, %v326
        %v2959 = vpop.permute.xlu0 %2958
        %2962 = vset.pattern.permute.xlu0 0
        %2963 = vperm.xlu0 %2962, %v327
        %v2964 = vpop.permute.xlu0 %2963
        %2967 = vset.pattern.permute.xlu0 0
        %2968 = vperm.xlu0 %2967, %v328
        %v2969 = vpop.permute.xlu0 %2968
        %v2971 = vperm.slane %v320, 0
        %v2972 = vmul.f32 %v2934, %v2971
        %v2973 = vmul.f32 %v2939, %v2971
        %v2974 = vmul.f32 %v2944, %v2971
        %v2975 = vmul.f32 %v2949, %v2971
        %v2976 = vmul.f32 %v2954, %v2971
        %v2977 = vmul.f32 %v2959, %v2971
        %v2978 = vmul.f32 %v2964, %v2971
        %v2979 = vmul.f32 %v2969, %v2971
        %2980 = vset.pattern.permute.xlu0 1
        %2981 = vperm.xlu0 %2980, %v321
        %v2982 = vpop.permute.xlu0 %2981
        %2984 = vset.pattern.permute.xlu0 1
        %2985 = vperm.xlu0 %2984, %v322
        %v2986 = vpop.permute.xlu0 %2985
        %2988 = vset.pattern.permute.xlu0 1
        %2989 = vperm.xlu0 %2988, %v323
        %v2990 = vpop.permute.xlu0 %2989
        %2992 = vset.pattern.permute.xlu0 1
        %2993 = vperm.xlu0 %2992, %v324
        %v2994 = vpop.permute.xlu0 %2993
        %2996 = vset.pattern.permute.xlu0 1
        %2997 = vperm.xlu0 %2996, %v325
        %v2998 = vpop.permute.xlu0 %2997
        %3000 = vset.pattern.permute.xlu0 1
        %3001 = vperm.xlu0 %3000, %v326
        %v3002 = vpop.permute.xlu0 %3001
        %3004 = vset.pattern.permute.xlu0 1
        %3005 = vperm.xlu0 %3004, %v327
        %v3006 = vpop.permute.xlu0 %3005
        %3008 = vset.pattern.permute.xlu0 1
        %3009 = vperm.xlu0 %3008, %v328
        %v3010 = vpop.permute.xlu0 %3009
        %v3012 = vperm.slane %v320, 1
        %v3013 = vmul.f32 %v2982, %v3012
        %v3014 = vmul.f32 %v2986, %v3012
        %v3015 = vmul.f32 %v2990, %v3012
        %v3016 = vmul.f32 %v2994, %v3012
        %v3017 = vmul.f32 %v2998, %v3012
        %v3018 = vmul.f32 %v3002, %v3012
        %v3019 = vmul.f32 %v3006, %v3012
        %v3020 = vmul.f32 %v3010, %v3012
        %v3021 = vadd.f32 %v2972, %v3013
        %v3022 = vadd.f32 %v2973, %v3014
        %v3023 = vadd.f32 %v2974, %v3015
        %v3024 = vadd.f32 %v2975, %v3016
        %v3025 = vadd.f32 %v2976, %v3017
        %v3026 = vadd.f32 %v2977, %v3018
        %v3027 = vadd.f32 %v2978, %v3019
        %v3028 = vadd.f32 %v2979, %v3020
        %3029 = vset.pattern.permute.xlu0 2
        %3030 = vperm.xlu0 %3029, %v321
        %v3031 = vpop.permute.xlu0 %3030
        %3033 = vset.pattern.permute.xlu0 2
        %3034 = vperm.xlu0 %3033, %v322
        %v3035 = vpop.permute.xlu0 %3034
        %3037 = vset.pattern.permute.xlu0 2
        %3038 = vperm.xlu0 %3037, %v323
        %v3039 = vpop.permute.xlu0 %3038
        %3041 = vset.pattern.permute.xlu0 2
        %3042 = vperm.xlu0 %3041, %v324
        %v3043 = vpop.permute.xlu0 %3042
        %3045 = vset.pattern.permute.xlu0 2
        %3046 = vperm.xlu0 %3045, %v325
        %v3047 = vpop.permute.xlu0 %3046
        %3049 = vset.pattern.permute.xlu0 2
        %3050 = vperm.xlu0 %3049, %v326
        %v3051 = vpop.permute.xlu0 %3050
        %3053 = vset.pattern.permute.xlu0 2
        %3054 = vperm.xlu0 %3053, %v327
        %v3055 = vpop.permute.xlu0 %3054
        %3057 = vset.pattern.permute.xlu0 2
        %3058 = vperm.xlu0 %3057, %v328
        %v3059 = vpop.permute.xlu0 %3058
        %v3061 = vperm.slane %v320, 2
        %v3062 = vmul.f32 %v3031, %v3061
        %v3063 = vmul.f32 %v3035, %v3061
        %v3064 = vmul.f32 %v3039, %v3061
        %v3065 = vmul.f32 %v3043, %v3061
        %v3066 = vmul.f32 %v3047, %v3061
        %v3067 = vmul.f32 %v3051, %v3061
        %v3068 = vmul.f32 %v3055, %v3061
        %v3069 = vmul.f32 %v3059, %v3061
        %v3070 = vadd.f32 %v3021, %v3062
        %v3071 = vadd.f32 %v3022, %v3063
        %v3072 = vadd.f32 %v3023, %v3064
        %v3073 = vadd.f32 %v3024, %v3065
        %v3074 = vadd.f32 %v3025, %v3066
        %v3075 = vadd.f32 %v3026, %v3067
        %v3076 = vadd.f32 %v3027, %v3068
        %v3077 = vadd.f32 %v3028, %v3069
        %3079 = vset.pattern.permute.xlu0 0
        %3080 = vperm.xlu0 %3079, %v329
        %v3081 = vpop.permute.xlu0 %3080
        %3084 = vset.pattern.permute.xlu0 0
        %3085 = vperm.xlu0 %3084, %v330
        %v3086 = vpop.permute.xlu0 %3085
        %3089 = vset.pattern.permute.xlu0 0
        %3090 = vperm.xlu0 %3089, %v331
        %v3091 = vpop.permute.xlu0 %3090
        %3094 = vset.pattern.permute.xlu0 0
        %3095 = vperm.xlu0 %3094, %v332
        %v3096 = vpop.permute.xlu0 %3095
        %3099 = vset.pattern.permute.xlu0 0
        %3100 = vperm.xlu0 %3099, %v333
        %v3101 = vpop.permute.xlu0 %3100
        %3104 = vset.pattern.permute.xlu0 0
        %3105 = vperm.xlu0 %3104, %v334
        %v3106 = vpop.permute.xlu0 %3105
        %3109 = vset.pattern.permute.xlu0 0
        %3110 = vperm.xlu0 %3109, %v335
        %v3111 = vpop.permute.xlu0 %3110
        %3114 = vset.pattern.permute.xlu0 0
        %3115 = vperm.xlu0 %3114, %v336
        %v3116 = vpop.permute.xlu0 %3115
        %v3118 = vadd.f32 %v3070, %v3081
        %v3119 = vadd.f32 %v3071, %v3086
        %v3120 = vadd.f32 %v3072, %v3091
        %v3121 = vadd.f32 %v3073, %v3096
        %v3122 = vadd.f32 %v3074, %v3101
        %v3123 = vadd.f32 %v3075, %v3106
        %v3124 = vadd.f32 %v3076, %v3111
        %v3125 = vadd.f32 %v3077, %v3116
        %v3126 = vmax.f32 %v3118, 0.0
        %v3127 = vmax.f32 %v3119, 0.0
        %v3128 = vmax.f32 %v3120, 0.0
        %v3129 = vmax.f32 %v3121, 0.0
        %v3130 = vmax.f32 %v3122, 0.0
        %v3131 = vmax.f32 %v3123, 0.0
        %v3132 = vmax.f32 %v3124, 0.0
        %v3133 = vmax.f32 %v3125, 0.0
        %3134 = vst [vmem:[%s317] sm:$0xff] %v3126
        %3135 = vst [vmem:[%s317 + $0x8] sm:$0xff] %v3127
        %3136 = vst [vmem:[%s317 + $0x10] sm:$0xff] %v3128
        %3137 = vst [vmem:[%s317 + $0x18] sm:$0xff] %v3129
        %3138 = vst [vmem:[%s317 + $0x20] sm:$0xff] %v3130
        %3139 = vst [vmem:[%s317 + $0x28] sm:$0xff] %v3131
        %3140 = vst [vmem:[%s317 + $0x30] sm:$0xff] %v3132
        %3141 = vst [vmem:[%s317 + $0x38] sm:$0xff] %v3133
        %v3142 = vld [vmem:[#allocation3] sm:$0xff]
        %v3143 = vld [vmem:[#allocation3 + $0x8] sm:$0xff]
        %v3144 = vld [vmem:[#allocation3 + $0x10] sm:$0xff]
        %v3145 = vld [vmem:[#allocation3 + $0x18] sm:$0xff]
        %v3146 = vld [vmem:[#allocation3 + $0x20] sm:$0xff]
        %v3147 = vld [vmem:[#allocation3 + $0x28] sm:$0xff]
        %v3148 = vld [vmem:[#allocation3 + $0x30] sm:$0xff]
        %v3149 = vld [vmem:[#allocation3 + $0x38] sm:$0xff]
        %v3150 = vld [vmem:[#allocation3 + $0x40] sm:$0xff]
        %v3151 = vld [vmem:[#allocation3 + $0x48] sm:$0xff]
        %v3152 = vld [vmem:[#allocation3 + $0x50] sm:$0xff]
        %v3153 = vld [vmem:[#allocation3 + $0x58] sm:$0xff]
        %v3154 = vld [vmem:[#allocation3 + $0x60] sm:$0xff]
        %v3155 = vld [vmem:[#allocation3 + $0x68] sm:$0xff]
        %v3156 = vld [vmem:[#allocation3 + $0x70] sm:$0xff]
        %v3157 = vld [vmem:[#allocation3 + $0x78] sm:$0xff]
        %v3158 = vld [vmem:[#allocation3 + $0x80] sm:$0xff]
        %v3159 = vld [vmem:[#allocation3 + $0x88] sm:$0xff]
        %v3160 = vld [vmem:[#allocation3 + $0x90] sm:$0xff]
        %v3161 = vld [vmem:[#allocation3 + $0x98] sm:$0xff]
        %v3162 = vld [vmem:[#allocation3 + $0xa0] sm:$0xff]
        %v3163 = vld [vmem:[#allocation3 + $0xa8] sm:$0xff]
        %v3164 = vld [vmem:[#allocation3 + $0xb0] sm:$0xff]
        %v3165 = vld [vmem:[#allocation3 + $0xb8] sm:$0xff]
        %v3166 = vld [vmem:[#allocation3 + $0xc0] sm:$0xff]
        %v3167 = vld [vmem:[#allocation3 + $0xc8] sm:$0xff]
        %v3168 = vld [vmem:[#allocation3 + $0xd0] sm:$0xff]
        %v3169 = vld [vmem:[#allocation3 + $0xd8] sm:$0xff]
        %v3170 = vld [vmem:[#allocation3 + $0xe0] sm:$0xff]
        %v3171 = vld [vmem:[#allocation3 + $0xe8] sm:$0xff]
        %v3172 = vld [vmem:[#allocation3 + $0xf0] sm:$0xff]
        %v3173 = vld [vmem:[#allocation3 + $0xf8] sm:$0xff]
        %v3174 = vld [vmem:[#allocation3 + $0x100] sm:$0xff]
        %v3175 = vld [vmem:[#allocation3 + $0x108] sm:$0xff]
        %v3176 = vld [vmem:[#allocation3 + $0x110] sm:$0xff]
        %v3177 = vld [vmem:[#allocation3 + $0x118] sm:$0xff]
        %v3178 = vld [vmem:[#allocation3 + $0x120] sm:$0xff]
        %v3179 = vld [vmem:[#allocation3 + $0x128] sm:$0xff]
        %v3180 = vld [vmem:[#allocation3 + $0x130] sm:$0xff]
        %v3181 = vld [vmem:[#allocation3 + $0x138] sm:$0xff]
        %v3182 = vld [vmem:[#allocation3 + $0x140] sm:$0xff]
        %v3183 = vld [vmem:[#allocation3 + $0x148] sm:$0xff]
        %v3184 = vld [vmem:[#allocation3 + $0x150] sm:$0xff]
        %v3185 = vld [vmem:[#allocation3 + $0x158] sm:$0xff]
        %v3186 = vld [vmem:[#allocation3 + $0x160] sm:$0xff]
        %v3187 = vld [vmem:[#allocation3 + $0x168] sm:$0xff]
        %v3188 = vld [vmem:[#allocation3 + $0x170] sm:$0xff]
        %v3189 = vld [vmem:[#allocation3 + $0x178] sm:$0xff]
        %v3190 = vld [vmem:[#allocation3 + $0x180] sm:$0xff]
        %v3191 = vld [vmem:[#allocation3 + $0x188] sm:$0xff]
        %v3192 = vld [vmem:[#allocation3 + $0x190] sm:$0xff]
        %v3193 = vld [vmem:[#allocation3 + $0x198] sm:$0xff]
        %v3194 = vld [vmem:[#allocation3 + $0x1a0] sm:$0xff]
        %v3195 = vld [vmem:[#allocation3 + $0x1a8] sm:$0xff]
        %v3196 = vld [vmem:[#allocation3 + $0x1b0] sm:$0xff]
        %v3197 = vld [vmem:[#allocation3 + $0x1b8] sm:$0xff]
        %v3198 = vld [vmem:[#allocation3 + $0x1c0] sm:$0xff]
        %v3199 = vld [vmem:[#allocation3 + $0x1c8] sm:$0xff]
        %v3200 = vld [vmem:[#allocation3 + $0x1d0] sm:$0xff]
        %v3201 = vld [vmem:[#allocation3 + $0x1d8] sm:$0xff]
        %v3202 = vld [vmem:[#allocation3 + $0x1e0] sm:$0xff]
        %v3203 = vld [vmem:[#allocation3 + $0x1e8] sm:$0xff]
        %v3204 = vld [vmem:[#allocation3 + $0x1f0] sm:$0xff]
        %v3205 = vld [vmem:[#allocation3 + $0x1f8] sm:$0xff]
        %v3206 = vld [vmem:[#allocation3 + $0x200] sm:$0xff]
        %v3207 = vld [vmem:[#allocation3 + $0x208] sm:$0xff]
        %v3208 = vld [vmem:[#allocation3 + $0x210] sm:$0xff]
        %v3209 = vld [vmem:[#allocation3 + $0x218] sm:$0xff]
        %v3210 = vld [vmem:[#allocation3 + $0x220] sm:$0xff]
        %v3211 = vld [vmem:[#allocation3 + $0x228] sm:$0xff]
        %v3212 = vld [vmem:[#allocation3 + $0x230] sm:$0xff]
        %v3213 = vld [vmem:[#allocation3 + $0x238] sm:$0xff]
        %v3214 = vld [vmem:[#allocation3 + $0x240] sm:$0xff]
        %v3215 = vld [vmem:[#allocation3 + $0x248] sm:$0xff]
        %v3216 = vld [vmem:[#allocation3 + $0x250] sm:$0xff]
        %v3217 = vld [vmem:[#allocation3 + $0x258] sm:$0xff]
        %v3218 = vld [vmem:[#allocation3 + $0x260] sm:$0xff]
        %v3219 = vld [vmem:[#allocation3 + $0x268] sm:$0xff]
        %v3220 = vld [vmem:[#allocation3 + $0x270] sm:$0xff]
        %v3221 = vld [vmem:[#allocation3 + $0x278] sm:$0xff]
        %v3222 = vld [vmem:[#allocation3 + $0x280] sm:$0xff]
        %v3223 = vld [vmem:[#allocation3 + $0x288] sm:$0xff]
        %v3224 = vld [vmem:[#allocation3 + $0x290] sm:$0xff]
        %v3225 = vld [vmem:[#allocation3 + $0x298] sm:$0xff]
        %v3226 = vld [vmem:[#allocation3 + $0x2a0] sm:$0xff]
        %v3227 = vld [vmem:[#allocation3 + $0x2a8] sm:$0xff]
        %v3228 = vld [vmem:[#allocation3 + $0x2b0] sm:$0xff]
        %v3229 = vld [vmem:[#allocation3 + $0x2b8] sm:$0xff]
        %v3230 = vld [vmem:[#allocation3 + $0x2c0] sm:$0xff]
        %v3231 = vld [vmem:[#allocation3 + $0x2c8] sm:$0xff]
        %v3232 = vld [vmem:[#allocation3 + $0x2d0] sm:$0xff]
        %v3233 = vld [vmem:[#allocation3 + $0x2d8] sm:$0xff]
        %v3234 = vld [vmem:[#allocation3 + $0x2e0] sm:$0xff]
        %v3235 = vld [vmem:[#allocation3 + $0x2e8] sm:$0xff]
        %v3236 = vld [vmem:[#allocation3 + $0x2f0] sm:$0xff]
        %v3237 = vld [vmem:[#allocation3 + $0x2f8] sm:$0xff]
        %v3238 = vld [vmem:[#allocation3 + $0x300] sm:$0xff]
        %v3239 = vld [vmem:[#allocation3 + $0x308] sm:$0xff]
        %v3240 = vld [vmem:[#allocation3 + $0x310] sm:$0xff]
        %v3241 = vld [vmem:[#allocation3 + $0x318] sm:$0xff]
        %v3242 = vld [vmem:[#allocation3 + $0x320] sm:$0xff]
        %v3243 = vld [vmem:[#allocation3 + $0x328] sm:$0xff]
        %v3244 = vld [vmem:[#allocation3 + $0x330] sm:$0xff]
        %v3245 = vld [vmem:[#allocation3 + $0x338] sm:$0xff]
        %v3246 = vld [vmem:[#allocation3 + $0x340] sm:$0xff]
        %v3247 = vld [vmem:[#allocation3 + $0x348] sm:$0xff]
        %v3248 = vld [vmem:[#allocation3 + $0x350] sm:$0xff]
        %v3249 = vld [vmem:[#allocation3 + $0x358] sm:$0xff]
        %v3250 = vld [vmem:[#allocation3 + $0x360] sm:$0xff]
        %v3251 = vld [vmem:[#allocation3 + $0x368] sm:$0xff]
        %v3252 = vld [vmem:[#allocation3 + $0x370] sm:$0xff]
        %v3253 = vld [vmem:[#allocation3 + $0x378] sm:$0xff]
        %v3254 = vld [vmem:[#allocation3 + $0x380] sm:$0xff]
        %v3255 = vld [vmem:[#allocation3 + $0x388] sm:$0xff]
        %v3256 = vld [vmem:[#allocation3 + $0x390] sm:$0xff]
        %v3257 = vld [vmem:[#allocation3 + $0x398] sm:$0xff]
        %v3258 = vld [vmem:[#allocation3 + $0x3a0] sm:$0xff]
        %v3259 = vld [vmem:[#allocation3 + $0x3a8] sm:$0xff]
        %v3260 = vld [vmem:[#allocation3 + $0x3b0] sm:$0xff]
        %v3261 = vld [vmem:[#allocation3 + $0x3b8] sm:$0xff]
        %v3262 = vld [vmem:[#allocation3 + $0x3c0] sm:$0xff]
        %v3263 = vld [vmem:[#allocation3 + $0x3c8] sm:$0xff]
        %v3264 = vld [vmem:[#allocation3 + $0x3d0] sm:$0xff]
        %v3265 = vld [vmem:[#allocation3 + $0x3d8] sm:$0xff]
        %v3266 = vld [vmem:[#allocation3 + $0x3e0] sm:$0xff]
        %v3267 = vld [vmem:[#allocation3 + $0x3e8] sm:$0xff]
        %v3268 = vld [vmem:[#allocation3 + $0x3f0] sm:$0xff]
        %v3269 = vld [vmem:[#allocation3 + $0x3f8] sm:$0xff]
        %3271 = vset.pattern.permute.xlu0 0
        %3272 = vperm.xlu0 %3271, %v3142
        %v3273 = vpop.permute.xlu0 %3272
        %3276 = vset.pattern.permute.xlu0 0
        %3277 = vperm.xlu0 %3276, %v3143
        %v3278 = vpop.permute.xlu0 %3277
        %3281 = vset.pattern.permute.xlu0 0
        %3282 = vperm.xlu0 %3281, %v3144
        %v3283 = vpop.permute.xlu0 %3282
        %3286 = vset.pattern.permute.xlu0 0
        %3287 = vperm.xlu0 %3286, %v3145
        %v3288 = vpop.permute.xlu0 %3287
        %3291 = vset.pattern.permute.xlu0 0
        %3292 = vperm.xlu0 %3291, %v3146
        %v3293 = vpop.permute.xlu0 %3292
        %3296 = vset.pattern.permute.xlu0 0
        %3297 = vperm.xlu0 %3296, %v3147
        %v3298 = vpop.permute.xlu0 %3297
        %3301 = vset.pattern.permute.xlu0 0
        %3302 = vperm.xlu0 %3301, %v3148
        %v3303 = vpop.permute.xlu0 %3302
        %3306 = vset.pattern.permute.xlu0 0
        %3307 = vperm.xlu0 %3306, %v3149
        %v3308 = vpop.permute.xlu0 %3307
        %3311 = vset.pattern.permute.xlu0 0
        %3312 = vperm.xlu0 %3311, %v3150
        %v3313 = vpop.permute.xlu0 %3312
        %3316 = vset.pattern.permute.xlu0 0
        %3317 = vperm.xlu0 %3316, %v3151
        %v3318 = vpop.permute.xlu0 %3317
        %3321 = vset.pattern.permute.xlu0 0
        %3322 = vperm.xlu0 %3321, %v3152
        %v3323 = vpop.permute.xlu0 %3322
        %3326 = vset.pattern.permute.xlu0 0
        %3327 = vperm.xlu0 %3326, %v3153
        %v3328 = vpop.permute.xlu0 %3327
        %3331 = vset.pattern.permute.xlu0 0
        %3332 = vperm.xlu0 %3331, %v3154
        %v3333 = vpop.permute.xlu0 %3332
        %3336 = vset.pattern.permute.xlu0 0
        %3337 = vperm.xlu0 %3336, %v3155
        %v3338 = vpop.permute.xlu0 %3337
        %3341 = vset.pattern.permute.xlu0 0
        %3342 = vperm.xlu0 %3341, %v3156
        %v3343 = vpop.permute.xlu0 %3342
        %3346 = vset.pattern.permute.xlu0 0
        %3347 = vperm.xlu0 %3346, %v3157
        %v3348 = vpop.permute.xlu0 %3347
        %3351 = vset.pattern.permute.xlu0 0
        %3352 = vperm.xlu0 %3351, %v3158
        %v3353 = vpop.permute.xlu0 %3352
        %3356 = vset.pattern.permute.xlu0 0
        %3357 = vperm.xlu0 %3356, %v3159
        %v3358 = vpop.permute.xlu0 %3357
        %3361 = vset.pattern.permute.xlu0 0
        %3362 = vperm.xlu0 %3361, %v3160
        %v3363 = vpop.permute.xlu0 %3362
        %3366 = vset.pattern.permute.xlu0 0
        %3367 = vperm.xlu0 %3366, %v3161
        %v3368 = vpop.permute.xlu0 %3367
        %3371 = vset.pattern.permute.xlu0 0
        %3372 = vperm.xlu0 %3371, %v3162
        %v3373 = vpop.permute.xlu0 %3372
        %3376 = vset.pattern.permute.xlu0 0
        %3377 = vperm.xlu0 %3376, %v3163
        %v3378 = vpop.permute.xlu0 %3377
        %3381 = vset.pattern.permute.xlu0 0
        %3382 = vperm.xlu0 %3381, %v3164
        %v3383 = vpop.permute.xlu0 %3382
        %3386 = vset.pattern.permute.xlu0 0
        %3387 = vperm.xlu0 %3386, %v3165
        %v3388 = vpop.permute.xlu0 %3387
        %3391 = vset.pattern.permute.xlu0 0
        %3392 = vperm.xlu0 %3391, %v3166
        %v3393 = vpop.permute.xlu0 %3392
        %3396 = vset.pattern.permute.xlu0 0
        %3397 = vperm.xlu0 %3396, %v3167
        %v3398 = vpop.permute.xlu0 %3397
        %3401 = vset.pattern.permute.xlu0 0
        %3402 = vperm.xlu0 %3401, %v3168
        %v3403 = vpop.permute.xlu0 %3402
        %3406 = vset.pattern.permute.xlu0 0
        %3407 = vperm.xlu0 %3406, %v3169
        %v3408 = vpop.permute.xlu0 %3407
        %3411 = vset.pattern.permute.xlu0 0
        %3412 = vperm.xlu0 %3411, %v3170
        %v3413 = vpop.permute.xlu0 %3412
        %3416 = vset.pattern.permute.xlu0 0
        %3417 = vperm.xlu0 %3416, %v3171
        %v3418 = vpop.permute.xlu0 %3417
        %3421 = vset.pattern.permute.xlu0 0
        %3422 = vperm.xlu0 %3421, %v3172
        %v3423 = vpop.permute.xlu0 %3422
        %3426 = vset.pattern.permute.xlu0 0
        %3427 = vperm.xlu0 %3426, %v3173
        %v3428 = vpop.permute.xlu0 %3427
        %3431 = vset.pattern.permute.xlu0 0
        %3432 = vperm.xlu0 %3431, %v3174
        %v3433 = vpop.permute.xlu0 %3432
        %3436 = vset.pattern.permute.xlu0 0
        %3437 = vperm.xlu0 %3436, %v3175
        %v3438 = vpop.permute.xlu0 %3437
        %3441 = vset.pattern.permute.xlu0 0
        %3442 = vperm.xlu0 %3441, %v3176
        %v3443 = vpop.permute.xlu0 %3442
        %3446 = vset.pattern.permute.xlu0 0
        %3447 = vperm.xlu0 %3446, %v3177
        %v3448 = vpop.permute.xlu0 %3447
        %3451 = vset.pattern.permute.xlu0 0
        %3452 = vperm.xlu0 %3451, %v3178
        %v3453 = vpop.permute.xlu0 %3452
        %3456 = vset.pattern.permute.xlu0 0
        %3457 = vperm.xlu0 %3456, %v3179
        %v3458 = vpop.permute.xlu0 %3457
        %3461 = vset.pattern.permute.xlu0 0
        %3462 = vperm.xlu0 %3461, %v3180
        %v3463 = vpop.permute.xlu0 %3462
        %3466 = vset.pattern.permute.xlu0 0
        %3467 = vperm.xlu0 %3466, %v3181
        %v3468 = vpop.permute.xlu0 %3467
        %3471 = vset.pattern.permute.xlu0 0
        %3472 = vperm.xlu0 %3471, %v3182
        %v3473 = vpop.permute.xlu0 %3472
        %3476 = vset.pattern.permute.xlu0 0
        %3477 = vperm.xlu0 %3476, %v3183
        %v3478 = vpop.permute.xlu0 %3477
        %3481 = vset.pattern.permute.xlu0 0
        %3482 = vperm.xlu0 %3481, %v3184
        %v3483 = vpop.permute.xlu0 %3482
        %3486 = vset.pattern.permute.xlu0 0
        %3487 = vperm.xlu0 %3486, %v3185
        %v3488 = vpop.permute.xlu0 %3487
        %3491 = vset.pattern.permute.xlu0 0
        %3492 = vperm.xlu0 %3491, %v3186
        %v3493 = vpop.permute.xlu0 %3492
        %3496 = vset.pattern.permute.xlu0 0
        %3497 = vperm.xlu0 %3496, %v3187
        %v3498 = vpop.permute.xlu0 %3497
        %3501 = vset.pattern.permute.xlu0 0
        %3502 = vperm.xlu0 %3501, %v3188
        %v3503 = vpop.permute.xlu0 %3502
        %3506 = vset.pattern.permute.xlu0 0
        %3507 = vperm.xlu0 %3506, %v3189
        %v3508 = vpop.permute.xlu0 %3507
        %3511 = vset.pattern.permute.xlu0 0
        %3512 = vperm.xlu0 %3511, %v3190
        %v3513 = vpop.permute.xlu0 %3512
        %3516 = vset.pattern.permute.xlu0 0
        %3517 = vperm.xlu0 %3516, %v3191
        %v3518 = vpop.permute.xlu0 %3517
        %3521 = vset.pattern.permute.xlu0 0
        %3522 = vperm.xlu0 %3521, %v3192
        %v3523 = vpop.permute.xlu0 %3522
        %3526 = vset.pattern.permute.xlu0 0
        %3527 = vperm.xlu0 %3526, %v3193
        %v3528 = vpop.permute.xlu0 %3527
        %3531 = vset.pattern.permute.xlu0 0
        %3532 = vperm.xlu0 %3531, %v3194
        %v3533 = vpop.permute.xlu0 %3532
        %3536 = vset.pattern.permute.xlu0 0
        %3537 = vperm.xlu0 %3536, %v3195
        %v3538 = vpop.permute.xlu0 %3537
        %3541 = vset.pattern.permute.xlu0 0
        %3542 = vperm.xlu0 %3541, %v3196
        %v3543 = vpop.permute.xlu0 %3542
        %3546 = vset.pattern.permute.xlu0 0
        %3547 = vperm.xlu0 %3546, %v3197
        %v3548 = vpop.permute.xlu0 %3547
        %3551 = vset.pattern.permute.xlu0 0
        %3552 = vperm.xlu0 %3551, %v3198
        %v3553 = vpop.permute.xlu0 %3552
        %3556 = vset.pattern.permute.xlu0 0
        %3557 = vperm.xlu0 %3556, %v3199
        %v3558 = vpop.permute.xlu0 %3557
        %3561 = vset.pattern.permute.xlu0 0
        %3562 = vperm.xlu0 %3561, %v3200
        %v3563 = vpop.permute.xlu0 %3562
        %3566 = vset.pattern.permute.xlu0 0
        %3567 = vperm.xlu0 %3566, %v3201
        %v3568 = vpop.permute.xlu0 %3567
        %3571 = vset.pattern.permute.xlu0 0
        %3572 = vperm.xlu0 %3571, %v3202
        %v3573 = vpop.permute.xlu0 %3572
        %3576 = vset.pattern.permute.xlu0 0
        %3577 = vperm.xlu0 %3576, %v3203
        %v3578 = vpop.permute.xlu0 %3577
        %3581 = vset.pattern.permute.xlu0 0
        %3582 = vperm.xlu0 %3581, %v3204
        %v3583 = vpop.permute.xlu0 %3582
        %3586 = vset.pattern.permute.xlu0 0
        %3587 = vperm.xlu0 %3586, %v3205
        %v3588 = vpop.permute.xlu0 %3587
        %3591 = vset.pattern.permute.xlu0 0
        %3592 = vperm.xlu0 %3591, %v3206
        %v3593 = vpop.permute.xlu0 %3592
        %3596 = vset.pattern.permute.xlu0 0
        %3597 = vperm.xlu0 %3596, %v3207
        %v3598 = vpop.permute.xlu0 %3597
        %3601 = vset.pattern.permute.xlu0 0
        %3602 = vperm.xlu0 %3601, %v3208
        %v3603 = vpop.permute.xlu0 %3602
        %3606 = vset.pattern.permute.xlu0 0
        %3607 = vperm.xlu0 %3606, %v3209
        %v3608 = vpop.permute.xlu0 %3607
        %3611 = vset.pattern.permute.xlu0 0
        %3612 = vperm.xlu0 %3611, %v3210
        %v3613 = vpop.permute.xlu0 %3612
        %3616 = vset.pattern.permute.xlu0 0
        %3617 = vperm.xlu0 %3616, %v3211
        %v3618 = vpop.permute.xlu0 %3617
        %3621 = vset.pattern.permute.xlu0 0
        %3622 = vperm.xlu0 %3621, %v3212
        %v3623 = vpop.permute.xlu0 %3622
        %3626 = vset.pattern.permute.xlu0 0
        %3627 = vperm.xlu0 %3626, %v3213
        %v3628 = vpop.permute.xlu0 %3627
        %3631 = vset.pattern.permute.xlu0 0
        %3632 = vperm.xlu0 %3631, %v3214
        %v3633 = vpop.permute.xlu0 %3632
        %3636 = vset.pattern.permute.xlu0 0
        %3637 = vperm.xlu0 %3636, %v3215
        %v3638 = vpop.permute.xlu0 %3637
        %3641 = vset.pattern.permute.xlu0 0
        %3642 = vperm.xlu0 %3641, %v3216
        %v3643 = vpop.permute.xlu0 %3642
        %3646 = vset.pattern.permute.xlu0 0
        %3647 = vperm.xlu0 %3646, %v3217
        %v3648 = vpop.permute.xlu0 %3647
        %3651 = vset.pattern.permute.xlu0 0
        %3652 = vperm.xlu0 %3651, %v3218
        %v3653 = vpop.permute.xlu0 %3652
        %3656 = vset.pattern.permute.xlu0 0
        %3657 = vperm.xlu0 %3656, %v3219
        %v3658 = vpop.permute.xlu0 %3657
        %3661 = vset.pattern.permute.xlu0 0
        %3662 = vperm.xlu0 %3661, %v3220
        %v3663 = vpop.permute.xlu0 %3662
        %3666 = vset.pattern.permute.xlu0 0
        %3667 = vperm.xlu0 %3666, %v3221
        %v3668 = vpop.permute.xlu0 %3667
        %3671 = vset.pattern.permute.xlu0 0
        %3672 = vperm.xlu0 %3671, %v3222
        %v3673 = vpop.permute.xlu0 %3672
        %3676 = vset.pattern.permute.xlu0 0
        %3677 = vperm.xlu0 %3676, %v3223
        %v3678 = vpop.permute.xlu0 %3677
        %3681 = vset.pattern.permute.xlu0 0
        %3682 = vperm.xlu0 %3681, %v3224
        %v3683 = vpop.permute.xlu0 %3682
        %3686 = vset.pattern.permute.xlu0 0
        %3687 = vperm.xlu0 %3686, %v3225
        %v3688 = vpop.permute.xlu0 %3687
        %3691 = vset.pattern.permute.xlu0 0
        %3692 = vperm.xlu0 %3691, %v3226
        %v3693 = vpop.permute.xlu0 %3692
        %3696 = vset.pattern.permute.xlu0 0
        %3697 = vperm.xlu0 %3696, %v3227
        %v3698 = vpop.permute.xlu0 %3697
        %3701 = vset.pattern.permute.xlu0 0
        %3702 = vperm.xlu0 %3701, %v3228
        %v3703 = vpop.permute.xlu0 %3702
        %3706 = vset.pattern.permute.xlu0 0
        %3707 = vperm.xlu0 %3706, %v3229
        %v3708 = vpop.permute.xlu0 %3707
        %3711 = vset.pattern.permute.xlu0 0
        %3712 = vperm.xlu0 %3711, %v3230
        %v3713 = vpop.permute.xlu0 %3712
        %3716 = vset.pattern.permute.xlu0 0
        %3717 = vperm.xlu0 %3716, %v3231
        %v3718 = vpop.permute.xlu0 %3717
        %3721 = vset.pattern.permute.xlu0 0
        %3722 = vperm.xlu0 %3721, %v3232
        %v3723 = vpop.permute.xlu0 %3722
        %3726 = vset.pattern.permute.xlu0 0
        %3727 = vperm.xlu0 %3726, %v3233
        %v3728 = vpop.permute.xlu0 %3727
        %3731 = vset.pattern.permute.xlu0 0
        %3732 = vperm.xlu0 %3731, %v3234
        %v3733 = vpop.permute.xlu0 %3732
        %3736 = vset.pattern.permute.xlu0 0
        %3737 = vperm.xlu0 %3736, %v3235
        %v3738 = vpop.permute.xlu0 %3737
        %3741 = vset.pattern.permute.xlu0 0
        %3742 = vperm.xlu0 %3741, %v3236
        %v3743 = vpop.permute.xlu0 %3742
        %3746 = vset.pattern.permute.xlu0 0
        %3747 = vperm.xlu0 %3746, %v3237
        %v3748 = vpop.permute.xlu0 %3747
        %3751 = vset.pattern.permute.xlu0 0
        %3752 = vperm.xlu0 %3751, %v3238
        %v3753 = vpop.permute.xlu0 %3752
        %3756 = vset.pattern.permute.xlu0 0
        %3757 = vperm.xlu0 %3756, %v3239
        %v3758 = vpop.permute.xlu0 %3757
        %3761 = vset.pattern.permute.xlu0 0
        %3762 = vperm.xlu0 %3761, %v3240
        %v3763 = vpop.permute.xlu0 %3762
        %3766 = vset.pattern.permute.xlu0 0
        %3767 = vperm.xlu0 %3766, %v3241
        %v3768 = vpop.permute.xlu0 %3767
        %3771 = vset.pattern.permute.xlu0 0
        %3772 = vperm.xlu0 %3771, %v3242
        %v3773 = vpop.permute.xlu0 %3772
        %3776 = vset.pattern.permute.xlu0 0
        %3777 = vperm.xlu0 %3776, %v3243
        %v3778 = vpop.permute.xlu0 %3777
        %3781 = vset.pattern.permute.xlu0 0
        %3782 = vperm.xlu0 %3781, %v3244
        %v3783 = vpop.permute.xlu0 %3782
        %3786 = vset.pattern.permute.xlu0 0
        %3787 = vperm.xlu0 %3786, %v3245
        %v3788 = vpop.permute.xlu0 %3787
        %3791 = vset.pattern.permute.xlu0 0
        %3792 = vperm.xlu0 %3791, %v3246
        %v3793 = vpop.permute.xlu0 %3792
        %3796 = vset.pattern.permute.xlu0 0
        %3797 = vperm.xlu0 %3796, %v3247
        %v3798 = vpop.permute.xlu0 %3797
        %3801 = vset.pattern.permute.xlu0 0
        %3802 = vperm.xlu0 %3801, %v3248
        %v3803 = vpop.permute.xlu0 %3802
        %3806 = vset.pattern.permute.xlu0 0
        %3807 = vperm.xlu0 %3806, %v3249
        %v3808 = vpop.permute.xlu0 %3807
        %3811 = vset.pattern.permute.xlu0 0
        %3812 = vperm.xlu0 %3811, %v3250
        %v3813 = vpop.permute.xlu0 %3812
        %3816 = vset.pattern.permute.xlu0 0
        %3817 = vperm.xlu0 %3816, %v3251
        %v3818 = vpop.permute.xlu0 %3817
        %3821 = vset.pattern.permute.xlu0 0
        %3822 = vperm.xlu0 %3821, %v3252
        %v3823 = vpop.permute.xlu0 %3822
        %3826 = vset.pattern.permute.xlu0 0
        %3827 = vperm.xlu0 %3826, %v3253
        %v3828 = vpop.permute.xlu0 %3827
        %3831 = vset.pattern.permute.xlu0 0
        %3832 = vperm.xlu0 %3831, %v3254
        %v3833 = vpop.permute.xlu0 %3832
        %3836 = vset.pattern.permute.xlu0 0
        %3837 = vperm.xlu0 %3836, %v3255
        %v3838 = vpop.permute.xlu0 %3837
        %3841 = vset.pattern.permute.xlu0 0
        %3842 = vperm.xlu0 %3841, %v3256
        %v3843 = vpop.permute.xlu0 %3842
        %3846 = vset.pattern.permute.xlu0 0
        %3847 = vperm.xlu0 %3846, %v3257
        %v3848 = vpop.permute.xlu0 %3847
        %3851 = vset.pattern.permute.xlu0 0
        %3852 = vperm.xlu0 %3851, %v3258
        %v3853 = vpop.permute.xlu0 %3852
        %3856 = vset.pattern.permute.xlu0 0
        %3857 = vperm.xlu0 %3856, %v3259
        %v3858 = vpop.permute.xlu0 %3857
        %3861 = vset.pattern.permute.xlu0 0
        %3862 = vperm.xlu0 %3861, %v3260
        %v3863 = vpop.permute.xlu0 %3862
        %3866 = vset.pattern.permute.xlu0 0
        %3867 = vperm.xlu0 %3866, %v3261
        %v3868 = vpop.permute.xlu0 %3867
        %3871 = vset.pattern.permute.xlu0 0
        %3872 = vperm.xlu0 %3871, %v3262
        %v3873 = vpop.permute.xlu0 %3872
        %3876 = vset.pattern.permute.xlu0 0
        %3877 = vperm.xlu0 %3876, %v3263
        %v3878 = vpop.permute.xlu0 %3877
        %3881 = vset.pattern.permute.xlu0 0
        %3882 = vperm.xlu0 %3881, %v3264
        %v3883 = vpop.permute.xlu0 %3882
        %3886 = vset.pattern.permute.xlu0 0
        %3887 = vperm.xlu0 %3886, %v3265
        %v3888 = vpop.permute.xlu0 %3887
        %3891 = vset.pattern.permute.xlu0 0
        %3892 = vperm.xlu0 %3891, %v3266
        %v3893 = vpop.permute.xlu0 %3892
        %3896 = vset.pattern.permute.xlu0 0
        %3897 = vperm.xlu0 %3896, %v3267
        %v3898 = vpop.permute.xlu0 %3897
        %3901 = vset.pattern.permute.xlu0 0
        %3902 = vperm.xlu0 %3901, %v3268
        %v3903 = vpop.permute.xlu0 %3902
        %3906 = vset.pattern.permute.xlu0 0
        %3907 = vperm.xlu0 %3906, %v3269
        %v3908 = vpop.permute.xlu0 %3907
        %3910 = vst [vmem:[%s317 + $0x40] sm:$0xff] %v3273
        %3911 = vst [vmem:[%s317 + $0x48] sm:$0xff] %v3278
        %3912 = vst [vmem:[%s317 + $0x50] sm:$0xff] %v3283
        %3913 = vst [vmem:[%s317 + $0x58] sm:$0xff] %v3288
        %3914 = vst [vmem:[%s317 + $0x60] sm:$0xff] %v3293
        %3915 = vst [vmem:[%s317 + $0x68] sm:$0xff] %v3298
        %3916 = vst [vmem:[%s317 + $0x70] sm:$0xff] %v3303
        %3917 = vst [vmem:[%s317 + $0x78] sm:$0xff] %v3308
        %3918 = vst [vmem:[%s317 + $0x80] sm:$0xff] %v3313
        %3919 = vst [vmem:[%s317 + $0x88] sm:$0xff] %v3318
        %3920 = vst [vmem:[%s317 + $0x90] sm:$0xff] %v3323
        %3921 = vst [vmem:[%s317 + $0x98] sm:$0xff] %v3328
        %3922 = vst [vmem:[%s317 + $0xa0] sm:$0xff] %v3333
        %3923 = vst [vmem:[%s317 + $0xa8] sm:$0xff] %v3338
        %3924 = vst [vmem:[%s317 + $0xb0] sm:$0xff] %v3343
        %3925 = vst [vmem:[%s317 + $0xb8] sm:$0xff] %v3348
        %3926 = vst [vmem:[%s317 + $0xc0] sm:$0xff] %v3353
        %3927 = vst [vmem:[%s317 + $0xc8] sm:$0xff] %v3358
        %3928 = vst [vmem:[%s317 + $0xd0] sm:$0xff] %v3363
        %3929 = vst [vmem:[%s317 + $0xd8] sm:$0xff] %v3368
        %3930 = vst [vmem:[%s317 + $0xe0] sm:$0xff] %v3373
        %3931 = vst [vmem:[%s317 + $0xe8] sm:$0xff] %v3378
        %3932 = vst [vmem:[%s317 + $0xf0] sm:$0xff] %v3383
        %3933 = vst [vmem:[%s317 + $0xf8] sm:$0xff] %v3388
        %3934 = vst [vmem:[%s317 + $0x100] sm:$0xff] %v3393
        %3935 = vst [vmem:[%s317 + $0x108] sm:$0xff] %v3398
        %3936 = vst [vmem:[%s317 + $0x110] sm:$0xff] %v3403
        %3937 = vst [vmem:[%s317 + $0x118] sm:$0xff] %v3408
        %3938 = vst [vmem:[%s317 + $0x120] sm:$0xff] %v3413
        %3939 = vst [vmem:[%s317 + $0x128] sm:$0xff] %v3418
        %3940 = vst [vmem:[%s317 + $0x130] sm:$0xff] %v3423
        %3941 = vst [vmem:[%s317 + $0x138] sm:$0xff] %v3428
        %3942 = vst [vmem:[%s317 + $0x140] sm:$0xff] %v3433
        %3943 = vst [vmem:[%s317 + $0x148] sm:$0xff] %v3438
        %3944 = vst [vmem:[%s317 + $0x150] sm:$0xff] %v3443
        %3945 = vst [vmem:[%s317 + $0x158] sm:$0xff] %v3448
        %3946 = vst [vmem:[%s317 + $0x160] sm:$0xff] %v3453
        %3947 = vst [vmem:[%s317 + $0x168] sm:$0xff] %v3458
        %3948 = vst [vmem:[%s317 + $0x170] sm:$0xff] %v3463
        %3949 = vst [vmem:[%s317 + $0x178] sm:$0xff] %v3468
        %3950 = vst [vmem:[%s317 + $0x180] sm:$0xff] %v3473
        %3951 = vst [vmem:[%s317 + $0x188] sm:$0xff] %v3478
        %3952 = vst [vmem:[%s317 + $0x190] sm:$0xff] %v3483
        %3953 = vst [vmem:[%s317 + $0x198] sm:$0xff] %v3488
        %3954 = vst [vmem:[%s317 + $0x1a0] sm:$0xff] %v3493
        %3955 = vst [vmem:[%s317 + $0x1a8] sm:$0xff] %v3498
        %3956 = vst [vmem:[%s317 + $0x1b0] sm:$0xff] %v3503
        %3957 = vst [vmem:[%s317 + $0x1b8] sm:$0xff] %v3508
        %3958 = vst [vmem:[%s317 + $0x1c0] sm:$0xff] %v3513
        %3959 = vst [vmem:[%s317 + $0x1c8] sm:$0xff] %v3518
        %3960 = vst [vmem:[%s317 + $0x1d0] sm:$0xff] %v3523
        %3961 = vst [vmem:[%s317 + $0x1d8] sm:$0xff] %v3528
        %3962 = vst [vmem:[%s317 + $0x1e0] sm:$0xff] %v3533
        %3963 = vst [vmem:[%s317 + $0x1e8] sm:$0xff] %v3538
        %3964 = vst [vmem:[%s317 + $0x1f0] sm:$0xff] %v3543
        %3965 = vst [vmem:[%s317 + $0x1f8] sm:$0xff] %v3548
        %3966 = vst [vmem:[%s317 + $0x200] sm:$0xff] %v3553
        %3967 = vst [vmem:[%s317 + $0x208] sm:$0xff] %v3558
        %3968 = vst [vmem:[%s317 + $0x210] sm:$0xff] %v3563
        %3969 = vst [vmem:[%s317 + $0x218] sm:$0xff] %v3568
        %3970 = vst [vmem:[%s317 + $0x220] sm:$0xff] %v3573
        %3971 = vst [vmem:[%s317 + $0x228] sm:$0xff] %v3578
        %3972 = vst [vmem:[%s317 + $0x230] sm:$0xff] %v3583
        %3973 = vst [vmem:[%s317 + $0x238] sm:$0xff] %v3588
        %3974 = vst [vmem:[%s317 + $0x240] sm:$0xff] %v3593
        %3975 = vst [vmem:[%s317 + $0x248] sm:$0xff] %v3598
        %3976 = vst [vmem:[%s317 + $0x250] sm:$0xff] %v3603
        %3977 = vst [vmem:[%s317 + $0x258] sm:$0xff] %v3608
        %3978 = vst [vmem:[%s317 + $0x260] sm:$0xff] %v3613
        %3979 = vst [vmem:[%s317 + $0x268] sm:$0xff] %v3618
        %3980 = vst [vmem:[%s317 + $0x270] sm:$0xff] %v3623
        %3981 = vst [vmem:[%s317 + $0x278] sm:$0xff] %v3628
        %3982 = vst [vmem:[%s317 + $0x280] sm:$0xff] %v3633
        %3983 = vst [vmem:[%s317 + $0x288] sm:$0xff] %v3638
        %3984 = vst [vmem:[%s317 + $0x290] sm:$0xff] %v3643
        %3985 = vst [vmem:[%s317 + $0x298] sm:$0xff] %v3648
        %3986 = vst [vmem:[%s317 + $0x2a0] sm:$0xff] %v3653
        %3987 = vst [vmem:[%s317 + $0x2a8] sm:$0xff] %v3658
        %3988 = vst [vmem:[%s317 + $0x2b0] sm:$0xff] %v3663
        %3989 = vst [vmem:[%s317 + $0x2b8] sm:$0xff] %v3668
        %3990 = vst [vmem:[%s317 + $0x2c0] sm:$0xff] %v3673
        %3991 = vst [vmem:[%s317 + $0x2c8] sm:$0xff] %v3678
        %3992 = vst [vmem:[%s317 + $0x2d0] sm:$0xff] %v3683
        %3993 = vst [vmem:[%s317 + $0x2d8] sm:$0xff] %v3688
        %3994 = vst [vmem:[%s317 + $0x2e0] sm:$0xff] %v3693
        %3995 = vst [vmem:[%s317 + $0x2e8] sm:$0xff] %v3698
        %3996 = vst [vmem:[%s317 + $0x2f0] sm:$0xff] %v3703
        %3997 = vst [vmem:[%s317 + $0x2f8] sm:$0xff] %v3708
        %3998 = vst [vmem:[%s317 + $0x300] sm:$0xff] %v3713
        %3999 = vst [vmem:[%s317 + $0x308] sm:$0xff] %v3718
        %4000 = vst [vmem:[%s317 + $0x310] sm:$0xff] %v3723
        %4001 = vst [vmem:[%s317 + $0x318] sm:$0xff] %v3728
        %4002 = vst [vmem:[%s317 + $0x320] sm:$0xff] %v3733
        %4003 = vst [vmem:[%s317 + $0x328] sm:$0xff] %v3738
        %4004 = vst [vmem:[%s317 + $0x330] sm:$0xff] %v3743
        %4005 = vst [vmem:[%s317 + $0x338] sm:$0xff] %v3748
        %4006 = vst [vmem:[%s317 + $0x340] sm:$0xff] %v3753
        %4007 = vst [vmem:[%s317 + $0x348] sm:$0xff] %v3758
        %4008 = vst [vmem:[%s317 + $0x350] sm:$0xff] %v3763
        %4009 = vst [vmem:[%s317 + $0x358] sm:$0xff] %v3768
        %4010 = vst [vmem:[%s317 + $0x360] sm:$0xff] %v3773
        %4011 = vst [vmem:[%s317 + $0x368] sm:$0xff] %v3778
        %4012 = vst [vmem:[%s317 + $0x370] sm:$0xff] %v3783
        %4013 = vst [vmem:[%s317 + $0x378] sm:$0xff] %v3788
        %4014 = vst [vmem:[%s317 + $0x380] sm:$0xff] %v3793
        %4015 = vst [vmem:[%s317 + $0x388] sm:$0xff] %v3798
        %4016 = vst [vmem:[%s317 + $0x390] sm:$0xff] %v3803
        %4017 = vst [vmem:[%s317 + $0x398] sm:$0xff] %v3808
        %4018 = vst [vmem:[%s317 + $0x3a0] sm:$0xff] %v3813
        %4019 = vst [vmem:[%s317 + $0x3a8] sm:$0xff] %v3818
        %4020 = vst [vmem:[%s317 + $0x3b0] sm:$0xff] %v3823
        %4021 = vst [vmem:[%s317 + $0x3b8] sm:$0xff] %v3828
        %4022 = vst [vmem:[%s317 + $0x3c0] sm:$0xff] %v3833
        %4023 = vst [vmem:[%s317 + $0x3c8] sm:$0xff] %v3838
        %4024 = vst [vmem:[%s317 + $0x3d0] sm:$0xff] %v3843
        %4025 = vst [vmem:[%s317 + $0x3d8] sm:$0xff] %v3848
        %4026 = vst [vmem:[%s317 + $0x3e0] sm:$0xff] %v3853
        %4027 = vst [vmem:[%s317 + $0x3e8] sm:$0xff] %v3858
        %4028 = vst [vmem:[%s317 + $0x3f0] sm:$0xff] %v3863
        %4029 = vst [vmem:[%s317 + $0x3f8] sm:$0xff] %v3868
        %4030 = vst [vmem:[%s317 + $0x400] sm:$0xff] %v3873
        %4031 = vst [vmem:[%s317 + $0x408] sm:$0xff] %v3878
        %4032 = vst [vmem:[%s317 + $0x410] sm:$0xff] %v3883
        %4033 = vst [vmem:[%s317 + $0x418] sm:$0xff] %v3888
        %4034 = vst [vmem:[%s317 + $0x420] sm:$0xff] %v3893
        %4035 = vst [vmem:[%s317 + $0x428] sm:$0xff] %v3898
        %4036 = vst [vmem:[%s317 + $0x430] sm:$0xff] %v3903
        %4037 = vst [vmem:[%s317 + $0x438] sm:$0xff] %v3908
      $region64: #{concat_feature.1} parent=47 // pred_fallthru
        _
      %s4038 = smul.u32 %s25, %s24
      %p4039 = scmp.lt.s32.totalorder %s23, 1
      %s4040 = scalar_select %p4039, %s23, 1
      %p4041 = scmp.lt.s32.totalorder %s4038, 0
      %s4042 = scalar_select %p4041, %s4038, 0
      %s4043 = smul.addr %s4040, 136
      %s4044 = sadd.s32 %s4042, %s4043
      %s4045 = smul.addr %s4044, 8
      %s4046 = scalar_lea.vmem %s7, %s4045
      // Predicated region
      $region65: #{concat_feature.1} parent=47 // pred_check
        %p4047 = pneg %p213
      $region66: #{concat_feature.1} parent=47 // pred_check_branch
        %4049 = sbr.rel (%p4047) target = $region68
      $region67: #{concat_feature.1} parent=47 // pred_region
        %s4050 = smul.u32 %s25, %s24
      $region68: #{concat_feature.1} parent=47 // pred_fallthru
        _
    $region48: #{concat_feature.1} parent=5 // pred_fallthru
      _
    %p4051 = scmp.le.s32.totalorder 2, %s13
    // Predicated region
    $region69: #{concat_feature.1} parent=5 // pred_check
      %p4052 = pneg %p4051
    $region70: #{concat_feature.1} parent=5 // pred_check_branch
      %4054 = sbr.rel (%p4052) target = $region72
    $region71: #{concat_feature.1} parent=5 // pred_region
      %s4055 = ssub.s32 %s13, 2
      // Predicated region
      $region73: #{concat_feature.1} parent=71 // pred_check
        %p4056 = pneg %p219
      $region74: #{concat_feature.1} parent=71 // pred_check_branch
        %4058 = sbr.rel (%p4056) target = $region76
      $region75: #{concat_feature.1} parent=71 // pred_region
        %s4059 = smul.u32 %s28, %s27
        %p4060 = scmp.lt.s32.totalorder %s26, 1
        %s4061 = scalar_select %p4060, %s26, 1
        %p4062 = scmp.lt.s32.totalorder %s4059, 0
        %s4063 = scalar_select %p4062, %s4059, 0
        %s4064 = smul.addr %s4061, 136
        %s4065 = sadd.s32 %s4063, %s4064
        %s4066 = smul.addr %s4065, 8
        %s4067 = scalar_lea.vmem %s7, %s4066
      $region76: #{concat_feature.1} parent=71 // pred_fallthru
        _
    $region72: #{concat_feature.1} parent=5 // pred_fallthru
      _
  $region6: #{concat_feature.1} parent=0 // loop_footer
    %s17 = sadd.s32 1, %s13
  $region7: #{concat_feature.1} parent=0 // loop_footer_branch
    %12 = sbr.rel target = $region3
  $region8: #{concat_feature.1} parent=0 // loop_exit
    _

</llo_original>
